<compile_context>
chip_gen: v7x
topology: tpu7x:2x2x1
jax: 0.10.0
libtpu: 0.0.40
codegen_flags: <defaults>
</compile_context>

<pallas_src>
import functools
import math

import jax
import jax.numpy as jnp
from jax.experimental import pallas as pl
from jax.experimental.pallas import tpu as pltpu

_LN_EPS = 1e-5                       # PyTorch LayerNorm default
_VMEM_CAP = None                     # cached physical VMEM capacity


# ---------------------------------------------------------------------------
# Hardware-aware knobs.
# ---------------------------------------------------------------------------
def _tpu_vmem_capacity_bytes():
    global _VMEM_CAP
    if _VMEM_CAP is None:
        try:
            _VMEM_CAP = int(pltpu.get_tpu_info().vmem_capacity_bytes)
        except Exception:
            _VMEM_CAP = 64 * 1024 * 1024          # conservative (v7x-sized) fallback
    return _VMEM_CAP


def _vmem_limit_bytes():
    # ~7/8 of physical, capped at 112 MiB: ~56 MiB on v7x, 112 MiB on v5e/v6e.
    cap = _tpu_vmem_capacity_bytes()
    return min((cap * 7) // 8, 112 * 1024 * 1024)


def _compiler_params(dim_semantics):
    return pltpu.CompilerParams(
        dimension_semantics=dim_semantics,
        vmem_limit_bytes=_vmem_limit_bytes())


def _seq_tile(L, cap):
    """Largest tile <= cap (multiple of 8) that divides L; falls back to full L."""
    for t in (512, 256, 128, 64, 32, 16, 8):
        if t <= cap and L % t == 0:
            return t
    return L


def _hidden_tile(F):
    """Tile for the 4*D MLP hidden dim (bounds kernel-3 weight residency)."""
    for t in (1024, 512, 256, 128):
        if F % t == 0:
            return t
    return F


def _padded_len(L):
    Lp = ((L + 7) // 8) * 8
    if Lp > 128:
        Lp = ((L + 127) // 128) * 128
    return Lp


def _const_spec(arr, grid_rank):
    """Full-array block with a constant index map (weights, biases)."""
    nd = arr.ndim
    if grid_rank == 2:
        return pl.BlockSpec(arr.shape, lambda n, t, _nd=nd: (0,) * _nd)
    return pl.BlockSpec(arr.shape, lambda n, t, f, _nd=nd: (0,) * _nd)


def _layer_norm_f32(v, w, b):
    """LayerNorm in f32 (matches the fp16-safe LayerNorm subclass)."""
    mu = jnp.mean(v, axis=-1, keepdims=True)
    c = v - mu
    var = jnp.mean(c * c, axis=-1, keepdims=True)
    return c * jax.lax.rsqrt(var + _LN_EPS) * w + b


# ---------------------------------------------------------------------------
# Kernel 1: ln_1 + Q/K/V projections (row-tiled, lane-dense (.., D) outputs).
# ---------------------------------------------------------------------------
def _qkv_kernel(x_ref, ln_w_ref, ln_b_ref, wq_ref, bq_ref, wk_ref, bk_ref,
                wv_ref, bv_ref, q_ref, k_ref, v_ref):
    x = x_ref[0].astype(jnp.float32)                         # (TL, D)
    xn = _layer_norm_f32(x, ln_w_ref[...], ln_b_ref[...]).astype(jnp.bfloat16)
    # bf16 MXU operands, f32 accumulation; wq already carries 1/sqrt(head_dim).
    q_ref[0] = (jnp.dot(xn, wq_ref[...], preferred_element_type=jnp.float32)
                + bq_ref[...]).astype(q_ref.dtype)
    k_ref[0] = (jnp.dot(xn, wk_ref[...], preferred_element_type=jnp.float32)
                + bk_ref[...]).astype(k_ref.dtype)
    v_ref[0] = (jnp.dot(xn, wv_ref[...], preferred_element_type=jnp.float32)
                + bv_ref[...]).astype(v_ref.dtype)


def _qkv_projection(x, p, tl):
    N, Lp, D = x.shape
    xspec = pl.BlockSpec((1, tl, D), lambda n, t: (n, t, 0))
    out = jax.ShapeDtypeStruct((N, Lp, D), jnp.bfloat16)
    return pl.pallas_call(
        _qkv_kernel,
        out_shape=(out, out, out),
        grid=(N, Lp // tl),
        in_specs=[xspec,
                  _const_spec(p["ln1_w"], 2), _const_spec(p["ln1_b"], 2),
                  _const_spec(p["wq_t"], 2), _const_spec(p["bq"], 2),
                  _const_spec(p["wk_t"], 2), _const_spec(p["bk"], 2),
                  _const_spec(p["wv_t"], 2), _const_spec(p["bv"], 2)],
        out_specs=(xspec, xspec, xspec),
        compiler_params=_compiler_params(("parallel", "parallel")),
    )(x, p["ln1_w"], p["ln1_b"], p["wq_t"], p["bq"],
      p["wk_t"], p["bk"], p["wv_t"], p["bv"])


# ---------------------------------------------------------------------------
# Kernel 2: multi-head attention, grid (batch, q-tiles).
#           Reads q/k/v from a free (N, L, H, hd) view of the (N, L, D) arrays,
#           relayouts K/V to head-major once per batch element (pl.when on the
#           first q-tile), and writes ctx lane-dense into (N, L, D).
# ---------------------------------------------------------------------------
def _attention_kernel(q_ref, k_ref, v_ref, o_ref, kT_sc, vT_sc, *, true_L):
    @pl.when(pl.program_id(1) == 0)
    def _():
        kT_sc[...] = jnp.swapaxes(k_ref[0], 0, 1)            # (H, Lp, hd)
        vT_sc[...] = jnp.swapaxes(v_ref[0], 0, 1)

    q = jnp.swapaxes(q_ref[0], 0, 1)                         # (H, tq, hd) bf16, pre-scaled
    k = kT_sc[...]
    v = vT_sc[...]
    H, Lp, hd = k.shape

    s = jnp.einsum("hqd,hkd->hqk", q, k,
                   preferred_element_type=jnp.float32)       # (H, tq, Lp) f32
    if true_L < Lp:                                          # mask padded key positions
        kpos = jax.lax.broadcasted_iota(jnp.int32, s.shape, 2)
        s = jnp.where(kpos < true_L, s, jnp.float32(-1e30))
    # TODO(synk): user attn_mask not applied (reference uses attn_mask=None).
    s = s - jnp.max(s, axis=-1, keepdims=True)
    p = jnp.exp(s)
    l = jnp.sum(p, axis=-1, keepdims=True)                   # (H, tq, 1)
    ctx = jnp.einsum("hqk,hkd->hqd", p.astype(q.dtype), v,
                     preferred_element_type=jnp.float32)     # (H, tq, hd) f32
    # normalize on the small context (not the (H, tq, Lp) scores); EUP reciprocal
    ctx = (ctx * pl.reciprocal(l, approx=True)).astype(o_ref.dtype)
    # merge heads in-kernel -> lane-dense (tq, D) store
    o_ref[0] = jnp.concatenate([ctx[h] for h in range(H)], axis=-1)


def _attention(q, k, v, H, tq, true_L):
    N, Lp, D = q.shape
    hd = D // H
    # Free (bitcast) views: split of the contiguous minor dim, no data movement.
    q4 = q.reshape(N, Lp, H, hd)
    k4 = k.reshape(N, Lp, H, hd)
    v4 = v.reshape(N, Lp, H, hd)
    qspec = pl.BlockSpec((1, tq, H, hd), lambda n, t: (n, t, 0, 0))
    kvspec = pl.BlockSpec((1, Lp, H, hd), lambda n, t: (n, 0, 0, 0))
    kernel = functools.partial(_attention_kernel, true_L=true_L)
    return pl.pallas_call(
        kernel,
        out_shape=jax.ShapeDtypeStruct((N, Lp, D), jnp.bfloat16),
        grid=(N, Lp // tq),
        in_specs=[qspec, kvspec, kvspec],
        out_specs=pl.BlockSpec((1, tq, D), lambda n, t: (n, t, 0)),
        scratch_shapes=[pltpu.VMEM((H, Lp, hd), jnp.bfloat16),
                        pltpu.VMEM((H, Lp, hd), jnp.bfloat16)],
        # q-tile axis is "arbitrary": the K/V head-major scratch is carried
        # across q-tiles of the same batch element.
        compiler_params=_compiler_params(("parallel", "arbitrary")),
    )(q4, k4, v4)


# ---------------------------------------------------------------------------
# Kernel 3: attention out-projection + residual + ln_2 + MLP + residual.
#           The 4*D hidden dim is tiled (last, "arbitrary" grid axis) with a
#           resident f32 accumulator so weight residency stays bounded on v7x.
# ---------------------------------------------------------------------------
def _proj_mlp_kernel(x_ref, ctx_ref, wo_ref, bo_ref, ln2_w_ref, ln2_b_ref,
                     wfc_ref, bfc_ref, wproj_ref, bproj_ref, o_ref,
                     xres_sc, xn_sc, acc_sc):
    f = pl.program_id(2)

    @pl.when(f == 0)
    def _():
        x = x_ref[0].astype(jnp.float32)                     # (TL, D)
        ao = jnp.dot(ctx_ref[0], wo_ref[...],
                     preferred_element_type=jnp.float32) + bo_ref[...]
        xr = x + ao                                          # residual 1
        xres_sc[...] = xr
        xn_sc[...] = _layer_norm_f32(xr, ln2_w_ref[...], ln2_b_ref[...]
                                     ).astype(xn_sc.dtype)
        acc_sc[...] = jnp.zeros_like(acc_sc)

    h = jnp.dot(xn_sc[...], wfc_ref[...],
                preferred_element_type=jnp.float32) + bfc_ref[...]
    h = h * jax.nn.sigmoid(1.702 * h)                        # QuickGELU (f32)
    acc_sc[...] += jnp.dot(h.astype(jnp.bfloat16), wproj_ref[...],
                           preferred_element_type=jnp.float32)

    @pl.when(f == pl.num_programs(2) - 1)
    def _():
        o_ref[0] = (xres_sc[...] + acc_sc[...]
                    + bproj_ref[...]).astype(o_ref.dtype)    # residual 2


def _out_proj_mlp(x, ctx, p, tl, tf):
    N, Lp, D = x.shape
    F = p["wfc_t"].shape[1]
    xspec = pl.BlockSpec((1, tl, D), lambda n, t, f: (n, t, 0))
    return pl.pallas_call(
        _proj_mlp_kernel,
        out_shape=jax.ShapeDtypeStruct((N, Lp, D), x.dtype),
        grid=(N, Lp // tl, F // tf),
        in_specs=[xspec, xspec,
                  _const_spec(p["wo_t"], 3), _const_spec(p["bo"], 3),
                  _const_spec(p["ln2_w"], 3), _const_spec(p["ln2_b"], 3),
                  pl.BlockSpec((D, tf), lambda n, t, f: (0, f)),
                  pl.BlockSpec((1, tf), lambda n, t, f: (0, f)),
                  pl.BlockSpec((tf, D), lambda n, t, f: (f, 0)),
                  _const_spec(p["bproj"], 3)],
        out_specs=xspec,
        scratch_shapes=[pltpu.VMEM((tl, D), jnp.float32),    # residual-1 result
                        pltpu.VMEM((tl, D), jnp.bfloat16),   # ln_2 output
                        pltpu.VMEM((tl, D), jnp.float32)],   # MLP accumulator
        compiler_params=_compiler_params(("parallel", "parallel", "arbitrary")),
    )(x, ctx, p["wo_t"], p["bo"], p["ln2_w"], p["ln2_b"],
      p["wfc_t"], p["bfc"], p["wproj_t"], p["bproj"])


# ---------------------------------------------------------------------------
# Residual block + Transformer.  Public API uses (L, N, D) layout.
# ---------------------------------------------------------------------------
def residual_attention_block(x_nld, p, true_L):
    N, Lp, D = x_nld.shape
    H = p["heads"]
    cap = _tpu_vmem_capacity_bytes()
    row_cap = 256 if cap <= 64 * 1024 * 1024 else 512        # smaller tiles on v7x
    tl = _seq_tile(Lp, row_cap)
    tq = _seq_tile(Lp, 256)                                  # bounds (H, tq, Lp) f32 scores
    tf = _hidden_tile(p["wfc_t"].shape[1])

    q, k, v = _qkv_projection(x_nld, p, tl)                  # (N, Lp, D) bf16 each
    ctx = _attention(q, k, v, H, tq, true_L)                 # (N, Lp, D) bf16
    return _out_proj_mlp(x_nld, ctx, p, tl, tf)              # (N, Lp, D)


def transformer_forward(x_lnd, params):
    L, N, D = x_lnd.shape
    x = jnp.transpose(x_lnd, (1, 0, 2))                      # (N, L, D)
    Lp = _padded_len(L)
    if Lp != L:
        x = jnp.pad(x, ((0, 0), (0, Lp - L), (0, 0)))        # padded keys masked in-kernel
    for p in params:
        x = residual_attention_block(x, p, L)
    if Lp != L:
        x = x[:, :L]
    return jnp.transpose(x, (1, 0, 2))                       # back to (L, N, D)


# ---------------------------------------------------------------------------
# Parameters: PyTorch-layout init + host-side prep (split q/k/v, pre-transpose,
# bf16 cast, fold 1/sqrt(head_dim) into the Q projection).
# ---------------------------------------------------------------------------
def init_params(key, width, layers, heads):
    params = []
    d = width
    for _ in range(layers):
        key, k0, k1, k2, k3, k4, k5, k6, k7 = jax.random.split(key, 9)
        params.append(dict(
            heads=heads,
            ln1_w=jnp.ones((1, d), jnp.float32),
            ln1_b=jnp.zeros((1, d), jnp.float32),
            wqkv=0.05 * jax.random.normal(k0, (3 * d, d), jnp.float32),
            bqkv=0.05 * jax.random.normal(k1, (1, 3 * d), jnp.float32),
            wo=0.05 * jax.random.normal(k2, (d, d), jnp.float32),
            bo=0.05 * jax.random.normal(k3, (1, d), jnp.float32),
            ln2_w=jnp.ones((1, d), jnp.float32),
            ln2_b=jnp.zeros((1, d), jnp.float32),
            wfc=0.05 * jax.random.normal(k4, (4 * d, d), jnp.float32),
            bfc=0.05 * jax.random.normal(k5, (1, 4 * d), jnp.float32),
            wproj=0.05 * jax.random.normal(k6, (d, 4 * d), jnp.float32),
            bproj=0.05 * jax.random.normal(k7, (1, d), jnp.float32),
        ))
    return params


def prepare_params(params):
    prepped = []
    for p in params:
        D = p["wo"].shape[0]
        H = p["heads"]
        hd = D // H
        scale = 1.0 / math.sqrt(hd)
        wq, wk, wv = p["wqkv"][:D], p["wqkv"][D:2 * D], p["wqkv"][2 * D:]
        bq, bk, bv = p["bqkv"][:, :D], p["bqkv"][:, D:2 * D], p["bqkv"][:, 2 * D:]
        prepped.append(dict(
            heads=H,
            ln1_w=p["ln1_w"], ln1_b=p["ln1_b"],
            wq_t=(jnp.transpose(wq) * scale).astype(jnp.bfloat16),
            bq=bq * scale,
            wk_t=jnp.transpose(wk).astype(jnp.bfloat16), bk=bk,
            wv_t=jnp.transpose(wv).astype(jnp.bfloat16), bv=bv,
            wo_t=jnp.transpose(p["wo"]).astype(jnp.bfloat16), bo=p["bo"],
            ln2_w=p["ln2_w"], ln2_b=p["ln2_b"],
            wfc_t=jnp.transpose(p["wfc"]).astype(jnp.bfloat16), bfc=p["bfc"],
            wproj_t=jnp.transpose(p["wproj"]).astype(jnp.bfloat16), bproj=p["bproj"],
        ))
    return prepped


# ---------------------------------------------------------------------------
# Pure-JAX f32 reference (mirrors PyTorch semantics) for a correctness check.
# ---------------------------------------------------------------------------
def _reference_forward(x_lnd, params):
    x = jnp.transpose(x_lnd, (1, 0, 2)).astype(jnp.float32)  # (N, L, D)
    N, L, D = x.shape
    for p in params:
        H = p["heads"]
        hd = D // H

        def ln(v, w, b):
            mu = jnp.mean(v, -1, keepdims=True)
            var = jnp.mean((v - mu) ** 2, -1, keepdims=True)
            return (v - mu) / jnp.sqrt(var + _LN_EPS) * w + b

        xn = ln(x, p["ln1_w"][0], p["ln1_b"][0])
        qkv = xn @ p["wqkv"].T + p["bqkv"][0]
        q, k, v = qkv[..., :D], qkv[..., D:2 * D], qkv[..., 2 * D:]
        q = q.reshape(N, L, H, hd).transpose(0, 2, 1, 3) / jnp.sqrt(hd)
        k = k.reshape(N, L, H, hd).transpose(0, 2, 1, 3)
        v = v.reshape(N, L, H, hd).transpose(0, 2, 1, 3)
        s = jax.nn.softmax(q @ jnp.swapaxes(k, -1, -2), axis=-1)
        ao = (s @ v).transpose(0, 2, 1, 3).reshape(N, L, D)
        x = x + ao @ p["wo"].T + p["bo"][0]
        xn2 = ln(x, p["ln2_w"][0], p["ln2_b"][0])
        hmid = xn2 @ p["wfc"].T + p["bfc"][0]
        hmid = hmid * jax.nn.sigmoid(1.702 * hmid)
        x = x + hmid @ p["wproj"].T + p["bproj"][0]
    return jnp.transpose(x, (1, 0, 2))


if __name__ == "__main__":
    # small shapes: width=32, heads=4, layers=2, seq=8, batch=2
    width, heads, layers = 32, 4, 2
    L, N = 8, 2

    key = jax.random.PRNGKey(0)
    kx, kp = jax.random.split(key)
    x = jax.random.normal(kx, (L, N, width), jnp.float32)    # (seq, batch, width)
    torch_params = init_params(kp, width, layers, heads)
    kernel_params = prepare_params(torch_params)

    fwd = jax.jit(lambda t: transformer_forward(t, kernel_params))
    out = jax.block_until_ready(fwd(x))

    ref = _reference_forward(x, torch_params)
    assert out.shape == (L, N, width)
    # bf16 MXU operands + approx reciprocal -> slightly looser tolerance than pure f32
    assert jnp.allclose(out, ref, atol=2e-2, rtol=2e-2), (
        "mismatch vs reference: max abs err = "
        + str(float(jnp.max(jnp.abs(out - ref)))))

    print("KERNEL_OK")
</pallas_src>

<mosaic_0001>
module attributes {stable_mosaic.version = 11 : i64} {
  func.func @_qkv_kernel(%arg0: i32, %arg1: i32, %arg2: memref<1x8x32xf32, #tpu.memory_space<vmem>>, %arg3: memref<1x32xf32, #tpu.memory_space<vmem>>, %arg4: memref<1x32xf32, #tpu.memory_space<vmem>>, %arg5: memref<32x32xbf16, #tpu.memory_space<vmem>>, %arg6: memref<1x32xf32, #tpu.memory_space<vmem>>, %arg7: memref<32x32xbf16, #tpu.memory_space<vmem>>, %arg8: memref<1x32xf32, #tpu.memory_space<vmem>>, %arg9: memref<32x32xbf16, #tpu.memory_space<vmem>>, %arg10: memref<1x32xf32, #tpu.memory_space<vmem>>, %arg11: memref<1x8x32xbf16, #tpu.memory_space<vmem>>, %arg12: memref<1x8x32xbf16, #tpu.memory_space<vmem>>, %arg13: memref<1x8x32xbf16, #tpu.memory_space<vmem>>) attributes {dimension_semantics = [#tpu.dimension_semantics<parallel>, #tpu.dimension_semantics<parallel>], iteration_bounds = array<i64: 2, 1>, scalar_prefetch = 0 : i64, scratch_operands = 0 : i64, tpu.core_type = #tpu.core_type<tc>, window_params = [{transform_indices = @transform_0, window_bounds = array<i64: 1, 8, 32>}, {pipeline_mode = #tpu.pipeline_mode<synchronous>, transform_indices = @transform_1, window_bounds = array<i64: 1, 32>}, {pipeline_mode = #tpu.pipeline_mode<synchronous>, transform_indices = @transform_2, window_bounds = array<i64: 1, 32>}, {pipeline_mode = #tpu.pipeline_mode<synchronous>, transform_indices = @transform_3, window_bounds = array<i64: 32, 32>}, {pipeline_mode = #tpu.pipeline_mode<synchronous>, transform_indices = @transform_4, window_bounds = array<i64: 1, 32>}, {pipeline_mode = #tpu.pipeline_mode<synchronous>, transform_indices = @transform_5, window_bounds = array<i64: 32, 32>}, {pipeline_mode = #tpu.pipeline_mode<synchronous>, transform_indices = @transform_6, window_bounds = array<i64: 1, 32>}, {pipeline_mode = #tpu.pipeline_mode<synchronous>, transform_indices = @transform_7, window_bounds = array<i64: 32, 32>}, {pipeline_mode = #tpu.pipeline_mode<synchronous>, transform_indices = @transform_8, window_bounds = array<i64: 1, 32>}, {transform_indices = @transform_9, window_bounds = array<i64: 1, 8, 32>}, {transform_indices = @transform_10, window_bounds = array<i64: 1, 8, 32>}, {transform_indices = @transform_11, window_bounds = array<i64: 1, 8, 32>}]} {
    %c0 = arith.constant 0 : index
    %c0_0 = arith.constant 0 : index
    %c0_1 = arith.constant 0 : index
    %0 = vector.load %arg2[%c0, %c0_0, %c0_1] : memref<1x8x32xf32, #tpu.memory_space<vmem>>, vector<1x8x32xf32>
    %1 = vector.shape_cast %0 : vector<1x8x32xf32> to vector<8x32xf32>
    %c0_2 = arith.constant 0 : index
    %c0_3 = arith.constant 0 : index
    %2 = vector.load %arg3[%c0_2, %c0_3] : memref<1x32xf32, #tpu.memory_space<vmem>>, vector<1x32xf32>
    %c0_4 = arith.constant 0 : index
    %c0_5 = arith.constant 0 : index
    %3 = vector.load %arg4[%c0_4, %c0_5] : memref<1x32xf32, #tpu.memory_space<vmem>>, vector<1x32xf32>
    %cst = arith.constant dense<0.000000e+00> : vector<8xf32>
    %4 = vector.multi_reduction <add>, %1, %cst [1] : vector<8x32xf32> to vector<8xf32>
    %5 = vector.shape_cast %4 : vector<8xf32> to vector<8x1xf32>
    %cst_6 = arith.constant 3.200000e+01 : f32
    %6 = vector.broadcast %cst_6 : f32 to vector<8x1xf32>
    %7 = arith.divf %5, %6 : vector<8x1xf32>
    %8 = vector.broadcast %7 : vector<8x1xf32> to vector<8x32xf32>
    %9 = arith.subf %1, %8 : vector<8x32xf32>
    %10 = arith.mulf %9, %9 : vector<8x32xf32>
    %cst_7 = arith.constant dense<0.000000e+00> : vector<8xf32>
    %11 = vector.multi_reduction <add>, %10, %cst_7 [1] : vector<8x32xf32> to vector<8xf32>
    %12 = vector.shape_cast %11 : vector<8xf32> to vector<8x1xf32>
    %cst_8 = arith.constant 3.200000e+01 : f32
    %13 = vector.broadcast %cst_8 : f32 to vector<8x1xf32>
    %14 = arith.divf %12, %13 : vector<8x1xf32>
    %cst_9 = arith.constant 9.99999974E-6 : f32
    %15 = vector.broadcast %cst_9 : f32 to vector<8x1xf32>
    %16 = arith.addf %14, %15 : vector<8x1xf32>
    %17 = math.rsqrt %16 : vector<8x1xf32>
    %18 = vector.broadcast %17 : vector<8x1xf32> to vector<8x32xf32>
    %19 = arith.mulf %9, %18 : vector<8x32xf32>
    %20 = vector.broadcast %2 : vector<1x32xf32> to vector<8x32xf32>
    %21 = arith.mulf %19, %20 : vector<8x32xf32>
    %22 = vector.broadcast %3 : vector<1x32xf32> to vector<8x32xf32>
    %23 = arith.addf %21, %22 : vector<8x32xf32>
    %24 = arith.truncf %23 : vector<8x32xf32> to vector<8x32xbf16>
    %c0_10 = arith.constant 0 : index
    %c0_11 = arith.constant 0 : index
    %25 = vector.load %arg5[%c0_10, %c0_11] : memref<32x32xbf16, #tpu.memory_space<vmem>>, vector<32x32xbf16>
    %cst_12 = arith.constant dense<0.000000e+00> : vector<8x32xf32>
    %26 = tpu.matmul %24, %25, %cst_12 {dimension_numbers = #tpu.dot_dimension_numbers<[1], [0], [0], [1], [0, 0, 1, 1], [], []>} : vector<8x32xbf16>, vector<32x32xbf16>, vector<8x32xf32> -> vector<8x32xf32>
    %c0_13 = arith.constant 0 : index
    %c0_14 = arith.constant 0 : index
    %27 = vector.load %arg6[%c0_13, %c0_14] : memref<1x32xf32, #tpu.memory_space<vmem>>, vector<1x32xf32>
    %28 = vector.broadcast %27 : vector<1x32xf32> to vector<8x32xf32>
    %29 = arith.addf %26, %28 : vector<8x32xf32>
    %30 = arith.truncf %29 : vector<8x32xf32> to vector<8x32xbf16>
    %c0_15 = arith.constant 0 : index
    %c0_16 = arith.constant 0 : index
    %c0_17 = arith.constant 0 : index
    %31 = vector.load %arg11[%c0_15, %c0_16, %c0_17] : memref<1x8x32xbf16, #tpu.memory_space<vmem>>, vector<1x8x32xbf16>
    %32 = vector.shape_cast %31 : vector<1x8x32xbf16> to vector<8x32xbf16>
    %33 = vector.shape_cast %30 : vector<8x32xbf16> to vector<1x8x32xbf16>
    tpu.vector_store %arg11[%c0_15, %c0_16, %c0_17], %33 {strides = array<i32>} : memref<1x8x32xbf16, #tpu.memory_space<vmem>>, vector<1x8x32xbf16>,
    %c0_18 = arith.constant 0 : index
    %c0_19 = arith.constant 0 : index
    %34 = vector.load %arg7[%c0_18, %c0_19] : memref<32x32xbf16, #tpu.memory_space<vmem>>, vector<32x32xbf16>
    %cst_20 = arith.constant dense<0.000000e+00> : vector<8x32xf32>
    %35 = tpu.matmul %24, %34, %cst_20 {dimension_numbers = #tpu.dot_dimension_numbers<[1], [0], [0], [1], [0, 0, 1, 1], [], []>} : vector<8x32xbf16>, vector<32x32xbf16>, vector<8x32xf32> -> vector<8x32xf32>
    %c0_21 = arith.constant 0 : index
    %c0_22 = arith.constant 0 : index
    %36 = vector.load %arg8[%c0_21, %c0_22] : memref<1x32xf32, #tpu.memory_space<vmem>>, vector<1x32xf32>
    %37 = vector.broadcast %36 : vector<1x32xf32> to vector<8x32xf32>
    %38 = arith.addf %35, %37 : vector<8x32xf32>
    %39 = arith.truncf %38 : vector<8x32xf32> to vector<8x32xbf16>
    %c0_23 = arith.constant 0 : index
    %c0_24 = arith.constant 0 : index
    %c0_25 = arith.constant 0 : index
    %40 = vector.load %arg12[%c0_23, %c0_24, %c0_25] : memref<1x8x32xbf16, #tpu.memory_space<vmem>>, vector<1x8x32xbf16>
    %41 = vector.shape_cast %40 : vector<1x8x32xbf16> to vector<8x32xbf16>
    %42 = vector.shape_cast %39 : vector<8x32xbf16> to vector<1x8x32xbf16>
    tpu.vector_store %arg12[%c0_23, %c0_24, %c0_25], %42 {strides = array<i32>} : memref<1x8x32xbf16, #tpu.memory_space<vmem>>, vector<1x8x32xbf16>,
    %c0_26 = arith.constant 0 : index
    %c0_27 = arith.constant 0 : index
    %43 = vector.load %arg9[%c0_26, %c0_27] : memref<32x32xbf16, #tpu.memory_space<vmem>>, vector<32x32xbf16>
    %cst_28 = arith.constant dense<0.000000e+00> : vector<8x32xf32>
    %44 = tpu.matmul %24, %43, %cst_28 {dimension_numbers = #tpu.dot_dimension_numbers<[1], [0], [0], [1], [0, 0, 1, 1], [], []>} : vector<8x32xbf16>, vector<32x32xbf16>, vector<8x32xf32> -> vector<8x32xf32>
    %c0_29 = arith.constant 0 : index
    %c0_30 = arith.constant 0 : index
    %45 = vector.load %arg10[%c0_29, %c0_30] : memref<1x32xf32, #tpu.memory_space<vmem>>, vector<1x32xf32>
    %46 = vector.broadcast %45 : vector<1x32xf32> to vector<8x32xf32>
    %47 = arith.addf %44, %46 : vector<8x32xf32>
    %48 = arith.truncf %47 : vector<8x32xf32> to vector<8x32xbf16>
    %c0_31 = arith.constant 0 : index
    %c0_32 = arith.constant 0 : index
    %c0_33 = arith.constant 0 : index
    %49 = vector.load %arg13[%c0_31, %c0_32, %c0_33] : memref<1x8x32xbf16, #tpu.memory_space<vmem>>, vector<1x8x32xbf16>
    %50 = vector.shape_cast %49 : vector<1x8x32xbf16> to vector<8x32xbf16>
    %51 = vector.shape_cast %48 : vector<8x32xbf16> to vector<1x8x32xbf16>
    tpu.vector_store %arg13[%c0_31, %c0_32, %c0_33], %51 {strides = array<i32>} : memref<1x8x32xbf16, #tpu.memory_space<vmem>>, vector<1x8x32xbf16>,
    return
  }
  func.func @transform_0(%arg0: i32, %arg1: i32) -> (i32, i32, i32) {
    %c0_i32 = arith.constant 0 : i32
    %c0_i32_0 = arith.constant 0 : i32
    return %arg0, %arg1, %c0_i32 : i32, i32, i32
  }
  func.func @transform_1(%arg0: i32, %arg1: i32) -> (i32, i32) {
    %c0_i32 = arith.constant 0 : i32
    %c0_i32_0 = arith.constant 0 : i32
    %c0_i32_1 = arith.constant 0 : i32
    return %c0_i32, %c0_i32_0 : i32, i32
  }
  func.func @transform_2(%arg0: i32, %arg1: i32) -> (i32, i32) {
    %c0_i32 = arith.constant 0 : i32
    %c0_i32_0 = arith.constant 0 : i32
    %c0_i32_1 = arith.constant 0 : i32
    return %c0_i32, %c0_i32_0 : i32, i32
  }
  func.func @transform_3(%arg0: i32, %arg1: i32) -> (i32, i32) {
    %c0_i32 = arith.constant 0 : i32
    %c0_i32_0 = arith.constant 0 : i32
    %c0_i32_1 = arith.constant 0 : i32
    return %c0_i32, %c0_i32_0 : i32, i32
  }
  func.func @transform_4(%arg0: i32, %arg1: i32) -> (i32, i32) {
    %c0_i32 = arith.constant 0 : i32
    %c0_i32_0 = arith.constant 0 : i32
    %c0_i32_1 = arith.constant 0 : i32
    return %c0_i32, %c0_i32_0 : i32, i32
  }
  func.func @transform_5(%arg0: i32, %arg1: i32) -> (i32, i32) {
    %c0_i32 = arith.constant 0 : i32
    %c0_i32_0 = arith.constant 0 : i32
    %c0_i32_1 = arith.constant 0 : i32
    return %c0_i32, %c0_i32_0 : i32, i32
  }
  func.func @transform_6(%arg0: i32, %arg1: i32) -> (i32, i32) {
    %c0_i32 = arith.constant 0 : i32
    %c0_i32_0 = arith.constant 0 : i32
    %c0_i32_1 = arith.constant 0 : i32
    return %c0_i32, %c0_i32_0 : i32, i32
  }
  func.func @transform_7(%arg0: i32, %arg1: i32) -> (i32, i32) {
    %c0_i32 = arith.constant 0 : i32
    %c0_i32_0 = arith.constant 0 : i32
    %c0_i32_1 = arith.constant 0 : i32
    return %c0_i32, %c0_i32_0 : i32, i32
  }
  func.func @transform_8(%arg0: i32, %arg1: i32) -> (i32, i32) {
    %c0_i32 = arith.constant 0 : i32
    %c0_i32_0 = arith.constant 0 : i32
    %c0_i32_1 = arith.constant 0 : i32
    return %c0_i32, %c0_i32_0 : i32, i32
  }
  func.func @transform_9(%arg0: i32, %arg1: i32) -> (i32, i32, i32) {
    %c0_i32 = arith.constant 0 : i32
    %c0_i32_0 = arith.constant 0 : i32
    return %arg0, %arg1, %c0_i32 : i32, i32, i32
  }
  func.func @transform_10(%arg0: i32, %arg1: i32) -> (i32, i32, i32) {
    %c0_i32 = arith.constant 0 : i32
    %c0_i32_0 = arith.constant 0 : i32
    return %arg0, %arg1, %c0_i32 : i32, i32, i32
  }
  func.func @transform_11(%arg0: i32, %arg1: i32) -> (i32, i32, i32) {
    %c0_i32 = arith.constant 0 : i32
    %c0_i32_0 = arith.constant 0 : i32
    return %arg0, %arg1, %c0_i32 : i32, i32, i32
  }
}

module attributes {stable_mosaic.version = 11 : i64} {
  func.func @_attention_kernel(%arg0: i32, %arg1: i32, %arg2: memref<1x8x4x8xbf16, #tpu.memory_space<vmem>>, %arg3: memref<1x8x4x8xbf16, #tpu.memory_space<vmem>>, %arg4: memref<1x8x4x8xbf16, #tpu.memory_space<vmem>>, %arg5: memref<1x8x32xbf16, #tpu.memory_space<vmem>>, %arg6: memref<4x8x8xbf16, #tpu.memory_space<vmem>>, %arg7: memref<4x8x8xbf16, #tpu.memory_space<vmem>>) attributes {dimension_semantics = [#tpu.dimension_semantics<parallel>, #tpu.dimension_semantics<arbitrary>], iteration_bounds = array<i64: 2, 1>, scalar_prefetch = 0 : i64, scratch_operands = 2 : i64, tpu.core_type = #tpu.core_type<tc>, window_params = [{transform_indices = @transform_0, window_bounds = array<i64: 1, 8, 4, 8>}, {transform_indices = @transform_1, window_bounds = array<i64: 1, 8, 4, 8>}, {transform_indices = @transform_2, window_bounds = array<i64: 1, 8, 4, 8>}, {transform_indices = @transform_3, window_bounds = array<i64: 1, 8, 32>}]} {
    %c0_i32 = arith.constant 0 : i32
    %0 = arith.cmpi eq, %arg1, %c0_i32 : i32
    %1 = arith.extui %0 : i1 to i32
    %c0_i32_0 = arith.constant 0 : i32
    %2 = arith.cmpi ne, %1, %c0_i32_0 : i32
    scf.if %2 {
      %c0_16 = arith.constant 0 : index
      %c0_17 = arith.constant 0 : index
      %c0_18 = arith.constant 0 : index
      %c0_19 = arith.constant 0 : index
      %34 = vector.load %arg3[%c0_16, %c0_17, %c0_18, %c0_19] : memref<1x8x4x8xbf16, #tpu.memory_space<vmem>>, vector<1x8x4x8xbf16>
      %35 = vector.shape_cast %34 : vector<1x8x4x8xbf16> to vector<8x4x8xbf16>
      %36 = tpu.transpose %35, [1, 0, 2] : vector<8x4x8xbf16> -> vector<4x8x8xbf16>
      %c0_20 = arith.constant 0 : index
      %c0_21 = arith.constant 0 : index
      %c0_22 = arith.constant 0 : index
      %37 = vector.load %arg6[%c0_20, %c0_21, %c0_22] : memref<4x8x8xbf16, #tpu.memory_space<vmem>>, vector<4x8x8xbf16>
      tpu.vector_store %arg6[%c0_20, %c0_21, %c0_22], %36 {strides = array<i32>} : memref<4x8x8xbf16, #tpu.memory_space<vmem>>, vector<4x8x8xbf16>,
      %c0_23 = arith.constant 0 : index
      %c0_24 = arith.constant 0 : index
      %c0_25 = arith.constant 0 : index
      %c0_26 = arith.constant 0 : index
      %38 = vector.load %arg4[%c0_23, %c0_24, %c0_25, %c0_26] : memref<1x8x4x8xbf16, #tpu.memory_space<vmem>>, vector<1x8x4x8xbf16>
      %39 = vector.shape_cast %38 : vector<1x8x4x8xbf16> to vector<8x4x8xbf16>
      %40 = tpu.transpose %39, [1, 0, 2] : vector<8x4x8xbf16> -> vector<4x8x8xbf16>
      %c0_27 = arith.constant 0 : index
      %c0_28 = arith.constant 0 : index
      %c0_29 = arith.constant 0 : index
      %41 = vector.load %arg7[%c0_27, %c0_28, %c0_29] : memref<4x8x8xbf16, #tpu.memory_space<vmem>>, vector<4x8x8xbf16>
      tpu.vector_store %arg7[%c0_27, %c0_28, %c0_29], %40 {strides = array<i32>} : memref<4x8x8xbf16, #tpu.memory_space<vmem>>, vector<4x8x8xbf16>,
    } else {
    }
    %c0 = arith.constant 0 : index
    %c0_1 = arith.constant 0 : index
    %c0_2 = arith.constant 0 : index
    %c0_3 = arith.constant 0 : index
    %3 = vector.load %arg2[%c0, %c0_1, %c0_2, %c0_3] : memref<1x8x4x8xbf16, #tpu.memory_space<vmem>>, vector<1x8x4x8xbf16>
    %4 = vector.shape_cast %3 : vector<1x8x4x8xbf16> to vector<8x4x8xbf16>
    %5 = tpu.transpose %4, [1, 0, 2] : vector<8x4x8xbf16> -> vector<4x8x8xbf16>
    %c0_4 = arith.constant 0 : index
    %c0_5 = arith.constant 0 : index
    %c0_6 = arith.constant 0 : index
    %6 = vector.load %arg6[%c0_4, %c0_5, %c0_6] : memref<4x8x8xbf16, #tpu.memory_space<vmem>>, vector<4x8x8xbf16>
    %c0_7 = arith.constant 0 : index
    %c0_8 = arith.constant 0 : index
    %c0_9 = arith.constant 0 : index
    %7 = vector.load %arg7[%c0_7, %c0_8, %c0_9] : memref<4x8x8xbf16, #tpu.memory_space<vmem>>, vector<4x8x8xbf16>
    "tpu.trace_start"() <{level = 10 : i32, message = "hqd,hkd->hqk"}> : () -> ()
    %cst = arith.constant dense<0.000000e+00> : vector<4x8x8xf32>
    %8 = tpu.matmul %5, %6, %cst {dimension_numbers = #tpu.dot_dimension_numbers<[2], [2], [1], [1], [0, 0, 0, 1, 1, 1], [0], [0]>} : vector<4x8x8xbf16>, vector<4x8x8xbf16>, vector<4x8x8xf32> -> vector<4x8x8xf32>
    "tpu.trace_stop"() : () -> ()
    %cst_10 = arith.constant dense<0xFF800000> : vector<4x8xf32>
    %9 = vector.multi_reduction <maximumf>, %8, %cst_10 [2] : vector<4x8x8xf32> to vector<4x8xf32>
    %10 = vector.shape_cast %9 : vector<4x8xf32> to vector<4x8x1xf32>
    %11 = vector.broadcast %10 : vector<4x8x1xf32> to vector<4x8x8xf32>
    %12 = arith.subf %8, %11 : vector<4x8x8xf32>
    %13 = math.exp %12 : vector<4x8x8xf32>
    %cst_11 = arith.constant dense<0.000000e+00> : vector<4x8xf32>
    %14 = vector.multi_reduction <add>, %13, %cst_11 [2] : vector<4x8x8xf32> to vector<4x8xf32>
    %15 = vector.shape_cast %14 : vector<4x8xf32> to vector<4x8x1xf32>
    %16 = arith.truncf %13 : vector<4x8x8xf32> to vector<4x8x8xbf16>
    "tpu.trace_start"() <{level = 10 : i32, message = "hqk,hkd->hqd"}> : () -> ()
    %cst_12 = arith.constant dense<0.000000e+00> : vector<4x8x8xf32>
    %17 = tpu.matmul %16, %7, %cst_12 {dimension_numbers = #tpu.dot_dimension_numbers<[2], [1], [1], [2], [0, 0, 0, 1, 1, 2], [0], [0]>} : vector<4x8x8xbf16>, vector<4x8x8xbf16>, vector<4x8x8xf32> -> vector<4x8x8xf32>
    "tpu.trace_stop"() : () -> ()
    %18 = tpu.reciprocal %15 {approx = true} : vector<4x8x1xf32> -> vector<4x8x1xf32>
    %19 = vector.broadcast %18 : vector<4x8x1xf32> to vector<4x8x8xf32>
    %20 = arith.mulf %17, %19 : vector<4x8x8xf32>
    %21 = arith.truncf %20 : vector<4x8x8xf32> to vector<4x8x8xbf16>
    %22 = vector.extract_strided_slice %21 {offsets = [0, 0, 0], sizes = [1, 8, 8], strides = [1, 1, 1]} : vector<4x8x8xbf16> to vector<1x8x8xbf16>
    %23 = vector.shape_cast %22 : vector<1x8x8xbf16> to vector<8x8xbf16>
    %24 = vector.extract_strided_slice %21 {offsets = [1, 0, 0], sizes = [1, 8, 8], strides = [1, 1, 1]} : vector<4x8x8xbf16> to vector<1x8x8xbf16>
    %25 = vector.shape_cast %24 : vector<1x8x8xbf16> to vector<8x8xbf16>
    %26 = vector.extract_strided_slice %21 {offsets = [2, 0, 0], sizes = [1, 8, 8], strides = [1, 1, 1]} : vector<4x8x8xbf16> to vector<1x8x8xbf16>
    %27 = vector.shape_cast %26 : vector<1x8x8xbf16> to vector<8x8xbf16>
    %28 = vector.extract_strided_slice %21 {offsets = [3, 0, 0], sizes = [1, 8, 8], strides = [1, 1, 1]} : vector<4x8x8xbf16> to vector<1x8x8xbf16>
    %29 = vector.shape_cast %28 : vector<1x8x8xbf16> to vector<8x8xbf16>
    %30 = tpu.concatenate %23, %25, %27, %29 in 1 : vector<8x8xbf16>, vector<8x8xbf16>, vector<8x8xbf16>, vector<8x8xbf16> -> vector<8x32xbf16>
    %c0_13 = arith.constant 0 : index
    %c0_14 = arith.constant 0 : index
    %c0_15 = arith.constant 0 : index
    %31 = vector.load %arg5[%c0_13, %c0_14, %c0_15] : memref<1x8x32xbf16, #tpu.memory_space<vmem>>, vector<1x8x32xbf16>
    %32 = vector.shape_cast %31 : vector<1x8x32xbf16> to vector<8x32xbf16>
    %33 = vector.shape_cast %30 : vector<8x32xbf16> to vector<1x8x32xbf16>
    tpu.vector_store %arg5[%c0_13, %c0_14, %c0_15], %33 {strides = array<i32>} : memref<1x8x32xbf16, #tpu.memory_space<vmem>>, vector<1x8x32xbf16>,
    return
  }
  func.func @transform_0(%arg0: i32, %arg1: i32) -> (i32, i32, i32, i32) {
    %c0_i32 = arith.constant 0 : i32
    %c0_i32_0 = arith.constant 0 : i32
    %c0_i32_1 = arith.constant 0 : i32
    return %arg0, %arg1, %c0_i32, %c0_i32_0 : i32, i32, i32, i32
  }
  func.func @transform_1(%arg0: i32, %arg1: i32) -> (i32, i32, i32, i32) {
    %c0_i32 = arith.constant 0 : i32
    %c0_i32_0 = arith.constant 0 : i32
    %c0_i32_1 = arith.constant 0 : i32
    %c0_i32_2 = arith.constant 0 : i32
    return %arg0, %c0_i32, %c0_i32_0, %c0_i32_1 : i32, i32, i32, i32
  }
  func.func @transform_2(%arg0: i32, %arg1: i32) -> (i32, i32, i32, i32) {
    %c0_i32 = arith.constant 0 : i32
    %c0_i32_0 = arith.constant 0 : i32
    %c0_i32_1 = arith.constant 0 : i32
    %c0_i32_2 = arith.constant 0 : i32
    return %arg0, %c0_i32, %c0_i32_0, %c0_i32_1 : i32, i32, i32, i32
  }
  func.func @transform_3(%arg0: i32, %arg1: i32) -> (i32, i32, i32) {
    %c0_i32 = arith.constant 0 : i32
    %c0_i32_0 = arith.constant 0 : i32
    return %arg0, %arg1, %c0_i32 : i32, i32, i32
  }
}

module attributes {stable_mosaic.version = 11 : i64} {
  func.func @_proj_mlp_kernel(%arg0: i32, %arg1: i32, %arg2: i32, %arg3: memref<1x8x32xf32, #tpu.memory_space<vmem>>, %arg4: memref<1x8x32xbf16, #tpu.memory_space<vmem>>, %arg5: memref<32x32xbf16, #tpu.memory_space<vmem>>, %arg6: memref<1x32xf32, #tpu.memory_space<vmem>>, %arg7: memref<1x32xf32, #tpu.memory_space<vmem>>, %arg8: memref<1x32xf32, #tpu.memory_space<vmem>>, %arg9: memref<32x128xbf16, #tpu.memory_space<vmem>>, %arg10: memref<1x128xf32, #tpu.memory_space<vmem>>, %arg11: memref<128x32xbf16, #tpu.memory_space<vmem>>, %arg12: memref<1x32xf32, #tpu.memory_space<vmem>>, %arg13: memref<1x8x32xf32, #tpu.memory_space<vmem>>, %arg14: memref<8x32xf32, #tpu.memory_space<vmem>>, %arg15: memref<8x32xbf16, #tpu.memory_space<vmem>>, %arg16: memref<8x32xf32, #tpu.memory_space<vmem>>) attributes {dimension_semantics = [#tpu.dimension_semantics<parallel>, #tpu.dimension_semantics<parallel>, #tpu.dimension_semantics<arbitrary>], iteration_bounds = array<i64: 2, 1, 1>, scalar_prefetch = 0 : i64, scratch_operands = 3 : i64, tpu.core_type = #tpu.core_type<tc>, window_params = [{transform_indices = @transform_0, window_bounds = array<i64: 1, 8, 32>}, {transform_indices = @transform_1, window_bounds = array<i64: 1, 8, 32>}, {pipeline_mode = #tpu.pipeline_mode<synchronous>, transform_indices = @transform_2, window_bounds = array<i64: 32, 32>}, {pipeline_mode = #tpu.pipeline_mode<synchronous>, transform_indices = @transform_3, window_bounds = array<i64: 1, 32>}, {pipeline_mode = #tpu.pipeline_mode<synchronous>, transform_indices = @transform_4, window_bounds = array<i64: 1, 32>}, {pipeline_mode = #tpu.pipeline_mode<synchronous>, transform_indices = @transform_5, window_bounds = array<i64: 1, 32>}, {transform_indices = @transform_6, window_bounds = array<i64: 32, 128>}, {transform_indices = @transform_7, window_bounds = array<i64: 1, 128>}, {transform_indices = @transform_8, window_bounds = array<i64: 128, 32>}, {pipeline_mode = #tpu.pipeline_mode<synchronous>, transform_indices = @transform_9, window_bounds = array<i64: 1, 32>}, {transform_indices = @transform_10, window_bounds = array<i64: 1, 8, 32>}]} {
    %c0_i32 = arith.constant 0 : i32
    %0 = arith.cmpi eq, %arg2, %c0_i32 : i32
    %1 = arith.extui %0 : i1 to i32
    %c0_i32_0 = arith.constant 0 : i32
    %2 = arith.cmpi ne, %1, %c0_i32_0 : i32
    scf.if %2 {
      %c0_17 = arith.constant 0 : index
      %c0_18 = arith.constant 0 : index
      %c0_19 = arith.constant 0 : index
      %26 = vector.load %arg3[%c0_17, %c0_18, %c0_19] : memref<1x8x32xf32, #tpu.memory_space<vmem>>, vector<1x8x32xf32>
      %27 = vector.shape_cast %26 : vector<1x8x32xf32> to vector<8x32xf32>
      %c0_20 = arith.constant 0 : index
      %c0_21 = arith.constant 0 : index
      %c0_22 = arith.constant 0 : index
      %28 = vector.load %arg4[%c0_20, %c0_21, %c0_22] : memref<1x8x32xbf16, #tpu.memory_space<vmem>>, vector<1x8x32xbf16>
      %29 = vector.shape_cast %28 : vector<1x8x32xbf16> to vector<8x32xbf16>
      %c0_23 = arith.constant 0 : index
      %c0_24 = arith.constant 0 : index
      %30 = vector.load %arg5[%c0_23, %c0_24] : memref<32x32xbf16, #tpu.memory_space<vmem>>, vector<32x32xbf16>
      %cst_25 = arith.constant dense<0.000000e+00> : vector<8x32xf32>
      %31 = tpu.matmul %29, %30, %cst_25 {dimension_numbers = #tpu.dot_dimension_numbers<[1], [0], [0], [1], [0, 0, 1, 1], [], []>} : vector<8x32xbf16>, vector<32x32xbf16>, vector<8x32xf32> -> vector<8x32xf32>
      %c0_26 = arith.constant 0 : index
      %c0_27 = arith.constant 0 : index
      %32 = vector.load %arg6[%c0_26, %c0_27] : memref<1x32xf32, #tpu.memory_space<vmem>>, vector<1x32xf32>
      %33 = vector.broadcast %32 : vector<1x32xf32> to vector<8x32xf32>
      %34 = arith.addf %31, %33 : vector<8x32xf32>
      %35 = arith.addf %27, %34 : vector<8x32xf32>
      %c0_28 = arith.constant 0 : index
      %c0_29 = arith.constant 0 : index
      %36 = vector.load %arg14[%c0_28, %c0_29] : memref<8x32xf32, #tpu.memory_space<vmem>>, vector<8x32xf32>
      tpu.vector_store %arg14[%c0_28, %c0_29], %35 {strides = array<i32>} : memref<8x32xf32, #tpu.memory_space<vmem>>, vector<8x32xf32>,
      %c0_30 = arith.constant 0 : index
      %c0_31 = arith.constant 0 : index
      %37 = vector.load %arg7[%c0_30, %c0_31] : memref<1x32xf32, #tpu.memory_space<vmem>>, vector<1x32xf32>
      %c0_32 = arith.constant 0 : index
      %c0_33 = arith.constant 0 : index
      %38 = vector.load %arg8[%c0_32, %c0_33] : memref<1x32xf32, #tpu.memory_space<vmem>>, vector<1x32xf32>
      %cst_34 = arith.constant dense<0.000000e+00> : vector<8xf32>
      %39 = vector.multi_reduction <add>, %35, %cst_34 [1] : vector<8x32xf32> to vector<8xf32>
      %40 = vector.shape_cast %39 : vector<8xf32> to vector<8x1xf32>
      %cst_35 = arith.constant 3.200000e+01 : f32
      %41 = vector.broadcast %cst_35 : f32 to vector<8x1xf32>
      %42 = arith.divf %40, %41 : vector<8x1xf32>
      %43 = vector.broadcast %42 : vector<8x1xf32> to vector<8x32xf32>
      %44 = arith.subf %35, %43 : vector<8x32xf32>
      %45 = arith.mulf %44, %44 : vector<8x32xf32>
      %cst_36 = arith.constant dense<0.000000e+00> : vector<8xf32>
      %46 = vector.multi_reduction <add>, %45, %cst_36 [1] : vector<8x32xf32> to vector<8xf32>
      %47 = vector.shape_cast %46 : vector<8xf32> to vector<8x1xf32>
      %cst_37 = arith.constant 3.200000e+01 : f32
      %48 = vector.broadcast %cst_37 : f32 to vector<8x1xf32>
      %49 = arith.divf %47, %48 : vector<8x1xf32>
      %cst_38 = arith.constant 9.99999974E-6 : f32
      %50 = vector.broadcast %cst_38 : f32 to vector<8x1xf32>
      %51 = arith.addf %49, %50 : vector<8x1xf32>
      %52 = math.rsqrt %51 : vector<8x1xf32>
      %53 = vector.broadcast %52 : vector<8x1xf32> to vector<8x32xf32>
      %54 = arith.mulf %44, %53 : vector<8x32xf32>
      %55 = vector.broadcast %37 : vector<1x32xf32> to vector<8x32xf32>
      %56 = arith.mulf %54, %55 : vector<8x32xf32>
      %57 = vector.broadcast %38 : vector<1x32xf32> to vector<8x32xf32>
      %58 = arith.addf %56, %57 : vector<8x32xf32>
      %59 = arith.truncf %58 : vector<8x32xf32> to vector<8x32xbf16>
      %c0_39 = arith.constant 0 : index
      %c0_40 = arith.constant 0 : index
      %60 = vector.load %arg15[%c0_39, %c0_40] : memref<8x32xbf16, #tpu.memory_space<vmem>>, vector<8x32xbf16>
      tpu.vector_store %arg15[%c0_39, %c0_40], %59 {strides = array<i32>} : memref<8x32xbf16, #tpu.memory_space<vmem>>, vector<8x32xbf16>,
      %cst_41 = arith.constant 0.000000e+00 : f32
      %61 = vector.broadcast %cst_41 : f32 to vector<8x32xf32>
      %c0_42 = arith.constant 0 : index
      %c0_43 = arith.constant 0 : index
      %62 = vector.load %arg16[%c0_42, %c0_43] : memref<8x32xf32, #tpu.memory_space<vmem>>, vector<8x32xf32>
      tpu.vector_store %arg16[%c0_42, %c0_43], %61 {strides = array<i32>} : memref<8x32xf32, #tpu.memory_space<vmem>>, vector<8x32xf32>,
    } else {
    }
    %c0 = arith.constant 0 : index
    %c0_1 = arith.constant 0 : index
    %3 = vector.load %arg15[%c0, %c0_1] : memref<8x32xbf16, #tpu.memory_space<vmem>>, vector<8x32xbf16>
    %c0_2 = arith.constant 0 : index
    %c0_3 = arith.constant 0 : index
    %4 = vector.load %arg9[%c0_2, %c0_3] : memref<32x128xbf16, #tpu.memory_space<vmem>>, vector<32x128xbf16>
    %cst = arith.constant dense<0.000000e+00> : vector<8x128xf32>
    %5 = tpu.matmul %3, %4, %cst {dimension_numbers = #tpu.dot_dimension_numbers<[1], [0], [0], [1], [0, 0, 1, 1], [], []>} : vector<8x32xbf16>, vector<32x128xbf16>, vector<8x128xf32> -> vector<8x128xf32>
    %c0_4 = arith.constant 0 : index
    %c0_5 = arith.constant 0 : index
    %6 = vector.load %arg10[%c0_4, %c0_5] : memref<1x128xf32, #tpu.memory_space<vmem>>, vector<1x128xf32>
    %7 = vector.broadcast %6 : vector<1x128xf32> to vector<8x128xf32>
    %8 = arith.addf %5, %7 : vector<8x128xf32>
    %cst_6 = arith.constant 1.702000e+00 : f32
    %9 = vector.broadcast %cst_6 : f32 to vector<8x128xf32>
    %10 = arith.mulf %9, %8 : vector<8x128xf32>
    %11 = arith.negf %10 : vector<8x128xf32>
    %12 = math.exp %11 : vector<8x128xf32>
    %cst_7 = arith.constant 1.000000e+00 : f32
    %13 = vector.broadcast %cst_7 : f32 to vector<8x128xf32>
    %14 = arith.addf %13, %12 : vector<8x128xf32>
    %15 = arith.divf %13, %14 : vector<8x128xf32>
    %16 = arith.mulf %8, %15 : vector<8x128xf32>
    %c0_8 = arith.constant 0 : index
    %c0_9 = arith.constant 0 : index
    %17 = vector.load %arg16[%c0_8, %c0_9] : memref<8x32xf32, #tpu.memory_space<vmem>>, vector<8x32xf32>
    %18 = arith.truncf %16 : vector<8x128xf32> to vector<8x128xbf16>
    %c0_10 = arith.constant 0 : index
    %c0_11 = arith.constant 0 : index
    %19 = vector.load %arg11[%c0_10, %c0_11] : memref<128x32xbf16, #tpu.memory_space<vmem>>, vector<128x32xbf16>
    %cst_12 = arith.constant dense<0.000000e+00> : vector<8x32xf32>
    %20 = tpu.matmul %18, %19, %cst_12 {dimension_numbers = #tpu.dot_dimension_numbers<[1], [0], [0], [1], [0, 0, 1, 1], [], []>} : vector<8x128xbf16>, vector<128x32xbf16>, vector<8x32xf32> -> vector<8x32xf32>
    %21 = arith.addf %17, %20 : vector<8x32xf32>
    %c0_13 = arith.constant 0 : index
    %c0_14 = arith.constant 0 : index
    %22 = vector.load %arg16[%c0_13, %c0_14] : memref<8x32xf32, #tpu.memory_space<vmem>>, vector<8x32xf32>
    tpu.vector_store %arg16[%c0_13, %c0_14], %21 {strides = array<i32>} : memref<8x32xf32, #tpu.memory_space<vmem>>, vector<8x32xf32>,
    %c0_i32_15 = arith.constant 0 : i32
    %23 = arith.cmpi eq, %arg2, %c0_i32_15 : i32
    %24 = arith.extui %23 : i1 to i32
    %c0_i32_16 = arith.constant 0 : i32
    %25 = arith.cmpi ne, %24, %c0_i32_16 : i32
    scf.if %25 {
      %c0_17 = arith.constant 0 : index
      %c0_18 = arith.constant 0 : index
      %26 = vector.load %arg14[%c0_17, %c0_18] : memref<8x32xf32, #tpu.memory_space<vmem>>, vector<8x32xf32>
      %c0_19 = arith.constant 0 : index
      %c0_20 = arith.constant 0 : index
      %27 = vector.load %arg16[%c0_19, %c0_20] : memref<8x32xf32, #tpu.memory_space<vmem>>, vector<8x32xf32>
      %28 = arith.addf %26, %27 : vector<8x32xf32>
      %c0_21 = arith.constant 0 : index
      %c0_22 = arith.constant 0 : index
      %29 = vector.load %arg12[%c0_21, %c0_22] : memref<1x32xf32, #tpu.memory_space<vmem>>, vector<1x32xf32>
      %30 = vector.broadcast %29 : vector<1x32xf32> to vector<8x32xf32>
      %31 = arith.addf %28, %30 : vector<8x32xf32>
      %c0_23 = arith.constant 0 : index
      %c0_24 = arith.constant 0 : index
      %c0_25 = arith.constant 0 : index
      %32 = vector.load %arg13[%c0_23, %c0_24, %c0_25] : memref<1x8x32xf32, #tpu.memory_space<vmem>>, vector<1x8x32xf32>
      %33 = vector.shape_cast %32 : vector<1x8x32xf32> to vector<8x32xf32>
      %34 = vector.shape_cast %31 : vector<8x32xf32> to vector<1x8x32xf32>
      tpu.vector_store %arg13[%c0_23, %c0_24, %c0_25], %34 {strides = array<i32>} : memref<1x8x32xf32, #tpu.memory_space<vmem>>, vector<1x8x32xf32>,
    } else {
    }
    return
  }
  func.func @transform_0(%arg0: i32, %arg1: i32, %arg2: i32) -> (i32, i32, i32) {
    %c0_i32 = arith.constant 0 : i32
    %c0_i32_0 = arith.constant 0 : i32
    return %arg0, %arg1, %c0_i32 : i32, i32, i32
  }
  func.func @transform_1(%arg0: i32, %arg1: i32, %arg2: i32) -> (i32, i32, i32) {
    %c0_i32 = arith.constant 0 : i32
    %c0_i32_0 = arith.constant 0 : i32
    return %arg0, %arg1, %c0_i32 : i32, i32, i32
  }
  func.func @transform_2(%arg0: i32, %arg1: i32, %arg2: i32) -> (i32, i32) {
    %c0_i32 = arith.constant 0 : i32
    %c0_i32_0 = arith.constant 0 : i32
    %c0_i32_1 = arith.constant 0 : i32
    return %c0_i32, %c0_i32_0 : i32, i32
  }
  func.func @transform_3(%arg0: i32, %arg1: i32, %arg2: i32) -> (i32, i32) {
    %c0_i32 = arith.constant 0 : i32
    %c0_i32_0 = arith.constant 0 : i32
    %c0_i32_1 = arith.constant 0 : i32
    return %c0_i32, %c0_i32_0 : i32, i32
  }
  func.func @transform_4(%arg0: i32, %arg1: i32, %arg2: i32) -> (i32, i32) {
    %c0_i32 = arith.constant 0 : i32
    %c0_i32_0 = arith.constant 0 : i32
    %c0_i32_1 = arith.constant 0 : i32
    return %c0_i32, %c0_i32_0 : i32, i32
  }
  func.func @transform_5(%arg0: i32, %arg1: i32, %arg2: i32) -> (i32, i32) {
    %c0_i32 = arith.constant 0 : i32
    %c0_i32_0 = arith.constant 0 : i32
    %c0_i32_1 = arith.constant 0 : i32
    return %c0_i32, %c0_i32_0 : i32, i32
  }
  func.func @transform_6(%arg0: i32, %arg1: i32, %arg2: i32) -> (i32, i32) {
    %c0_i32 = arith.constant 0 : i32
    %c0_i32_0 = arith.constant 0 : i32
    return %c0_i32, %arg2 : i32, i32
  }
  func.func @transform_7(%arg0: i32, %arg1: i32, %arg2: i32) -> (i32, i32) {
    %c0_i32 = arith.constant 0 : i32
    %c0_i32_0 = arith.constant 0 : i32
    return %c0_i32, %arg2 : i32, i32
  }
  func.func @transform_8(%arg0: i32, %arg1: i32, %arg2: i32) -> (i32, i32) {
    %c0_i32 = arith.constant 0 : i32
    %c0_i32_0 = arith.constant 0 : i32
    return %arg2, %c0_i32 : i32, i32
  }
  func.func @transform_9(%arg0: i32, %arg1: i32, %arg2: i32) -> (i32, i32) {
    %c0_i32 = arith.constant 0 : i32
    %c0_i32_0 = arith.constant 0 : i32
    %c0_i32_1 = arith.constant 0 : i32
    return %c0_i32, %c0_i32_0 : i32, i32
  }
  func.func @transform_10(%arg0: i32, %arg1: i32, %arg2: i32) -> (i32, i32, i32) {
    %c0_i32 = arith.constant 0 : i32
    %c0_i32_0 = arith.constant 0 : i32
    return %arg0, %arg1, %c0_i32 : i32, i32, i32
  }
}

</mosaic_0001>

<llo_original>
// kernel: _lambda_.6
$region0: #{_lambda_.6}
  #allocation0 [shape = 'u32[]', space=smem, size = 0x4, offset = 0x4, fixed_abs, tag = 'smem constant byte address 0x4 - core index']
  #allocation1 [shape = 'u32[144,128]{1,0:T(1,128)}', space=vmem, size = 0x12000, scoped, tag = 'internal scratch']
  %s0 = inlined_call_operand.vmem [shape: f32[2,8,32], index: 0, kind: input, shape index: {}]
  %s1 = inlined_call_operand.vmem [shape: f32[1,32], index: 1, kind: input, shape index: {}]
  %s2 = inlined_call_operand.vmem [shape: f32[1,32], index: 2, kind: input, shape index: {}]
  %s3 = inlined_call_operand.vmem [shape: bf16[32,32], index: 3, kind: input, shape index: {}]
  %s4 = inlined_call_operand.vmem [shape: f32[1,32], index: 4, kind: input, shape index: {}]
  %s5 = inlined_call_operand.vmem [shape: bf16[32,32], index: 5, kind: input, shape index: {}]
  %s6 = inlined_call_operand.vmem [shape: f32[1,32], index: 6, kind: input, shape index: {}]
  %s7 = inlined_call_operand.vmem [shape: bf16[32,32], index: 7, kind: input, shape index: {}]
  %s8 = inlined_call_operand.vmem [shape: f32[1,32], index: 8, kind: input, shape index: {}]
  %s9 = inlined_call_operand.vmem [shape: bf16[2,8,32], index: 9, kind: output, shape index: {0}]
  %s10 = inlined_call_operand.vmem [shape: bf16[2,8,32], index: 10, kind: output, shape index: {1}]
  %s11 = inlined_call_operand.vmem [shape: bf16[2,8,32], index: 11, kind: output, shape index: {2}]
  %12 = xla_tuple %s9, %s10, %s11
  %s13 = sld [smem:[#allocation0]]
  $region85: #{_lambda_.6} parent=0
    _
  %s15 = ssub.s32 1, %s13
  %s16 = scalar_select 0, %s15, %s13
  loop: start=0, step=1, limit=4
  $region2: #{_lambda_.6} parent=0 // loop_pre_header
    _
  $region3: #{_lambda_.6} parent=0 // loop_header
    %s18 = sphi 0, %s22
    %p19 = scmp.ge.s32.totalorder %s18, 4
    %s25 = sphi 0, %s37
    %s26 = sphi 0, %s33
    %s27 = sphi 0, %s25
    %s28 = sphi 0, %s26
    %s29 = sphi 0, %s27
    %s30 = sphi 0, %s28
    %s42 = sphi 0, %s44
    %s45 = sphi 0, %s42
    %s46 = sphi 0, %s45
    %s62 = sphi 0, %s46
    %s66 = sphi 0, %s66
    %s68 = sphi 0, %s66
    %s69 = sphi 0, %s68
    %s83 = sphi 0, %s69
    %s87 = sphi 0, %s87
    %s89 = sphi 0, %s87
    %s90 = sphi 0, %s89
    %s104 = sphi 0, %s90
    %s108 = sphi 0, %s108
    %s110 = sphi 0, %s108
    %s111 = sphi 0, %s110
    %s125 = sphi 0, %s111
    %s129 = sphi 0, %s129
    %s131 = sphi 0, %s129
    %s132 = sphi 0, %s131
    %s146 = sphi 0, %s132
    %s150 = sphi 0, %s150
    %s152 = sphi 0, %s150
    %s153 = sphi 0, %s152
    %s167 = sphi 0, %s153
    %s171 = sphi 0, %s171
    %s173 = sphi 0, %s171
    %s174 = sphi 0, %s173
    %s188 = sphi 0, %s174
    %s192 = sphi 0, %s192
    %s194 = sphi 0, %s192
    %s195 = sphi 0, %s194
    %s209 = sphi 0, %s195
    %s213 = sphi 0, %s213
    %s215 = sphi 0, %s213
    %s216 = sphi 0, %s215
    %s230 = sphi 0, %s216
    %s238 = sphi 0, %s240
    %s241 = sphi 0, %s238
    %s242 = sphi 0, %s241
    %s258 = sphi 0, %s242
    %s266 = sphi 0, %s268
    %s269 = sphi 0, %s266
    %s270 = sphi 0, %s269
    %s286 = sphi 0, %s270
    %s294 = sphi 0, %s296
    %s297 = sphi 0, %s294
    %s298 = sphi 0, %s297
    %s314 = sphi 0, %s298
  $region4: #{_lambda_.6} parent=0 // loop_header_branch
    %21 = sbr.rel (%p19) target = $region8
  $region5: #{_lambda_.6} parent=0 // loop_body
    %s23 = ssub.s32 %s18, 1
    %s24 = ssub.s32 %s18, 2
    %s31 = sadd.s32 1, %s26
    %p32 = scmp.ge.s32.totalorder %s31, 1
    %s33 = scalar_select %p32, 0, %s31
    %s34 = sadd.s32 1, %s25
    %s35 = scalar_select %p32, %s34, %s25
    %p36 = scmp.ge.s32.totalorder %s35, 2
    %s37 = scalar_select %p36, 0, %s35
    %s38 = ssub.s32 %s25, %s37
    %s39 = ssub.s32 %s26, %s33
    %s40 = sor.u32 %s38, %s39
    %p41 = scmp.eq.s32.totalorder %s40, 0
    %s43 = sadd.s32 %s42, 1
    %s44 = scalar_select %p41, %s42, %s43
    %p47 = pneg %p41
    %p48 = scmp.eq.s32.totalorder %s18, 1
    %p49 = por %p47, %p48
    %p50 = scmp.ne.s32.totalorder %s42, %s45
    %p51 = scmp.eq.s32.totalorder %s18, 0
    %p52 = por %p50, %p51
    %p53 = scmp.ne.s32.totalorder %s42, %s45
    %p54 = scmp.eq.s32.totalorder %s23, 1
    %p55 = por %p53, %p54
    %p56 = scmp.ne.s32.totalorder %s45, %s46
    %p57 = scmp.eq.s32.totalorder %s23, 0
    %p58 = por %p56, %p57
    %p59 = scmp.ne.s32.totalorder %s45, %s46
    %p60 = scmp.eq.s32.totalorder %s24, 1
    %p61 = por %p59, %p60
    %p63 = scmp.ne.s32.totalorder %s46, %s62
    %p64 = scmp.eq.s32.totalorder %s24, 0
    %p65 = por %p63, %p64
    %s67 = sadd.s32 %s66, 1
    %p70 = scmp.eq.s32.totalorder %s18, 1
    %p71 = scmp.ne.s32.totalorder %s66, %s68
    %p72 = scmp.eq.s32.totalorder %s18, 0
    %p73 = por %p71, %p72
    %p74 = scmp.ne.s32.totalorder %s66, %s68
    %p75 = scmp.eq.s32.totalorder %s23, 1
    %p76 = por %p74, %p75
    %p77 = scmp.ne.s32.totalorder %s68, %s69
    %p78 = scmp.eq.s32.totalorder %s23, 0
    %p79 = por %p77, %p78
    %p80 = scmp.ne.s32.totalorder %s68, %s69
    %p81 = scmp.eq.s32.totalorder %s24, 1
    %p82 = por %p80, %p81
    %p84 = scmp.ne.s32.totalorder %s69, %s83
    %p85 = scmp.eq.s32.totalorder %s24, 0
    %p86 = por %p84, %p85
    %s88 = sadd.s32 %s87, 1
    %p91 = scmp.eq.s32.totalorder %s18, 1
    %p92 = scmp.ne.s32.totalorder %s87, %s89
    %p93 = scmp.eq.s32.totalorder %s18, 0
    %p94 = por %p92, %p93
    %p95 = scmp.ne.s32.totalorder %s87, %s89
    %p96 = scmp.eq.s32.totalorder %s23, 1
    %p97 = por %p95, %p96
    %p98 = scmp.ne.s32.totalorder %s89, %s90
    %p99 = scmp.eq.s32.totalorder %s23, 0
    %p100 = por %p98, %p99
    %p101 = scmp.ne.s32.totalorder %s89, %s90
    %p102 = scmp.eq.s32.totalorder %s24, 1
    %p103 = por %p101, %p102
    %p105 = scmp.ne.s32.totalorder %s90, %s104
    %p106 = scmp.eq.s32.totalorder %s24, 0
    %p107 = por %p105, %p106
    %s109 = sadd.s32 %s108, 1
    %p112 = scmp.eq.s32.totalorder %s18, 1
    %p113 = scmp.ne.s32.totalorder %s108, %s110
    %p114 = scmp.eq.s32.totalorder %s18, 0
    %p115 = por %p113, %p114
    %p116 = scmp.ne.s32.totalorder %s108, %s110
    %p117 = scmp.eq.s32.totalorder %s23, 1
    %p118 = por %p116, %p117
    %p119 = scmp.ne.s32.totalorder %s110, %s111
    %p120 = scmp.eq.s32.totalorder %s23, 0
    %p121 = por %p119, %p120
    %p122 = scmp.ne.s32.totalorder %s110, %s111
    %p123 = scmp.eq.s32.totalorder %s24, 1
    %p124 = por %p122, %p123
    %p126 = scmp.ne.s32.totalorder %s111, %s125
    %p127 = scmp.eq.s32.totalorder %s24, 0
    %p128 = por %p126, %p127
    %s130 = sadd.s32 %s129, 1
    %p133 = scmp.eq.s32.totalorder %s18, 1
    %p134 = scmp.ne.s32.totalorder %s129, %s131
    %p135 = scmp.eq.s32.totalorder %s18, 0
    %p136 = por %p134, %p135
    %p137 = scmp.ne.s32.totalorder %s129, %s131
    %p138 = scmp.eq.s32.totalorder %s23, 1
    %p139 = por %p137, %p138
    %p140 = scmp.ne.s32.totalorder %s131, %s132
    %p141 = scmp.eq.s32.totalorder %s23, 0
    %p142 = por %p140, %p141
    %p143 = scmp.ne.s32.totalorder %s131, %s132
    %p144 = scmp.eq.s32.totalorder %s24, 1
    %p145 = por %p143, %p144
    %p147 = scmp.ne.s32.totalorder %s132, %s146
    %p148 = scmp.eq.s32.totalorder %s24, 0
    %p149 = por %p147, %p148
    %s151 = sadd.s32 %s150, 1
    %p154 = scmp.eq.s32.totalorder %s18, 1
    %p155 = scmp.ne.s32.totalorder %s150, %s152
    %p156 = scmp.eq.s32.totalorder %s18, 0
    %p157 = por %p155, %p156
    %p158 = scmp.ne.s32.totalorder %s150, %s152
    %p159 = scmp.eq.s32.totalorder %s23, 1
    %p160 = por %p158, %p159
    %p161 = scmp.ne.s32.totalorder %s152, %s153
    %p162 = scmp.eq.s32.totalorder %s23, 0
    %p163 = por %p161, %p162
    %p164 = scmp.ne.s32.totalorder %s152, %s153
    %p165 = scmp.eq.s32.totalorder %s24, 1
    %p166 = por %p164, %p165
    %p168 = scmp.ne.s32.totalorder %s153, %s167
    %p169 = scmp.eq.s32.totalorder %s24, 0
    %p170 = por %p168, %p169
    %s172 = sadd.s32 %s171, 1
    %p175 = scmp.eq.s32.totalorder %s18, 1
    %p176 = scmp.ne.s32.totalorder %s171, %s173
    %p177 = scmp.eq.s32.totalorder %s18, 0
    %p178 = por %p176, %p177
    %p179 = scmp.ne.s32.totalorder %s171, %s173
    %p180 = scmp.eq.s32.totalorder %s23, 1
    %p181 = por %p179, %p180
    %p182 = scmp.ne.s32.totalorder %s173, %s174
    %p183 = scmp.eq.s32.totalorder %s23, 0
    %p184 = por %p182, %p183
    %p185 = scmp.ne.s32.totalorder %s173, %s174
    %p186 = scmp.eq.s32.totalorder %s24, 1
    %p187 = por %p185, %p186
    %p189 = scmp.ne.s32.totalorder %s174, %s188
    %p190 = scmp.eq.s32.totalorder %s24, 0
    %p191 = por %p189, %p190
    %s193 = sadd.s32 %s192, 1
    %p196 = scmp.eq.s32.totalorder %s18, 1
    %p197 = scmp.ne.s32.totalorder %s192, %s194
    %p198 = scmp.eq.s32.totalorder %s18, 0
    %p199 = por %p197, %p198
    %p200 = scmp.ne.s32.totalorder %s192, %s194
    %p201 = scmp.eq.s32.totalorder %s23, 1
    %p202 = por %p200, %p201
    %p203 = scmp.ne.s32.totalorder %s194, %s195
    %p204 = scmp.eq.s32.totalorder %s23, 0
    %p205 = por %p203, %p204
    %p206 = scmp.ne.s32.totalorder %s194, %s195
    %p207 = scmp.eq.s32.totalorder %s24, 1
    %p208 = por %p206, %p207
    %p210 = scmp.ne.s32.totalorder %s195, %s209
    %p211 = scmp.eq.s32.totalorder %s24, 0
    %p212 = por %p210, %p211
    %s214 = sadd.s32 %s213, 1
    %p217 = scmp.eq.s32.totalorder %s18, 1
    %p218 = scmp.ne.s32.totalorder %s213, %s215
    %p219 = scmp.eq.s32.totalorder %s18, 0
    %p220 = por %p218, %p219
    %p221 = scmp.ne.s32.totalorder %s213, %s215
    %p222 = scmp.eq.s32.totalorder %s23, 1
    %p223 = por %p221, %p222
    %p224 = scmp.ne.s32.totalorder %s215, %s216
    %p225 = scmp.eq.s32.totalorder %s23, 0
    %p226 = por %p224, %p225
    %p227 = scmp.ne.s32.totalorder %s215, %s216
    %p228 = scmp.eq.s32.totalorder %s24, 1
    %p229 = por %p227, %p228
    %p231 = scmp.ne.s32.totalorder %s216, %s230
    %p232 = scmp.eq.s32.totalorder %s24, 0
    %p233 = por %p231, %p232
    %s234 = ssub.s32 %s25, %s37
    %s235 = ssub.s32 %s26, %s33
    %s236 = sor.u32 %s234, %s235
    %p237 = scmp.eq.s32.totalorder %s236, 0
    %s239 = sadd.s32 %s238, 1
    %s240 = scalar_select %p237, %s238, %s239
    %p243 = pneg %p237
    %p244 = scmp.eq.s32.totalorder %s18, 1
    %p245 = por %p243, %p244
    %p246 = scmp.ne.s32.totalorder %s238, %s241
    %p247 = scmp.eq.s32.totalorder %s18, 0
    %p248 = por %p246, %p247
    %p249 = scmp.ne.s32.totalorder %s238, %s241
    %p250 = scmp.eq.s32.totalorder %s23, 1
    %p251 = por %p249, %p250
    %p252 = scmp.ne.s32.totalorder %s241, %s242
    %p253 = scmp.eq.s32.totalorder %s23, 0
    %p254 = por %p252, %p253
    %p255 = scmp.ne.s32.totalorder %s241, %s242
    %p256 = scmp.eq.s32.totalorder %s24, 1
    %p257 = por %p255, %p256
    %p259 = scmp.ne.s32.totalorder %s242, %s258
    %p260 = scmp.eq.s32.totalorder %s24, 0
    %p261 = por %p259, %p260
    %s262 = ssub.s32 %s25, %s37
    %s263 = ssub.s32 %s26, %s33
    %s264 = sor.u32 %s262, %s263
    %p265 = scmp.eq.s32.totalorder %s264, 0
    %s267 = sadd.s32 %s266, 1
    %s268 = scalar_select %p265, %s266, %s267
    %p271 = pneg %p265
    %p272 = scmp.eq.s32.totalorder %s18, 1
    %p273 = por %p271, %p272
    %p274 = scmp.ne.s32.totalorder %s266, %s269
    %p275 = scmp.eq.s32.totalorder %s18, 0
    %p276 = por %p274, %p275
    %p277 = scmp.ne.s32.totalorder %s266, %s269
    %p278 = scmp.eq.s32.totalorder %s23, 1
    %p279 = por %p277, %p278
    %p280 = scmp.ne.s32.totalorder %s269, %s270
    %p281 = scmp.eq.s32.totalorder %s23, 0
    %p282 = por %p280, %p281
    %p283 = scmp.ne.s32.totalorder %s269, %s270
    %p284 = scmp.eq.s32.totalorder %s24, 1
    %p285 = por %p283, %p284
    %p287 = scmp.ne.s32.totalorder %s270, %s286
    %p288 = scmp.eq.s32.totalorder %s24, 0
    %p289 = por %p287, %p288
    %s290 = ssub.s32 %s25, %s37
    %s291 = ssub.s32 %s26, %s33
    %s292 = sor.u32 %s290, %s291
    %p293 = scmp.eq.s32.totalorder %s292, 0
    %s295 = sadd.s32 %s294, 1
    %s296 = scalar_select %p293, %s294, %s295
    %p299 = pneg %p293
    %p300 = scmp.eq.s32.totalorder %s18, 1
    %p301 = por %p299, %p300
    %p302 = scmp.ne.s32.totalorder %s294, %s297
    %p303 = scmp.eq.s32.totalorder %s18, 0
    %p304 = por %p302, %p303
    %p305 = scmp.ne.s32.totalorder %s294, %s297
    %p306 = scmp.eq.s32.totalorder %s23, 1
    %p307 = por %p305, %p306
    %p308 = scmp.ne.s32.totalorder %s297, %s298
    %p309 = scmp.eq.s32.totalorder %s23, 0
    %p310 = por %p308, %p309
    %p311 = scmp.ne.s32.totalorder %s297, %s298
    %p312 = scmp.eq.s32.totalorder %s24, 1
    %p313 = por %p311, %p312
    %p315 = scmp.ne.s32.totalorder %s298, %s314
    %p316 = scmp.eq.s32.totalorder %s24, 0
    %p317 = por %p315, %p316
    %p318 = scmp.le.s32.totalorder 1, %s18
    %p319 = scmp.lt.s32.totalorder %s18, 3
    %p320 = pnand %p318, %p319
    %p321 = pneg %p320
    // Predicated region
    $region9: #{_lambda_.6} parent=5 // pred_check
      _
    $region10: #{_lambda_.6} parent=5 // pred_check_branch
      %323 = sbr.rel (%p320) target = $region12
    $region11: #{_lambda_.6} parent=5 // pred_region
      %s324 = ssub.s32 %s18, 1
      // Predicated region
      $region13: #{_lambda_.6} parent=11 // pred_check
        %p325 = pneg %p79
      $region14: #{_lambda_.6} parent=11 // pred_check_branch
        %327 = sbr.rel (%p325) target = $region16
      $region15: #{_lambda_.6} parent=11 // pred_region
        _
      $region16: #{_lambda_.6} parent=11 // pred_fallthru
        _
      // Predicated region
      $region17: #{_lambda_.6} parent=11 // pred_check
        %p328 = pneg %p100
      $region18: #{_lambda_.6} parent=11 // pred_check_branch
        %330 = sbr.rel (%p328) target = $region20
      $region19: #{_lambda_.6} parent=11 // pred_region
        _
      $region20: #{_lambda_.6} parent=11 // pred_fallthru
        _
      // Predicated region
      $region21: #{_lambda_.6} parent=11 // pred_check
        %p331 = pneg %p121
      $region22: #{_lambda_.6} parent=11 // pred_check_branch
        %333 = sbr.rel (%p331) target = $region24
      $region23: #{_lambda_.6} parent=11 // pred_region
        _
      $region24: #{_lambda_.6} parent=11 // pred_fallthru
        _
      // Predicated region
      $region25: #{_lambda_.6} parent=11 // pred_check
        %p334 = pneg %p142
      $region26: #{_lambda_.6} parent=11 // pred_check_branch
        %336 = sbr.rel (%p334) target = $region28
      $region27: #{_lambda_.6} parent=11 // pred_region
        _
      $region28: #{_lambda_.6} parent=11 // pred_fallthru
        _
      // Predicated region
      $region29: #{_lambda_.6} parent=11 // pred_check
        %p337 = pneg %p163
      $region30: #{_lambda_.6} parent=11 // pred_check_branch
        %339 = sbr.rel (%p337) target = $region32
      $region31: #{_lambda_.6} parent=11 // pred_region
        _
      $region32: #{_lambda_.6} parent=11 // pred_fallthru
        _
      // Predicated region
      $region33: #{_lambda_.6} parent=11 // pred_check
        %p340 = pneg %p184
      $region34: #{_lambda_.6} parent=11 // pred_check_branch
        %342 = sbr.rel (%p340) target = $region36
      $region35: #{_lambda_.6} parent=11 // pred_region
        _
      $region36: #{_lambda_.6} parent=11 // pred_fallthru
        _
      // Predicated region
      $region37: #{_lambda_.6} parent=11 // pred_check
        %p343 = pneg %p205
      $region38: #{_lambda_.6} parent=11 // pred_check_branch
        %345 = sbr.rel (%p343) target = $region40
      $region39: #{_lambda_.6} parent=11 // pred_region
        _
      $region40: #{_lambda_.6} parent=11 // pred_fallthru
        _
      // Predicated region
      $region41: #{_lambda_.6} parent=11 // pred_check
        %p346 = pneg %p226
      $region42: #{_lambda_.6} parent=11 // pred_check_branch
        %348 = sbr.rel (%p346) target = $region44
      $region43: #{_lambda_.6} parent=11 // pred_region
        _
      $region44: #{_lambda_.6} parent=11 // pred_fallthru
        _
    $region12: #{_lambda_.6} parent=5 // pred_fallthru
      _
    %p349 = scmp.lt.s32.totalorder %s18, 2
    // Predicated region
    $region45: #{_lambda_.6} parent=5 // pred_check
      %p350 = pneg %p349
    $region46: #{_lambda_.6} parent=5 // pred_check_branch
      %352 = sbr.rel (%p350) target = $region48
    $region47: #{_lambda_.6} parent=5 // pred_region
      // Predicated region
      $region49: #{_lambda_.6} parent=47 // pred_check
        %p353 = pneg %p52
      $region50: #{_lambda_.6} parent=47 // pred_check_branch
        %355 = sbr.rel (%p353) target = $region52
      $region51: #{_lambda_.6} parent=47 // pred_region
        %p356 = scmp.lt.s32.totalorder %s25, 1
        %s357 = scalar_select %p356, %s25, 1
        %p358 = scmp.lt.s32.totalorder %s26, 0
        %s359 = scalar_select %p358, %s26, 0
        %s360 = sadd.s32 %s359, %s357
        %s361 = smul.addr %s360, 8
        %s362 = scalar_lea.vmem %s0, %s361
      $region52: #{_lambda_.6} parent=47 // pred_fallthru
        _
    $region48: #{_lambda_.6} parent=5 // pred_fallthru
      _
    %p363 = scmp.le.s32.totalorder 1, %s18
    %p364 = scmp.lt.s32.totalorder %s18, 3
    %p365 = pnand %p363, %p364
    %p366 = pneg %p365
    // Predicated region
    $region53: #{_lambda_.6} parent=5 // pred_check
      _
    $region54: #{_lambda_.6} parent=5 // pred_check_branch
      %368 = sbr.rel (%p365) target = $region56
    $region55: #{_lambda_.6} parent=5 // pred_region
      %s369 = ssub.s32 %s18, 1
      %p370 = scmp.lt.s32.totalorder %s27, 1
      %s371 = scalar_select %p370, %s27, 1
      %p372 = scmp.lt.s32.totalorder %s28, 0
      %s373 = scalar_select %p372, %s28, 0
      %s374 = sadd.s32 %s373, %s371
      %s375 = smul.addr %s374, 8
      %s376 = scalar_lea.vmem %s0, %s375
      %p377 = pneg %p58
      %p378 = pneg %p55
      %p379 = pneg %p79
      %p380 = pneg %p76
      %p381 = pneg %p100
      %p382 = pneg %p97
      %p383 = pneg %p121
      %p384 = pneg %p118
      %p385 = pneg %p142
      %p386 = pneg %p139
      %p387 = pneg %p163
      %p388 = pneg %p160
      %p389 = pneg %p184
      %p390 = pneg %p181
      %p391 = pneg %p205
      %p392 = pneg %p202
      %p393 = pneg %p226
      %p394 = pneg %p223
      %p395 = pneg %p254
      %p396 = pneg %p251
      %p397 = scmp.lt.s32.totalorder %s27, 1
      %s398 = scalar_select %p397, %s27, 1
      %p399 = scmp.lt.s32.totalorder %s28, 0
      %s400 = scalar_select %p399, %s28, 0
      %s401 = sadd.s32 %s400, %s398
      %s402 = smul.addr %s401, 4
      %s403 = scalar_lea.vmem %s9, %s402
      %p404 = pneg %p282
      %p405 = pneg %p279
      %p406 = scmp.lt.s32.totalorder %s27, 1
      %s407 = scalar_select %p406, %s27, 1
      %p408 = scmp.lt.s32.totalorder %s28, 0
      %s409 = scalar_select %p408, %s28, 0
      %s410 = sadd.s32 %s409, %s407
      %s411 = smul.addr %s410, 4
      %s412 = scalar_lea.vmem %s10, %s411
      %p413 = pneg %p310
      %p414 = pneg %p307
      %p415 = scmp.lt.s32.totalorder %s27, 1
      %s416 = scalar_select %p415, %s27, 1
      %p417 = scmp.lt.s32.totalorder %s28, 0
      %s418 = scalar_select %p417, %s28, 0
      %s419 = sadd.s32 %s418, %s416
      %s420 = smul.addr %s419, 4
      %s421 = scalar_lea.vmem %s11, %s420
      %p422 = scmp.lt.s32.totalorder %s27, 1
      %s423 = scalar_select %p422, %s27, 1
      %p424 = scmp.lt.s32.totalorder %s28, 0
      %s425 = scalar_select %p424, %s28, 0
      %s426 = sadd.s32 %s425, %s423
      %s427 = smul.addr %s426, 8
      %s428 = scalar_lea.vmem %s0, %s427
      %p429 = scmp.lt.s32.totalorder %s27, 1
      %s430 = scalar_select %p429, %s27, 1
      %p431 = scmp.lt.s32.totalorder %s28, 0
      %s432 = scalar_select %p431, %s28, 0
      %s433 = sadd.s32 %s432, %s430
      %s434 = smul.addr %s433, 4
      %s435 = scalar_lea.vmem %s9, %s434
      %p436 = scmp.lt.s32.totalorder %s27, 1
      %s437 = scalar_select %p436, %s27, 1
      %p438 = scmp.lt.s32.totalorder %s28, 0
      %s439 = scalar_select %p438, %s28, 0
      %s440 = sadd.s32 %s439, %s437
      %s441 = smul.addr %s440, 4
      %s442 = scalar_lea.vmem %s10, %s441
      %p443 = scmp.lt.s32.totalorder %s27, 1
      %s444 = scalar_select %p443, %s27, 1
      %p445 = scmp.lt.s32.totalorder %s28, 0
      %s446 = scalar_select %p445, %s28, 0
      %s447 = sadd.s32 %s446, %s444
      %s448 = smul.addr %s447, 4
      %s449 = scalar_lea.vmem %s11, %s448
      %v451 = vld [vmem:[%s428] sm:$0xff]
      %v452 = vld [vmem:[%s1] sm:$0x1]
      %v453 = vld [vmem:[%s2] sm:$0x1]
      %vm454 = vcmask 261120
      %v455 = vsel %vm454, %v451, 0.0
      %456 = vadd.xlane.f32.xlu0 %v455
      %v457 = vpop.xlane.xlu0 %456
      %v458 = vrcp.pop 32.0
      %v459 = vmul.f32 %v457, %v458
      %v460 = vsub.f32 %v451, %v459
      %v461 = vmul.f32 %v460, %v460
      %v462 = vsel %vm454, %v461, 0.0
      %463 = vadd.xlane.f32.xlu0 %v462
      %v464 = vpop.xlane.xlu0 %463
      %v465 = vmul.f32 %v464, %v458
      %v466 = vadd.f32 %v465, 1e-05
      %v467 = vrsqrt.pop %v466
      %v468 = vmul.f32 %v460, %v467
      %v470 = vlaneseq
      %v471 = vshrl.u32 %v470, 7
      %v472 = vsub.s32 0, %v471
      %v473 = vrot.slane %v452, %v472
      %v475 = vmul.f32 %v468, %v473
      %v477 = vlaneseq
      %v478 = vshrl.u32 %v477, 7
      %v479 = vsub.s32 0, %v478
      %v480 = vrot.slane %v453, %v479
      %v482 = vadd.f32 %v475, %v480
      %v483 = vpack.c.bf16 %v482, %v482
      %v484 = vld [vmem:[%s3] sm:$0xf]
      %v485 = vld [vmem:[%s3 + $0x4] sm:$0xf]
      %v486 = vld [vmem:[%s3 + $0x8] sm:$0xf]
      %v487 = vld [vmem:[%s3 + $0xc] sm:$0xf]
      %v488 = vld [vmem:[%s4] sm:$0x1]
      %v490 = vlaneseq
      %v491 = vshrl.u32 %v490, 7
      %v492 = vsub.s32 0, %v491
      %v493 = vrot.slane %v488, %v492
      %v499 = vunpack.c.l.b16 %v484
      %v500 = vunpack.c.l.b16 %v485
      %v501 = vunpack.c.l.b16 %v486
      %v502 = vunpack.c.l.b16 %v487
      %v503 = vpack.c.b16 %v500, %v499
      %v504 = vpack.c.b16 %v502, %v501
      %v508 = vsel %vm454, %v483, 0
      %510 = vmatprep.subr.bf16.mxu0 0
      %511 = vmatpush1.bf16.msra.mxu0 %v503
      %512 = vmatprep.subr.bf16.mxu0 0
      %513 = vmatpush1.bf16.msra.mxu0 %v504
      %514 = vmatprep.subr.bf16.mxu0 0
      %515 = vmatpush1.bf16.msra.mxu0 0
      %516 = vmatprep.subr.bf16.mxu0 0
      %517 = vmatpush1.bf16.msra.mxu0 0
      %518 = vmatprep.subr.bf16.mxu0 0
      %519 = vmatpush1.bf16.msra.mxu0 0
      %520 = vmatprep.subr.bf16.mxu0 0
      %521 = vmatpush1.bf16.msra.mxu0 0
      %522 = vmatprep.subr.bf16.mxu0 0
      %523 = vmatpush1.bf16.msra.mxu0 0
      %524 = vmatprep.subr.bf16.mxu0 0
      %525 = vmatpush1.bf16.msra.mxu0 0
      %526 = vmatprep.subr.bf16.mxu0 0
      %527 = vmatpush1.bf16.msra.mxu0 0
      %528 = vmatprep.subr.bf16.mxu0 0
      %529 = vmatpush1.bf16.msra.mxu0 0
      %530 = vmatprep.subr.bf16.mxu0 0
      %531 = vmatpush1.bf16.msra.mxu0 0
      %532 = vmatprep.subr.bf16.mxu0 0
      %533 = vmatpush1.bf16.msra.mxu0 0
      %534 = vmatprep.subr.bf16.mxu0 0
      %535 = vmatpush1.bf16.msra.mxu0 0
      %536 = vmatprep.subr.bf16.mxu0 0
      %537 = vmatpush1.bf16.msra.mxu0 0
      %538 = vmatprep.subr.bf16.mxu0 0
      %539 = vmatpush1.bf16.msra.mxu0 0
      %540 = vmatprep.subr.bf16.mxu0 0
      %541 = vmatpush1.bf16.msra.mxu0 0
      %542 = vmatprep.mubr.bf16.mxu0 0
      %543 = vmatmul.mubr.bf16.gmra.mrb[0].mxu0 %v508
      %v544 = vpop.f32.mrb[0].mxu0
      %v545 = vadd.f32 %v493, %v544
      %v546 = vpop.f32.mrb[0].mxu0
      %v547 = vpop.f32.mrb[0].mxu0
      %v548 = vpop.f32.mrb[0].mxu0
      %549 = vdwg.mxu0
      %v550 = vpack.c.bf16 %v545, %v545
      %vm551 = vcmask 257024
      %552 = vst.msk [vmem:[%s435] sm:$0xf] %vm551, %v550
      %v553 = vld [vmem:[%s5] sm:$0xf]
      %v554 = vld [vmem:[%s5 + $0x4] sm:$0xf]
      %v555 = vld [vmem:[%s5 + $0x8] sm:$0xf]
      %v556 = vld [vmem:[%s5 + $0xc] sm:$0xf]
      %v557 = vld [vmem:[%s6] sm:$0x1]
      %v559 = vlaneseq
      %v560 = vshrl.u32 %v559, 7
      %v561 = vsub.s32 0, %v560
      %v562 = vrot.slane %v557, %v561
      %v568 = vunpack.c.l.b16 %v553
      %v569 = vunpack.c.l.b16 %v554
      %v570 = vunpack.c.l.b16 %v555
      %v571 = vunpack.c.l.b16 %v556
      %v572 = vpack.c.b16 %v569, %v568
      %v573 = vpack.c.b16 %v571, %v570
      %576 = vmatprep.subr.bf16.mxu0 0
      %577 = vmatpush1.bf16.msra.mxu0 %v572
      %578 = vmatprep.subr.bf16.mxu0 0
      %579 = vmatpush1.bf16.msra.mxu0 %v573
      %580 = vmatprep.subr.bf16.mxu0 0
      %581 = vmatpush1.bf16.msra.mxu0 0
      %582 = vmatprep.subr.bf16.mxu0 0
      %583 = vmatpush1.bf16.msra.mxu0 0
      %584 = vmatprep.subr.bf16.mxu0 0
      %585 = vmatpush1.bf16.msra.mxu0 0
      %586 = vmatprep.subr.bf16.mxu0 0
      %587 = vmatpush1.bf16.msra.mxu0 0
      %588 = vmatprep.subr.bf16.mxu0 0
      %589 = vmatpush1.bf16.msra.mxu0 0
      %590 = vmatprep.subr.bf16.mxu0 0
      %591 = vmatpush1.bf16.msra.mxu0 0
      %592 = vmatprep.subr.bf16.mxu0 0
      %593 = vmatpush1.bf16.msra.mxu0 0
      %594 = vmatprep.subr.bf16.mxu0 0
      %595 = vmatpush1.bf16.msra.mxu0 0
      %596 = vmatprep.subr.bf16.mxu0 0
      %597 = vmatpush1.bf16.msra.mxu0 0
      %598 = vmatprep.subr.bf16.mxu0 0
      %599 = vmatpush1.bf16.msra.mxu0 0
      %600 = vmatprep.subr.bf16.mxu0 0
      %601 = vmatpush1.bf16.msra.mxu0 0
      %602 = vmatprep.subr.bf16.mxu0 0
      %603 = vmatpush1.bf16.msra.mxu0 0
      %604 = vmatprep.subr.bf16.mxu0 0
      %605 = vmatpush1.bf16.msra.mxu0 0
      %606 = vmatprep.subr.bf16.mxu0 0
      %607 = vmatpush1.bf16.msra.mxu0 0
      %608 = vmatprep.mubr.bf16.mxu0 0
      %609 = vmatmul.mubr.bf16.gmra.mrb[0].mxu0 %v508
      %v610 = vpop.f32.mrb[0].mxu0
      %v611 = vadd.f32 %v562, %v610
      %v612 = vpop.f32.mrb[0].mxu0
      %v613 = vpop.f32.mrb[0].mxu0
      %v614 = vpop.f32.mrb[0].mxu0
      %615 = vdwg.mxu0
      %v616 = vpack.c.bf16 %v611, %v611
      %617 = vst.msk [vmem:[%s442] sm:$0xf] %vm551, %v616
      %v618 = vld [vmem:[%s7] sm:$0xf]
      %v619 = vld [vmem:[%s7 + $0x4] sm:$0xf]
      %v620 = vld [vmem:[%s7 + $0x8] sm:$0xf]
      %v621 = vld [vmem:[%s7 + $0xc] sm:$0xf]
      %v622 = vld [vmem:[%s8] sm:$0x1]
      %v624 = vlaneseq
      %v625 = vshrl.u32 %v624, 7
      %v626 = vsub.s32 0, %v625
      %v627 = vrot.slane %v622, %v626
      %v633 = vunpack.c.l.b16 %v618
      %v634 = vunpack.c.l.b16 %v619
      %v635 = vunpack.c.l.b16 %v620
      %v636 = vunpack.c.l.b16 %v621
      %v637 = vpack.c.b16 %v634, %v633
      %v638 = vpack.c.b16 %v636, %v635
      %641 = vmatprep.subr.bf16.mxu0 0
      %642 = vmatpush1.bf16.msra.mxu0 %v637
      %643 = vmatprep.subr.bf16.mxu0 0
      %644 = vmatpush1.bf16.msra.mxu0 %v638
      %645 = vmatprep.subr.bf16.mxu0 0
      %646 = vmatpush1.bf16.msra.mxu0 0
      %647 = vmatprep.subr.bf16.mxu0 0
      %648 = vmatpush1.bf16.msra.mxu0 0
      %649 = vmatprep.subr.bf16.mxu0 0
      %650 = vmatpush1.bf16.msra.mxu0 0
      %651 = vmatprep.subr.bf16.mxu0 0
      %652 = vmatpush1.bf16.msra.mxu0 0
      %653 = vmatprep.subr.bf16.mxu0 0
      %654 = vmatpush1.bf16.msra.mxu0 0
      %655 = vmatprep.subr.bf16.mxu0 0
      %656 = vmatpush1.bf16.msra.mxu0 0
      %657 = vmatprep.subr.bf16.mxu0 0
      %658 = vmatpush1.bf16.msra.mxu0 0
      %659 = vmatprep.subr.bf16.mxu0 0
      %660 = vmatpush1.bf16.msra.mxu0 0
      %661 = vmatprep.subr.bf16.mxu0 0
      %662 = vmatpush1.bf16.msra.mxu0 0
      %663 = vmatprep.subr.bf16.mxu0 0
      %664 = vmatpush1.bf16.msra.mxu0 0
      %665 = vmatprep.subr.bf16.mxu0 0
      %666 = vmatpush1.bf16.msra.mxu0 0
      %667 = vmatprep.subr.bf16.mxu0 0
      %668 = vmatpush1.bf16.msra.mxu0 0
      %669 = vmatprep.subr.bf16.mxu0 0
      %670 = vmatpush1.bf16.msra.mxu0 0
      %671 = vmatprep.subr.bf16.mxu0 0
      %672 = vmatpush1.bf16.msra.mxu0 0
      %673 = vmatprep.mubr.bf16.mxu0 0
      %674 = vmatmul.mubr.bf16.gmra.mrb[0].mxu0 %v508
      %v675 = vpop.f32.mrb[0].mxu0
      %v676 = vadd.f32 %v627, %v675
      %v677 = vpop.f32.mrb[0].mxu0
      %v678 = vpop.f32.mrb[0].mxu0
      %v679 = vpop.f32.mrb[0].mxu0
      %680 = vdwg.mxu0
      %v681 = vpack.c.bf16 %v676, %v676
      %682 = vst.msk [vmem:[%s449] sm:$0xf] %vm551, %v681
      %p683 = scmp.lt.s32.totalorder %s27, 1
      %s684 = scalar_select %p683, %s27, 1
      %p685 = scmp.lt.s32.totalorder %s28, 0
      %s686 = scalar_select %p685, %s28, 0
      %s687 = sadd.s32 %s686, %s684
      %s688 = smul.addr %s687, 4
      %s689 = scalar_lea.vmem %s9, %s688
      %p690 = scmp.lt.s32.totalorder %s27, 1
      %s691 = scalar_select %p690, %s27, 1
      %p692 = scmp.lt.s32.totalorder %s28, 0
      %s693 = scalar_select %p692, %s28, 0
      %s694 = sadd.s32 %s693, %s691
      %s695 = smul.addr %s694, 4
      %s696 = scalar_lea.vmem %s10, %s695
      %p697 = scmp.lt.s32.totalorder %s27, 1
      %s698 = scalar_select %p697, %s27, 1
      %p699 = scmp.lt.s32.totalorder %s28, 0
      %s700 = scalar_select %p699, %s28, 0
      %s701 = sadd.s32 %s700, %s698
      %s702 = smul.addr %s701, 4
      %s703 = scalar_lea.vmem %s11, %s702
      // Predicated region
      $region57: #{_lambda_.6} parent=55 // pred_check
        %p704 = pneg %p251
      $region58: #{_lambda_.6} parent=55 // pred_check_branch
        %706 = sbr.rel (%p704) target = $region60
      $region59: #{_lambda_.6} parent=55 // pred_region
        _
      $region60: #{_lambda_.6} parent=55 // pred_fallthru
        _
      // Predicated region
      $region61: #{_lambda_.6} parent=55 // pred_check
        %p707 = pneg %p279
      $region62: #{_lambda_.6} parent=55 // pred_check_branch
        %709 = sbr.rel (%p707) target = $region64
      $region63: #{_lambda_.6} parent=55 // pred_region
        _
      $region64: #{_lambda_.6} parent=55 // pred_fallthru
        _
      // Predicated region
      $region65: #{_lambda_.6} parent=55 // pred_check
        %p710 = pneg %p307
      $region66: #{_lambda_.6} parent=55 // pred_check_branch
        %712 = sbr.rel (%p710) target = $region68
      $region67: #{_lambda_.6} parent=55 // pred_region
        _
      $region68: #{_lambda_.6} parent=55 // pred_fallthru
        _
    $region56: #{_lambda_.6} parent=5 // pred_fallthru
      _
    %p713 = scmp.le.s32.totalorder 2, %s18
    // Predicated region
    $region69: #{_lambda_.6} parent=5 // pred_check
      %p714 = pneg %p713
    $region70: #{_lambda_.6} parent=5 // pred_check_branch
      %716 = sbr.rel (%p714) target = $region72
    $region71: #{_lambda_.6} parent=5 // pred_region
      %s717 = ssub.s32 %s18, 2
      // Predicated region
      $region73: #{_lambda_.6} parent=71 // pred_check
        %p718 = pneg %p257
      $region74: #{_lambda_.6} parent=71 // pred_check_branch
        %720 = sbr.rel (%p718) target = $region76
      $region75: #{_lambda_.6} parent=71 // pred_region
        %p721 = scmp.lt.s32.totalorder %s29, 1
        %s722 = scalar_select %p721, %s29, 1
        %p723 = scmp.lt.s32.totalorder %s30, 0
        %s724 = scalar_select %p723, %s30, 0
        %s725 = sadd.s32 %s724, %s722
        %s726 = smul.addr %s725, 4
        %s727 = scalar_lea.vmem %s9, %s726
      $region76: #{_lambda_.6} parent=71 // pred_fallthru
        _
      // Predicated region
      $region77: #{_lambda_.6} parent=71 // pred_check
        %p728 = pneg %p285
      $region78: #{_lambda_.6} parent=71 // pred_check_branch
        %730 = sbr.rel (%p728) target = $region80
      $region79: #{_lambda_.6} parent=71 // pred_region
        %p731 = scmp.lt.s32.totalorder %s29, 1
        %s732 = scalar_select %p731, %s29, 1
        %p733 = scmp.lt.s32.totalorder %s30, 0
        %s734 = scalar_select %p733, %s30, 0
        %s735 = sadd.s32 %s734, %s732
        %s736 = smul.addr %s735, 4
        %s737 = scalar_lea.vmem %s10, %s736
      $region80: #{_lambda_.6} parent=71 // pred_fallthru
        _
      // Predicated region
      $region81: #{_lambda_.6} parent=71 // pred_check
        %p738 = pneg %p313
      $region82: #{_lambda_.6} parent=71 // pred_check_branch
        %740 = sbr.rel (%p738) target = $region84
      $region83: #{_lambda_.6} parent=71 // pred_region
        %p741 = scmp.lt.s32.totalorder %s29, 1
        %s742 = scalar_select %p741, %s29, 1
        %p743 = scmp.lt.s32.totalorder %s30, 0
        %s744 = scalar_select %p743, %s30, 0
        %s745 = sadd.s32 %s744, %s742
        %s746 = smul.addr %s745, 4
        %s747 = scalar_lea.vmem %s11, %s746
      $region84: #{_lambda_.6} parent=71 // pred_fallthru
        _
    $region72: #{_lambda_.6} parent=5 // pred_fallthru
      _
  $region6: #{_lambda_.6} parent=0 // loop_footer
    %s22 = sadd.s32 1, %s18
  $region7: #{_lambda_.6} parent=0 // loop_footer_branch
    %17 = sbr.rel target = $region3
  $region8: #{_lambda_.6} parent=0 // loop_exit
    _

// kernel: _lambda_.8
$region0: #{_lambda_.8}
  #allocation0 [shape = 'u32[]', space=smem, size = 0x4, offset = 0x4, fixed_abs, tag = 'smem constant byte address 0x4 - core index']
  #allocation1 [shape = 'u32[144,128]{1,0:T(1,128)}', space=vmem, size = 0x12000, scoped, tag = 'internal scratch']
  #allocation2 [shape = 'f32[8,32]{1,0:T(8,128)}', space=vmem, size = 0x1000, scoped, tag = 'scratch operand']
  #allocation3 [shape = 'bf16[8,32]{1,0:T(8,128)(2,1)}', space=vmem, size = 0x800, scoped, tag = 'scratch operand']
  #allocation4 [shape = 'f32[8,32]{1,0:T(8,128)}', space=vmem, size = 0x1000, scoped, tag = 'scratch operand']
  %s0 = inlined_call_operand.vmem [shape: f32[2,8,32], index: 0, kind: input, shape index: {}]
  %s1 = inlined_call_operand.vmem [shape: bf16[2,8,32], index: 1, kind: input, shape index: {}]
  %s2 = inlined_call_operand.vmem [shape: bf16[32,32], index: 2, kind: input, shape index: {}]
  %s3 = inlined_call_operand.vmem [shape: f32[1,32], index: 3, kind: input, shape index: {}]
  %s4 = inlined_call_operand.vmem [shape: f32[1,32], index: 4, kind: input, shape index: {}]
  %s5 = inlined_call_operand.vmem [shape: f32[1,32], index: 5, kind: input, shape index: {}]
  %s6 = inlined_call_operand.vmem [shape: bf16[32,128], index: 6, kind: input, shape index: {}]
  %s7 = inlined_call_operand.vmem [shape: f32[1,128], index: 7, kind: input, shape index: {}]
  %s8 = inlined_call_operand.vmem [shape: bf16[128,32], index: 8, kind: input, shape index: {}]
  %s9 = inlined_call_operand.vmem [shape: f32[1,32], index: 9, kind: input, shape index: {}]
  %s10 = inlined_call_operand.vmem [shape: f32[2,8,32], index: 10, kind: output, shape index: {}]
  %s11 = sld [smem:[#allocation0]]
  $region81: #{_lambda_.8} parent=0
    _
  %s13 = ssub.s32 1, %s11
  %s14 = scalar_select 0, %s13, %s11
  loop: start=0, step=1, limit=4
  $region2: #{_lambda_.8} parent=0 // loop_pre_header
    _
  $region3: #{_lambda_.8} parent=0 // loop_header
    %s16 = sphi 0, %s20
    %p17 = scmp.ge.s32.totalorder %s16, 4
    %s23 = sphi 0, %s42
    %s24 = sphi 0, %s38
    %s25 = sphi 0, %s34
    %s26 = sphi 0, %s23
    %s27 = sphi 0, %s24
    %s28 = sphi 0, %s25
    %s29 = sphi 0, %s26
    %s30 = sphi 0, %s27
    %s31 = sphi 0, %s28
    %s47 = sphi 0, %s49
    %s50 = sphi 0, %s47
    %s51 = sphi 0, %s50
    %s67 = sphi 0, %s51
    %s75 = sphi 0, %s77
    %s78 = sphi 0, %s75
    %s79 = sphi 0, %s78
    %s95 = sphi 0, %s79
    %s99 = sphi 0, %s99
    %s101 = sphi 0, %s99
    %s102 = sphi 0, %s101
    %s116 = sphi 0, %s102
    %s120 = sphi 0, %s120
    %s122 = sphi 0, %s120
    %s123 = sphi 0, %s122
    %s137 = sphi 0, %s123
    %s141 = sphi 0, %s141
    %s143 = sphi 0, %s141
    %s144 = sphi 0, %s143
    %s158 = sphi 0, %s144
    %s162 = sphi 0, %s162
    %s164 = sphi 0, %s162
    %s165 = sphi 0, %s164
    %s179 = sphi 0, %s165
    %s185 = sphi 0, %s187
    %s188 = sphi 0, %s185
    %s189 = sphi 0, %s188
    %s205 = sphi 0, %s189
    %s211 = sphi 0, %s213
    %s214 = sphi 0, %s211
    %s215 = sphi 0, %s214
    %s231 = sphi 0, %s215
    %s237 = sphi 0, %s239
    %s240 = sphi 0, %s237
    %s241 = sphi 0, %s240
    %s257 = sphi 0, %s241
    %s261 = sphi 0, %s261
    %s263 = sphi 0, %s261
    %s264 = sphi 0, %s263
    %s278 = sphi 0, %s264
    %s286 = sphi 0, %s288
    %s289 = sphi 0, %s286
    %s290 = sphi 0, %s289
    %s306 = sphi 0, %s290
  $region4: #{_lambda_.8} parent=0 // loop_header_branch
    %19 = sbr.rel (%p17) target = $region8
  $region5: #{_lambda_.8} parent=0 // loop_body
    %s21 = ssub.s32 %s16, 1
    %s22 = ssub.s32 %s16, 2
    %s32 = sadd.s32 1, %s25
    %p33 = scmp.ge.s32.totalorder %s32, 1
    %s34 = scalar_select %p33, 0, %s32
    %s35 = sadd.s32 1, %s24
    %s36 = scalar_select %p33, %s35, %s24
    %p37 = scmp.ge.s32.totalorder %s36, 1
    %s38 = scalar_select %p37, 0, %s36
    %s39 = sadd.s32 1, %s23
    %s40 = scalar_select %p37, %s39, %s23
    %p41 = scmp.ge.s32.totalorder %s40, 2
    %s42 = scalar_select %p41, 0, %s40
    %s43 = ssub.s32 %s23, %s42
    %s44 = ssub.s32 %s24, %s38
    %s45 = sor.u32 %s43, %s44
    %p46 = scmp.eq.s32.totalorder %s45, 0
    %s48 = sadd.s32 %s47, 1
    %s49 = scalar_select %p46, %s47, %s48
    %p52 = pneg %p46
    %p53 = scmp.eq.s32.totalorder %s16, 1
    %p54 = por %p52, %p53
    %p55 = scmp.ne.s32.totalorder %s47, %s50
    %p56 = scmp.eq.s32.totalorder %s16, 0
    %p57 = por %p55, %p56
    %p58 = scmp.ne.s32.totalorder %s47, %s50
    %p59 = scmp.eq.s32.totalorder %s21, 1
    %p60 = por %p58, %p59
    %p61 = scmp.ne.s32.totalorder %s50, %s51
    %p62 = scmp.eq.s32.totalorder %s21, 0
    %p63 = por %p61, %p62
    %p64 = scmp.ne.s32.totalorder %s50, %s51
    %p65 = scmp.eq.s32.totalorder %s22, 1
    %p66 = por %p64, %p65
    %p68 = scmp.ne.s32.totalorder %s51, %s67
    %p69 = scmp.eq.s32.totalorder %s22, 0
    %p70 = por %p68, %p69
    %s71 = ssub.s32 %s23, %s42
    %s72 = ssub.s32 %s24, %s38
    %s73 = sor.u32 %s71, %s72
    %p74 = scmp.eq.s32.totalorder %s73, 0
    %s76 = sadd.s32 %s75, 1
    %s77 = scalar_select %p74, %s75, %s76
    %p80 = pneg %p74
    %p81 = scmp.eq.s32.totalorder %s16, 1
    %p82 = por %p80, %p81
    %p83 = scmp.ne.s32.totalorder %s75, %s78
    %p84 = scmp.eq.s32.totalorder %s16, 0
    %p85 = por %p83, %p84
    %p86 = scmp.ne.s32.totalorder %s75, %s78
    %p87 = scmp.eq.s32.totalorder %s21, 1
    %p88 = por %p86, %p87
    %p89 = scmp.ne.s32.totalorder %s78, %s79
    %p90 = scmp.eq.s32.totalorder %s21, 0
    %p91 = por %p89, %p90
    %p92 = scmp.ne.s32.totalorder %s78, %s79
    %p93 = scmp.eq.s32.totalorder %s22, 1
    %p94 = por %p92, %p93
    %p96 = scmp.ne.s32.totalorder %s79, %s95
    %p97 = scmp.eq.s32.totalorder %s22, 0
    %p98 = por %p96, %p97
    %s100 = sadd.s32 %s99, 1
    %p103 = scmp.eq.s32.totalorder %s16, 1
    %p104 = scmp.ne.s32.totalorder %s99, %s101
    %p105 = scmp.eq.s32.totalorder %s16, 0
    %p106 = por %p104, %p105
    %p107 = scmp.ne.s32.totalorder %s99, %s101
    %p108 = scmp.eq.s32.totalorder %s21, 1
    %p109 = por %p107, %p108
    %p110 = scmp.ne.s32.totalorder %s101, %s102
    %p111 = scmp.eq.s32.totalorder %s21, 0
    %p112 = por %p110, %p111
    %p113 = scmp.ne.s32.totalorder %s101, %s102
    %p114 = scmp.eq.s32.totalorder %s22, 1
    %p115 = por %p113, %p114
    %p117 = scmp.ne.s32.totalorder %s102, %s116
    %p118 = scmp.eq.s32.totalorder %s22, 0
    %p119 = por %p117, %p118
    %s121 = sadd.s32 %s120, 1
    %p124 = scmp.eq.s32.totalorder %s16, 1
    %p125 = scmp.ne.s32.totalorder %s120, %s122
    %p126 = scmp.eq.s32.totalorder %s16, 0
    %p127 = por %p125, %p126
    %p128 = scmp.ne.s32.totalorder %s120, %s122
    %p129 = scmp.eq.s32.totalorder %s21, 1
    %p130 = por %p128, %p129
    %p131 = scmp.ne.s32.totalorder %s122, %s123
    %p132 = scmp.eq.s32.totalorder %s21, 0
    %p133 = por %p131, %p132
    %p134 = scmp.ne.s32.totalorder %s122, %s123
    %p135 = scmp.eq.s32.totalorder %s22, 1
    %p136 = por %p134, %p135
    %p138 = scmp.ne.s32.totalorder %s123, %s137
    %p139 = scmp.eq.s32.totalorder %s22, 0
    %p140 = por %p138, %p139
    %s142 = sadd.s32 %s141, 1
    %p145 = scmp.eq.s32.totalorder %s16, 1
    %p146 = scmp.ne.s32.totalorder %s141, %s143
    %p147 = scmp.eq.s32.totalorder %s16, 0
    %p148 = por %p146, %p147
    %p149 = scmp.ne.s32.totalorder %s141, %s143
    %p150 = scmp.eq.s32.totalorder %s21, 1
    %p151 = por %p149, %p150
    %p152 = scmp.ne.s32.totalorder %s143, %s144
    %p153 = scmp.eq.s32.totalorder %s21, 0
    %p154 = por %p152, %p153
    %p155 = scmp.ne.s32.totalorder %s143, %s144
    %p156 = scmp.eq.s32.totalorder %s22, 1
    %p157 = por %p155, %p156
    %p159 = scmp.ne.s32.totalorder %s144, %s158
    %p160 = scmp.eq.s32.totalorder %s22, 0
    %p161 = por %p159, %p160
    %s163 = sadd.s32 %s162, 1
    %p166 = scmp.eq.s32.totalorder %s16, 1
    %p167 = scmp.ne.s32.totalorder %s162, %s164
    %p168 = scmp.eq.s32.totalorder %s16, 0
    %p169 = por %p167, %p168
    %p170 = scmp.ne.s32.totalorder %s162, %s164
    %p171 = scmp.eq.s32.totalorder %s21, 1
    %p172 = por %p170, %p171
    %p173 = scmp.ne.s32.totalorder %s164, %s165
    %p174 = scmp.eq.s32.totalorder %s21, 0
    %p175 = por %p173, %p174
    %p176 = scmp.ne.s32.totalorder %s164, %s165
    %p177 = scmp.eq.s32.totalorder %s22, 1
    %p178 = por %p176, %p177
    %p180 = scmp.ne.s32.totalorder %s165, %s179
    %p181 = scmp.eq.s32.totalorder %s22, 0
    %p182 = por %p180, %p181
    %s183 = ssub.s32 %s25, %s34
    %p184 = scmp.eq.s32.totalorder %s183, 0
    %s186 = sadd.s32 %s185, 1
    %s187 = scalar_select %p184, %s185, %s186
    %p190 = pneg %p184
    %p191 = scmp.eq.s32.totalorder %s16, 1
    %p192 = por %p190, %p191
    %p193 = scmp.ne.s32.totalorder %s185, %s188
    %p194 = scmp.eq.s32.totalorder %s16, 0
    %p195 = por %p193, %p194
    %p196 = scmp.ne.s32.totalorder %s185, %s188
    %p197 = scmp.eq.s32.totalorder %s21, 1
    %p198 = por %p196, %p197
    %p199 = scmp.ne.s32.totalorder %s188, %s189
    %p200 = scmp.eq.s32.totalorder %s21, 0
    %p201 = por %p199, %p200
    %p202 = scmp.ne.s32.totalorder %s188, %s189
    %p203 = scmp.eq.s32.totalorder %s22, 1
    %p204 = por %p202, %p203
    %p206 = scmp.ne.s32.totalorder %s189, %s205
    %p207 = scmp.eq.s32.totalorder %s22, 0
    %p208 = por %p206, %p207
    %s209 = ssub.s32 %s25, %s34
    %p210 = scmp.eq.s32.totalorder %s209, 0
    %s212 = sadd.s32 %s211, 1
    %s213 = scalar_select %p210, %s211, %s212
    %p216 = pneg %p210
    %p217 = scmp.eq.s32.totalorder %s16, 1
    %p218 = por %p216, %p217
    %p219 = scmp.ne.s32.totalorder %s211, %s214
    %p220 = scmp.eq.s32.totalorder %s16, 0
    %p221 = por %p219, %p220
    %p222 = scmp.ne.s32.totalorder %s211, %s214
    %p223 = scmp.eq.s32.totalorder %s21, 1
    %p224 = por %p222, %p223
    %p225 = scmp.ne.s32.totalorder %s214, %s215
    %p226 = scmp.eq.s32.totalorder %s21, 0
    %p227 = por %p225, %p226
    %p228 = scmp.ne.s32.totalorder %s214, %s215
    %p229 = scmp.eq.s32.totalorder %s22, 1
    %p230 = por %p228, %p229
    %p232 = scmp.ne.s32.totalorder %s215, %s231
    %p233 = scmp.eq.s32.totalorder %s22, 0
    %p234 = por %p232, %p233
    %s235 = ssub.s32 %s25, %s34
    %p236 = scmp.eq.s32.totalorder %s235, 0
    %s238 = sadd.s32 %s237, 1
    %s239 = scalar_select %p236, %s237, %s238
    %p242 = pneg %p236
    %p243 = scmp.eq.s32.totalorder %s16, 1
    %p244 = por %p242, %p243
    %p245 = scmp.ne.s32.totalorder %s237, %s240
    %p246 = scmp.eq.s32.totalorder %s16, 0
    %p247 = por %p245, %p246
    %p248 = scmp.ne.s32.totalorder %s237, %s240
    %p249 = scmp.eq.s32.totalorder %s21, 1
    %p250 = por %p248, %p249
    %p251 = scmp.ne.s32.totalorder %s240, %s241
    %p252 = scmp.eq.s32.totalorder %s21, 0
    %p253 = por %p251, %p252
    %p254 = scmp.ne.s32.totalorder %s240, %s241
    %p255 = scmp.eq.s32.totalorder %s22, 1
    %p256 = por %p254, %p255
    %p258 = scmp.ne.s32.totalorder %s241, %s257
    %p259 = scmp.eq.s32.totalorder %s22, 0
    %p260 = por %p258, %p259
    %s262 = sadd.s32 %s261, 1
    %p265 = scmp.eq.s32.totalorder %s16, 1
    %p266 = scmp.ne.s32.totalorder %s261, %s263
    %p267 = scmp.eq.s32.totalorder %s16, 0
    %p268 = por %p266, %p267
    %p269 = scmp.ne.s32.totalorder %s261, %s263
    %p270 = scmp.eq.s32.totalorder %s21, 1
    %p271 = por %p269, %p270
    %p272 = scmp.ne.s32.totalorder %s263, %s264
    %p273 = scmp.eq.s32.totalorder %s21, 0
    %p274 = por %p272, %p273
    %p275 = scmp.ne.s32.totalorder %s263, %s264
    %p276 = scmp.eq.s32.totalorder %s22, 1
    %p277 = por %p275, %p276
    %p279 = scmp.ne.s32.totalorder %s264, %s278
    %p280 = scmp.eq.s32.totalorder %s22, 0
    %p281 = por %p279, %p280
    %s282 = ssub.s32 %s23, %s42
    %s283 = ssub.s32 %s24, %s38
    %s284 = sor.u32 %s282, %s283
    %p285 = scmp.eq.s32.totalorder %s284, 0
    %s287 = sadd.s32 %s286, 1
    %s288 = scalar_select %p285, %s286, %s287
    %p291 = pneg %p285
    %p292 = scmp.eq.s32.totalorder %s16, 1
    %p293 = por %p291, %p292
    %p294 = scmp.ne.s32.totalorder %s286, %s289
    %p295 = scmp.eq.s32.totalorder %s16, 0
    %p296 = por %p294, %p295
    %p297 = scmp.ne.s32.totalorder %s286, %s289
    %p298 = scmp.eq.s32.totalorder %s21, 1
    %p299 = por %p297, %p298
    %p300 = scmp.ne.s32.totalorder %s289, %s290
    %p301 = scmp.eq.s32.totalorder %s21, 0
    %p302 = por %p300, %p301
    %p303 = scmp.ne.s32.totalorder %s289, %s290
    %p304 = scmp.eq.s32.totalorder %s22, 1
    %p305 = por %p303, %p304
    %p307 = scmp.ne.s32.totalorder %s290, %s306
    %p308 = scmp.eq.s32.totalorder %s22, 0
    %p309 = por %p307, %p308
    %p310 = scmp.le.s32.totalorder 1, %s16
    %p311 = scmp.lt.s32.totalorder %s16, 3
    %p312 = pnand %p310, %p311
    %p313 = pneg %p312
    // Predicated region
    $region9: #{_lambda_.8} parent=5 // pred_check
      _
    $region10: #{_lambda_.8} parent=5 // pred_check_branch
      %315 = sbr.rel (%p312) target = $region12
    $region11: #{_lambda_.8} parent=5 // pred_region
      %s316 = ssub.s32 %s16, 1
      // Predicated region
      $region13: #{_lambda_.8} parent=11 // pred_check
        %p317 = pneg %p112
      $region14: #{_lambda_.8} parent=11 // pred_check_branch
        %319 = sbr.rel (%p317) target = $region16
      $region15: #{_lambda_.8} parent=11 // pred_region
        _
      $region16: #{_lambda_.8} parent=11 // pred_fallthru
        _
      // Predicated region
      $region17: #{_lambda_.8} parent=11 // pred_check
        %p320 = pneg %p133
      $region18: #{_lambda_.8} parent=11 // pred_check_branch
        %322 = sbr.rel (%p320) target = $region20
      $region19: #{_lambda_.8} parent=11 // pred_region
        _
      $region20: #{_lambda_.8} parent=11 // pred_fallthru
        _
      // Predicated region
      $region21: #{_lambda_.8} parent=11 // pred_check
        %p323 = pneg %p154
      $region22: #{_lambda_.8} parent=11 // pred_check_branch
        %325 = sbr.rel (%p323) target = $region24
      $region23: #{_lambda_.8} parent=11 // pred_region
        _
      $region24: #{_lambda_.8} parent=11 // pred_fallthru
        _
      // Predicated region
      $region25: #{_lambda_.8} parent=11 // pred_check
        %p326 = pneg %p175
      $region26: #{_lambda_.8} parent=11 // pred_check_branch
        %328 = sbr.rel (%p326) target = $region28
      $region27: #{_lambda_.8} parent=11 // pred_region
        _
      $region28: #{_lambda_.8} parent=11 // pred_fallthru
        _
      // Predicated region
      $region29: #{_lambda_.8} parent=11 // pred_check
        %p329 = pneg %p201
      $region30: #{_lambda_.8} parent=11 // pred_check_branch
        %331 = sbr.rel (%p329) target = $region32
      $region31: #{_lambda_.8} parent=11 // pred_region
        %p332 = scmp.lt.s32.totalorder %s28, 0
        %s333 = scalar_select %p332, %s28, 0
        %s334 = smul.addr %s333, 4
        %s335 = scalar_lea.vmem %s6, %s334
      $region32: #{_lambda_.8} parent=11 // pred_fallthru
        _
      // Predicated region
      $region33: #{_lambda_.8} parent=11 // pred_check
        %p336 = pneg %p227
      $region34: #{_lambda_.8} parent=11 // pred_check_branch
        %338 = sbr.rel (%p336) target = $region36
      $region35: #{_lambda_.8} parent=11 // pred_region
        %p339 = scmp.lt.s32.totalorder %s28, 0
        %s340 = scalar_select %p339, %s28, 0
        %s341 = scalar_lea.vmem %s7, %s340
      $region36: #{_lambda_.8} parent=11 // pred_fallthru
        _
      // Predicated region
      $region37: #{_lambda_.8} parent=11 // pred_check
        %p342 = pneg %p253
      $region38: #{_lambda_.8} parent=11 // pred_check_branch
        %344 = sbr.rel (%p342) target = $region40
      $region39: #{_lambda_.8} parent=11 // pred_region
        %s345 = smul.u32 16, %s28
        %p346 = scmp.lt.s32.totalorder %s345, 15
        %s347 = scalar_select %p346, %s345, 15
        %s348 = smul.addr %s347, 4
        %s349 = scalar_lea.vmem %s8, %s348
        %s350 = smul.u32 16, %s28
      $region40: #{_lambda_.8} parent=11 // pred_fallthru
        _
      // Predicated region
      $region41: #{_lambda_.8} parent=11 // pred_check
        %p351 = pneg %p274
      $region42: #{_lambda_.8} parent=11 // pred_check_branch
        %353 = sbr.rel (%p351) target = $region44
      $region43: #{_lambda_.8} parent=11 // pred_region
        _
      $region44: #{_lambda_.8} parent=11 // pred_fallthru
        _
    $region12: #{_lambda_.8} parent=5 // pred_fallthru
      _
    %p354 = scmp.lt.s32.totalorder %s16, 2
    // Predicated region
    $region45: #{_lambda_.8} parent=5 // pred_check
      %p355 = pneg %p354
    $region46: #{_lambda_.8} parent=5 // pred_check_branch
      %357 = sbr.rel (%p355) target = $region48
    $region47: #{_lambda_.8} parent=5 // pred_region
      // Predicated region
      $region49: #{_lambda_.8} parent=47 // pred_check
        %p358 = pneg %p57
      $region50: #{_lambda_.8} parent=47 // pred_check_branch
        %360 = sbr.rel (%p358) target = $region52
      $region51: #{_lambda_.8} parent=47 // pred_region
        %p361 = scmp.lt.s32.totalorder %s23, 1
        %s362 = scalar_select %p361, %s23, 1
        %p363 = scmp.lt.s32.totalorder %s24, 0
        %s364 = scalar_select %p363, %s24, 0
        %s365 = sadd.s32 %s364, %s362
        %s366 = smul.addr %s365, 8
        %s367 = scalar_lea.vmem %s0, %s366
      $region52: #{_lambda_.8} parent=47 // pred_fallthru
        _
      // Predicated region
      $region53: #{_lambda_.8} parent=47 // pred_check
        %p368 = pneg %p85
      $region54: #{_lambda_.8} parent=47 // pred_check_branch
        %370 = sbr.rel (%p368) target = $region56
      $region55: #{_lambda_.8} parent=47 // pred_region
        %p371 = scmp.lt.s32.totalorder %s23, 1
        %s372 = scalar_select %p371, %s23, 1
        %p373 = scmp.lt.s32.totalorder %s24, 0
        %s374 = scalar_select %p373, %s24, 0
        %s375 = sadd.s32 %s374, %s372
        %s376 = smul.addr %s375, 4
        %s377 = scalar_lea.vmem %s1, %s376
      $region56: #{_lambda_.8} parent=47 // pred_fallthru
        _
    $region48: #{_lambda_.8} parent=5 // pred_fallthru
      _
    %p378 = scmp.le.s32.totalorder 1, %s16
    %p379 = scmp.lt.s32.totalorder %s16, 3
    %p380 = pnand %p378, %p379
    %p381 = pneg %p380
    // Predicated region
    $region57: #{_lambda_.8} parent=5 // pred_check
      _
    $region58: #{_lambda_.8} parent=5 // pred_check_branch
      %383 = sbr.rel (%p380) target = $region60
    $region59: #{_lambda_.8} parent=5 // pred_region
      %s384 = ssub.s32 %s16, 1
      %p385 = scmp.lt.s32.totalorder %s26, 1
      %s386 = scalar_select %p385, %s26, 1
      %p387 = scmp.lt.s32.totalorder %s27, 0
      %s388 = scalar_select %p387, %s27, 0
      %s389 = sadd.s32 %s388, %s386
      %s390 = smul.addr %s389, 8
      %s391 = scalar_lea.vmem %s0, %s390
      %p392 = pneg %p63
      %p393 = pneg %p60
      %p394 = scmp.lt.s32.totalorder %s26, 1
      %s395 = scalar_select %p394, %s26, 1
      %p396 = scmp.lt.s32.totalorder %s27, 0
      %s397 = scalar_select %p396, %s27, 0
      %s398 = sadd.s32 %s397, %s395
      %s399 = smul.addr %s398, 4
      %s400 = scalar_lea.vmem %s1, %s399
      %p401 = pneg %p91
      %p402 = pneg %p88
      %p403 = pneg %p112
      %p404 = pneg %p109
      %p405 = pneg %p133
      %p406 = pneg %p130
      %p407 = pneg %p154
      %p408 = pneg %p151
      %p409 = pneg %p175
      %p410 = pneg %p172
      %p411 = scmp.lt.s32.totalorder %s28, 0
      %s412 = scalar_select %p411, %s28, 0
      %s413 = smul.addr %s412, 4
      %s414 = scalar_lea.vmem %s6, %s413
      %p415 = pneg %p201
      %p416 = pneg %p198
      %p417 = scmp.lt.s32.totalorder %s28, 0
      %s418 = scalar_select %p417, %s28, 0
      %s419 = scalar_lea.vmem %s7, %s418
      %p420 = pneg %p227
      %p421 = pneg %p224
      %s422 = smul.u32 16, %s28
      %p423 = scmp.lt.s32.totalorder %s422, 15
      %s424 = scalar_select %p423, %s422, 15
      %s425 = smul.addr %s424, 4
      %s426 = scalar_lea.vmem %s8, %s425
      %p427 = pneg %p253
      %p428 = pneg %p250
      %p429 = pneg %p274
      %p430 = pneg %p271
      %p431 = pneg %p302
      %p432 = pneg %p299
      %p433 = scmp.lt.s32.totalorder %s26, 1
      %s434 = scalar_select %p433, %s26, 1
      %p435 = scmp.lt.s32.totalorder %s27, 0
      %s436 = scalar_select %p435, %s27, 0
      %s437 = sadd.s32 %s436, %s434
      %s438 = smul.addr %s437, 8
      %s439 = scalar_lea.vmem %s10, %s438
      %p440 = scmp.lt.s32.totalorder %s26, 1
      %s441 = scalar_select %p440, %s26, 1
      %p442 = scmp.lt.s32.totalorder %s27, 0
      %s443 = scalar_select %p442, %s27, 0
      %s444 = sadd.s32 %s443, %s441
      %s445 = smul.addr %s444, 8
      %s446 = scalar_lea.vmem %s0, %s445
      %p447 = scmp.lt.s32.totalorder %s26, 1
      %s448 = scalar_select %p447, %s26, 1
      %p449 = scmp.lt.s32.totalorder %s27, 0
      %s450 = scalar_select %p449, %s27, 0
      %s451 = sadd.s32 %s450, %s448
      %s452 = smul.addr %s451, 4
      %s453 = scalar_lea.vmem %s1, %s452
      %p454 = scmp.lt.s32.totalorder %s28, 0
      %s455 = scalar_select %p454, %s28, 0
      %s456 = smul.addr %s455, 4
      %s457 = scalar_lea.vmem %s6, %s456
      %p458 = scmp.lt.s32.totalorder %s28, 0
      %s459 = scalar_select %p458, %s28, 0
      %s460 = scalar_lea.vmem %s7, %s459
      %s461 = smul.u32 16, %s28
      %p462 = scmp.lt.s32.totalorder %s461, 15
      %s463 = scalar_select %p462, %s461, 15
      %s464 = smul.addr %s463, 4
      %s465 = scalar_lea.vmem %s8, %s464
      %s466 = smul.u32 16, %s28
      %p467 = scmp.lt.s32.totalorder %s26, 1
      %s468 = scalar_select %p467, %s26, 1
      %p469 = scmp.lt.s32.totalorder %s27, 0
      %s470 = scalar_select %p469, %s27, 0
      %s471 = sadd.s32 %s470, %s468
      %s472 = smul.addr %s471, 8
      %s473 = scalar_lea.vmem %s10, %s472
      %p475 = scmp.eq.s32.totalorder %s28, 0
      // Predicated region
      $region61: #{_lambda_.8} parent=59 // pred_check
        %p476 = pneg %p475
      $region62: #{_lambda_.8} parent=59 // pred_check_branch
        %478 = sbr.rel (%p476) target = $region64
      $region63: #{_lambda_.8} parent=59 // pred_region
        %v479 = vld [vmem:[%s446] sm:$0xff]
        %v480 = vld [vmem:[%s453] sm:$0xf]
        %v481 = vld [vmem:[%s2] sm:$0xf]
        %v482 = vld [vmem:[%s2 + $0x4] sm:$0xf]
        %v483 = vld [vmem:[%s2 + $0x8] sm:$0xf]
        %v484 = vld [vmem:[%s2 + $0xc] sm:$0xf]
        %v485 = vld [vmem:[%s3] sm:$0x1]
        %v487 = vlaneseq
        %v488 = vshrl.u32 %v487, 7
        %v489 = vsub.s32 0, %v488
        %v490 = vrot.slane %v485, %v489
        %v496 = vunpack.c.l.b16 %v481
        %v497 = vunpack.c.l.b16 %v482
        %v498 = vunpack.c.l.b16 %v483
        %v499 = vunpack.c.l.b16 %v484
        %v500 = vpack.c.b16 %v497, %v496
        %v501 = vpack.c.b16 %v499, %v498
        %vm504 = vcmask 261120
        %v506 = vsel %vm504, %v480, 0
        %508 = vmatprep.subr.bf16.mxu0 0
        %509 = vmatpush1.bf16.msra.mxu0 %v500
        %510 = vmatprep.subr.bf16.mxu0 0
        %511 = vmatpush1.bf16.msra.mxu0 %v501
        %512 = vmatprep.subr.bf16.mxu0 0
        %513 = vmatpush1.bf16.msra.mxu0 0
        %514 = vmatprep.subr.bf16.mxu0 0
        %515 = vmatpush1.bf16.msra.mxu0 0
        %516 = vmatprep.subr.bf16.mxu0 0
        %517 = vmatpush1.bf16.msra.mxu0 0
        %518 = vmatprep.subr.bf16.mxu0 0
        %519 = vmatpush1.bf16.msra.mxu0 0
        %520 = vmatprep.subr.bf16.mxu0 0
        %521 = vmatpush1.bf16.msra.mxu0 0
        %522 = vmatprep.subr.bf16.mxu0 0
        %523 = vmatpush1.bf16.msra.mxu0 0
        %524 = vmatprep.subr.bf16.mxu0 0
        %525 = vmatpush1.bf16.msra.mxu0 0
        %526 = vmatprep.subr.bf16.mxu0 0
        %527 = vmatpush1.bf16.msra.mxu0 0
        %528 = vmatprep.subr.bf16.mxu0 0
        %529 = vmatpush1.bf16.msra.mxu0 0
        %530 = vmatprep.subr.bf16.mxu0 0
        %531 = vmatpush1.bf16.msra.mxu0 0
        %532 = vmatprep.subr.bf16.mxu0 0
        %533 = vmatpush1.bf16.msra.mxu0 0
        %534 = vmatprep.subr.bf16.mxu0 0
        %535 = vmatpush1.bf16.msra.mxu0 0
        %536 = vmatprep.subr.bf16.mxu0 0
        %537 = vmatpush1.bf16.msra.mxu0 0
        %538 = vmatprep.subr.bf16.mxu0 0
        %539 = vmatpush1.bf16.msra.mxu0 0
        %540 = vmatprep.mubr.bf16.mxu0 0
        %541 = vmatmul.mubr.bf16.gmra.mrb[0].mxu0 %v506
        %v542 = vpop.f32.mrb[0].mxu0
        %v543 = vadd.f32 %v490, %v542
        %v544 = vpop.f32.mrb[0].mxu0
        %v545 = vpop.f32.mrb[0].mxu0
        %v546 = vpop.f32.mrb[0].mxu0
        %547 = vdwg.mxu0
        %v548 = vadd.f32 %v479, %v543
        %549 = vst.msk [vmem:[#allocation2] sm:$0xff] %vm504, %v548
        %v550 = vld [vmem:[%s4] sm:$0x1]
        %v551 = vld [vmem:[%s5] sm:$0x1]
        %v552 = vsel %vm504, %v548, 0.0
        %553 = vadd.xlane.f32.xlu0 %v552
        %v554 = vpop.xlane.xlu0 %553
        %v555 = vrcp.pop 32.0
        %v556 = vmul.f32 %v554, %v555
        %v557 = vsub.f32 %v548, %v556
        %v558 = vmul.f32 %v557, %v557
        %v559 = vsel %vm504, %v558, 0.0
        %560 = vadd.xlane.f32.xlu0 %v559
        %v561 = vpop.xlane.xlu0 %560
        %v562 = vmul.f32 %v561, %v555
        %v563 = vadd.f32 %v562, 1e-05
        %v564 = vrsqrt.pop %v563
        %v565 = vmul.f32 %v557, %v564
        %v567 = vlaneseq
        %v568 = vshrl.u32 %v567, 7
        %v569 = vsub.s32 0, %v568
        %v570 = vrot.slane %v550, %v569
        %v572 = vmul.f32 %v565, %v570
        %v574 = vlaneseq
        %v575 = vshrl.u32 %v574, 7
        %v576 = vsub.s32 0, %v575
        %v577 = vrot.slane %v551, %v576
        %v579 = vadd.f32 %v572, %v577
        %v580 = vpack.c.bf16 %v579, %v579
        %vm581 = vcmask 257024
        %582 = vst.msk [vmem:[#allocation3] sm:$0xf] %vm581, %v580
        %583 = vst.msk [vmem:[#allocation4] sm:$0xff] %vm504, 0.0
      $region64: #{_lambda_.8} parent=59 // pred_fallthru
        _
      %v584 = vld [vmem:[#allocation3] sm:$0xf]
      %v585 = vld [vmem:[%s457] sm:$0xf]
      %v586 = vld [vmem:[%s457 + $0x4] sm:$0xf]
      %v587 = vld [vmem:[%s457 + $0x8] sm:$0xf]
      %v588 = vld [vmem:[%s457 + $0xc] sm:$0xf]
      %v589 = vld [vmem:[%s460] sm:$0x1]
      %v591 = vlaneseq
      %v592 = vshrl.u32 %v591, 7
      %v593 = vsub.s32 0, %v592
      %v594 = vrot.slane %v589, %v593
      %v600 = vunpack.c.l.b16 %v585
      %v601 = vunpack.c.l.b16 %v586
      %v602 = vunpack.c.l.b16 %v587
      %v603 = vunpack.c.l.b16 %v588
      %v604 = vpack.c.b16 %v601, %v600
      %v605 = vpack.c.b16 %v603, %v602
      %vm608 = vcmask 261120
      %v610 = vsel %vm608, %v584, 0
      %612 = vmatprep.subr.bf16.mxu0 0
      %613 = vmatpush1.bf16.msra.mxu0 %v604
      %614 = vmatprep.subr.bf16.mxu0 0
      %615 = vmatpush1.bf16.msra.mxu0 %v605
      %616 = vmatprep.subr.bf16.mxu0 0
      %617 = vmatpush1.bf16.msra.mxu0 0
      %618 = vmatprep.subr.bf16.mxu0 0
      %619 = vmatpush1.bf16.msra.mxu0 0
      %620 = vmatprep.subr.bf16.mxu0 0
      %621 = vmatpush1.bf16.msra.mxu0 0
      %622 = vmatprep.subr.bf16.mxu0 0
      %623 = vmatpush1.bf16.msra.mxu0 0
      %624 = vmatprep.subr.bf16.mxu0 0
      %625 = vmatpush1.bf16.msra.mxu0 0
      %626 = vmatprep.subr.bf16.mxu0 0
      %627 = vmatpush1.bf16.msra.mxu0 0
      %628 = vmatprep.subr.bf16.mxu0 0
      %629 = vmatpush1.bf16.msra.mxu0 0
      %630 = vmatprep.subr.bf16.mxu0 0
      %631 = vmatpush1.bf16.msra.mxu0 0
      %632 = vmatprep.subr.bf16.mxu0 0
      %633 = vmatpush1.bf16.msra.mxu0 0
      %634 = vmatprep.subr.bf16.mxu0 0
      %635 = vmatpush1.bf16.msra.mxu0 0
      %636 = vmatprep.subr.bf16.mxu0 0
      %637 = vmatpush1.bf16.msra.mxu0 0
      %638 = vmatprep.subr.bf16.mxu0 0
      %639 = vmatpush1.bf16.msra.mxu0 0
      %640 = vmatprep.subr.bf16.mxu0 0
      %641 = vmatpush1.bf16.msra.mxu0 0
      %642 = vmatprep.subr.bf16.mxu0 0
      %643 = vmatpush1.bf16.msra.mxu0 0
      %644 = vmatprep.mubr.bf16.mxu0 0
      %645 = vmatmul.mubr.bf16.gmra.mrb[0].mxu0 %v610
      %v646 = vpop.f32.mrb[0].mxu0
      %v647 = vadd.f32 %v594, %v646
      %v648 = vpop.f32.mrb[0].mxu0
      %v649 = vpop.f32.mrb[0].mxu0
      %v650 = vpop.f32.mrb[0].mxu0
      %651 = vdwg.mxu0
      %v652 = vmul.f32 %v647, 1.702
      %v653 = vxor.u32 %v652, 2147483648
      %v654 = vmul.f32 %v653, 1.442695
      %v655 = vpow.pop %v654
      %v656 = vadd.f32 %v655, 1.0
      %v657 = vrcp.pop %v656
      %v658 = vmul.f32 1.0, %v657
      %v659 = vmul.f32 %v647, %v658
      %v660 = vld [vmem:[#allocation4] sm:$0xff]
      %v661 = vpack.c.bf16 %v659, %v659
      %v662 = vld [vmem:[%s465] sm:$0xf]
      %v663 = vld [vmem:[%s465 + $0x4] sm:$0xf]
      %v664 = vld [vmem:[%s465 + $0x8] sm:$0xf]
      %v665 = vld [vmem:[%s465 + $0xc] sm:$0xf]
      %v666 = vld [vmem:[%s465 + $0x10] sm:$0xf]
      %v667 = vld [vmem:[%s465 + $0x14] sm:$0xf]
      %v668 = vld [vmem:[%s465 + $0x18] sm:$0xf]
      %v669 = vld [vmem:[%s465 + $0x1c] sm:$0xf]
      %v670 = vld [vmem:[%s465 + $0x20] sm:$0xf]
      %v671 = vld [vmem:[%s465 + $0x24] sm:$0xf]
      %v672 = vld [vmem:[%s465 + $0x28] sm:$0xf]
      %v673 = vld [vmem:[%s465 + $0x2c] sm:$0xf]
      %v674 = vld [vmem:[%s465 + $0x30] sm:$0xf]
      %v675 = vld [vmem:[%s465 + $0x34] sm:$0xf]
      %v676 = vld [vmem:[%s465 + $0x38] sm:$0xf]
      %v677 = vld [vmem:[%s465 + $0x3c] sm:$0xf]
      %v694 = vunpack.c.l.b16 %v662
      %v695 = vunpack.c.l.b16 %v663
      %v696 = vunpack.c.l.b16 %v664
      %v697 = vunpack.c.l.b16 %v665
      %v698 = vunpack.c.l.b16 %v666
      %v699 = vunpack.c.l.b16 %v667
      %v700 = vunpack.c.l.b16 %v668
      %v701 = vunpack.c.l.b16 %v669
      %v702 = vunpack.c.l.b16 %v670
      %v703 = vunpack.c.l.b16 %v671
      %v704 = vunpack.c.l.b16 %v672
      %v705 = vunpack.c.l.b16 %v673
      %v706 = vunpack.c.l.b16 %v674
      %v707 = vunpack.c.l.b16 %v675
      %v708 = vunpack.c.l.b16 %v676
      %v709 = vunpack.c.l.b16 %v677
      %v710 = vpack.c.b16 %v695, %v694
      %v711 = vpack.c.b16 %v697, %v696
      %v712 = vpack.c.b16 %v699, %v698
      %v713 = vpack.c.b16 %v701, %v700
      %v714 = vpack.c.b16 %v703, %v702
      %v715 = vpack.c.b16 %v705, %v704
      %v716 = vpack.c.b16 %v707, %v706
      %v717 = vpack.c.b16 %v709, %v708
      %726 = vmatprep.subr.bf16.mxu0 0
      %727 = vmatpush1.bf16.msra.mxu0 %v710
      %728 = vmatprep.subr.bf16.mxu0 0
      %729 = vmatpush1.bf16.msra.mxu0 %v711
      %730 = vmatprep.subr.bf16.mxu0 0
      %731 = vmatpush1.bf16.msra.mxu0 %v712
      %732 = vmatprep.subr.bf16.mxu0 0
      %733 = vmatpush1.bf16.msra.mxu0 %v713
      %734 = vmatprep.subr.bf16.mxu0 0
      %735 = vmatpush1.bf16.msra.mxu0 %v714
      %736 = vmatprep.subr.bf16.mxu0 0
      %737 = vmatpush1.bf16.msra.mxu0 %v715
      %738 = vmatprep.subr.bf16.mxu0 0
      %739 = vmatpush1.bf16.msra.mxu0 %v716
      %740 = vmatprep.subr.bf16.mxu0 0
      %741 = vmatpush1.bf16.msra.mxu0 %v717
      %742 = vmatprep.subr.bf16.mxu0 0
      %743 = vmatpush1.bf16.msra.mxu0 0
      %744 = vmatprep.subr.bf16.mxu0 0
      %745 = vmatpush1.bf16.msra.mxu0 0
      %746 = vmatprep.subr.bf16.mxu0 0
      %747 = vmatpush1.bf16.msra.mxu0 0
      %748 = vmatprep.subr.bf16.mxu0 0
      %749 = vmatpush1.bf16.msra.mxu0 0
      %750 = vmatprep.subr.bf16.mxu0 0
      %751 = vmatpush1.bf16.msra.mxu0 0
      %752 = vmatprep.subr.bf16.mxu0 0
      %753 = vmatpush1.bf16.msra.mxu0 0
      %754 = vmatprep.subr.bf16.mxu0 0
      %755 = vmatpush1.bf16.msra.mxu0 0
      %756 = vmatprep.subr.bf16.mxu0 0
      %757 = vmatpush1.bf16.msra.mxu0 0
      %758 = vmatprep.mubr.bf16.mxu0 0
      %759 = vmatmul.mubr.bf16.gmra.mrb[0].mxu0 %v661
      %v760 = vpop.f32.mrb[0].mxu0
      %v761 = vadd.f32 0.0, %v760
      %v762 = vpop.f32.mrb[0].mxu0
      %v763 = vpop.f32.mrb[0].mxu0
      %v764 = vpop.f32.mrb[0].mxu0
      %765 = vdwg.mxu0
      %v766 = vadd.f32 %v660, %v761
      %767 = vst.msk [vmem:[#allocation4] sm:$0xff] %vm608, %v766
      // Predicated region
      $region65: #{_lambda_.8} parent=59 // pred_check
        %p768 = pneg %p475
      $region66: #{_lambda_.8} parent=59 // pred_check_branch
        %770 = sbr.rel (%p768) target = $region68
      $region67: #{_lambda_.8} parent=59 // pred_region
        %v771 = vld [vmem:[#allocation2] sm:$0xff]
        %v772 = vld [vmem:[#allocation4] sm:$0xff]
        %v773 = vadd.f32 %v771, %v772
        %v774 = vld [vmem:[%s9] sm:$0x1]
        %v776 = vlaneseq
        %v777 = vshrl.u32 %v776, 7
        %v778 = vsub.s32 0, %v777
        %v779 = vrot.slane %v774, %v778
        %v781 = vadd.f32 %v773, %v779
        %782 = vst.msk [vmem:[%s473] sm:$0xff] %vm608, %v781
      $region68: #{_lambda_.8} parent=59 // pred_fallthru
        _
      %p783 = scmp.lt.s32.totalorder %s26, 1
      %s784 = scalar_select %p783, %s26, 1
      %p785 = scmp.lt.s32.totalorder %s27, 0
      %s786 = scalar_select %p785, %s27, 0
      %s787 = sadd.s32 %s786, %s784
      %s788 = smul.addr %s787, 8
      %s789 = scalar_lea.vmem %s10, %s788
      // Predicated region
      $region69: #{_lambda_.8} parent=59 // pred_check
        %p790 = pneg %p299
      $region70: #{_lambda_.8} parent=59 // pred_check_branch
        %792 = sbr.rel (%p790) target = $region72
      $region71: #{_lambda_.8} parent=59 // pred_region
        _
      $region72: #{_lambda_.8} parent=59 // pred_fallthru
        _
    $region60: #{_lambda_.8} parent=5 // pred_fallthru
      _
    %p793 = scmp.le.s32.totalorder 2, %s16
    // Predicated region
    $region73: #{_lambda_.8} parent=5 // pred_check
      %p794 = pneg %p793
    $region74: #{_lambda_.8} parent=5 // pred_check_branch
      %796 = sbr.rel (%p794) target = $region76
    $region75: #{_lambda_.8} parent=5 // pred_region
      %s797 = ssub.s32 %s16, 2
      // Predicated region
      $region77: #{_lambda_.8} parent=75 // pred_check
        %p798 = pneg %p305
      $region78: #{_lambda_.8} parent=75 // pred_check_branch
        %800 = sbr.rel (%p798) target = $region80
      $region79: #{_lambda_.8} parent=75 // pred_region
        %p801 = scmp.lt.s32.totalorder %s29, 1
        %s802 = scalar_select %p801, %s29, 1
        %p803 = scmp.lt.s32.totalorder %s30, 0
        %s804 = scalar_select %p803, %s30, 0
        %s805 = sadd.s32 %s804, %s802
        %s806 = smul.addr %s805, 8
        %s807 = scalar_lea.vmem %s10, %s806
      $region80: #{_lambda_.8} parent=75 // pred_fallthru
        _
    $region76: #{_lambda_.8} parent=5 // pred_fallthru
      _
  $region6: #{_lambda_.8} parent=0 // loop_footer
    %s20 = sadd.s32 1, %s16
  $region7: #{_lambda_.8} parent=0 // loop_footer_branch
    %15 = sbr.rel target = $region3
  $region8: #{_lambda_.8} parent=0 // loop_exit
    _

// kernel: _lambda_.7
$region0: #{_lambda_.7}
  #allocation0 [shape = 'u32[]', space=smem, size = 0x4, offset = 0x4, fixed_abs, tag = 'smem constant byte address 0x4 - core index']
  #allocation1 [shape = 'u32[144,128]{1,0:T(1,128)}', space=vmem, size = 0x12000, scoped, tag = 'internal scratch']
  #allocation2 [shape = 'bf16[4,8,8]{2,1,0:T(8,128)(2,1)}', space=vmem, size = 0x2000, scoped, tag = 'scratch operand']
  #allocation3 [shape = 'bf16[4,8,8]{2,1,0:T(8,128)(2,1)}', space=vmem, size = 0x2000, scoped, tag = 'scratch operand']
  %s0 = inlined_call_operand.vmem [shape: bf16[2,8,4,8], index: 0, kind: input, shape index: {}]
  %s1 = inlined_call_operand.vmem [shape: bf16[2,8,4,8], index: 1, kind: input, shape index: {}]
  %s2 = inlined_call_operand.vmem [shape: bf16[2,8,4,8], index: 2, kind: input, shape index: {}]
  %s3 = inlined_call_operand.vmem [shape: bf16[2,8,32], index: 3, kind: output, shape index: {}]
  %s4 = sld [smem:[#allocation0]]
  $region49: #{_lambda_.7} parent=0
    _
  %s6 = ssub.s32 1, %s4
  %s7 = scalar_select 0, %s6, %s4
  loop: start=0, step=1, limit=4
  $region2: #{_lambda_.7} parent=0 // loop_pre_header
    _
  $region3: #{_lambda_.7} parent=0 // loop_header
    %s9 = sphi 0, %s13
    %p10 = scmp.ge.s32.totalorder %s9, 4
    %s16 = sphi 0, %s28
    %s17 = sphi 0, %s24
    %s18 = sphi 0, %s16
    %s19 = sphi 0, %s17
    %s20 = sphi 0, %s18
    %s21 = sphi 0, %s19
    %s33 = sphi 0, %s35
    %s36 = sphi 0, %s33
    %s37 = sphi 0, %s36
    %s53 = sphi 0, %s37
    %s59 = sphi 0, %s61
    %s62 = sphi 0, %s59
    %s63 = sphi 0, %s62
    %s79 = sphi 0, %s63
    %s85 = sphi 0, %s87
    %s88 = sphi 0, %s85
    %s89 = sphi 0, %s88
    %s105 = sphi 0, %s89
    %s113 = sphi 0, %s115
    %s116 = sphi 0, %s113
    %s117 = sphi 0, %s116
    %s133 = sphi 0, %s117
  $region4: #{_lambda_.7} parent=0 // loop_header_branch
    %12 = sbr.rel (%p10) target = $region8
  $region5: #{_lambda_.7} parent=0 // loop_body
    %s14 = ssub.s32 %s9, 1
    %s15 = ssub.s32 %s9, 2
    %s22 = sadd.s32 1, %s17
    %p23 = scmp.ge.s32.totalorder %s22, 1
    %s24 = scalar_select %p23, 0, %s22
    %s25 = sadd.s32 1, %s16
    %s26 = scalar_select %p23, %s25, %s16
    %p27 = scmp.ge.s32.totalorder %s26, 2
    %s28 = scalar_select %p27, 0, %s26
    %s29 = ssub.s32 %s16, %s28
    %s30 = ssub.s32 %s17, %s24
    %s31 = sor.u32 %s29, %s30
    %p32 = scmp.eq.s32.totalorder %s31, 0
    %s34 = sadd.s32 %s33, 1
    %s35 = scalar_select %p32, %s33, %s34
    %p38 = pneg %p32
    %p39 = scmp.eq.s32.totalorder %s9, 1
    %p40 = por %p38, %p39
    %p41 = scmp.ne.s32.totalorder %s33, %s36
    %p42 = scmp.eq.s32.totalorder %s9, 0
    %p43 = por %p41, %p42
    %p44 = scmp.ne.s32.totalorder %s33, %s36
    %p45 = scmp.eq.s32.totalorder %s14, 1
    %p46 = por %p44, %p45
    %p47 = scmp.ne.s32.totalorder %s36, %s37
    %p48 = scmp.eq.s32.totalorder %s14, 0
    %p49 = por %p47, %p48
    %p50 = scmp.ne.s32.totalorder %s36, %s37
    %p51 = scmp.eq.s32.totalorder %s15, 1
    %p52 = por %p50, %p51
    %p54 = scmp.ne.s32.totalorder %s37, %s53
    %p55 = scmp.eq.s32.totalorder %s15, 0
    %p56 = por %p54, %p55
    %s57 = ssub.s32 %s16, %s28
    %p58 = scmp.eq.s32.totalorder %s57, 0
    %s60 = sadd.s32 %s59, 1
    %s61 = scalar_select %p58, %s59, %s60
    %p64 = pneg %p58
    %p65 = scmp.eq.s32.totalorder %s9, 1
    %p66 = por %p64, %p65
    %p67 = scmp.ne.s32.totalorder %s59, %s62
    %p68 = scmp.eq.s32.totalorder %s9, 0
    %p69 = por %p67, %p68
    %p70 = scmp.ne.s32.totalorder %s59, %s62
    %p71 = scmp.eq.s32.totalorder %s14, 1
    %p72 = por %p70, %p71
    %p73 = scmp.ne.s32.totalorder %s62, %s63
    %p74 = scmp.eq.s32.totalorder %s14, 0
    %p75 = por %p73, %p74
    %p76 = scmp.ne.s32.totalorder %s62, %s63
    %p77 = scmp.eq.s32.totalorder %s15, 1
    %p78 = por %p76, %p77
    %p80 = scmp.ne.s32.totalorder %s63, %s79
    %p81 = scmp.eq.s32.totalorder %s15, 0
    %p82 = por %p80, %p81
    %s83 = ssub.s32 %s16, %s28
    %p84 = scmp.eq.s32.totalorder %s83, 0
    %s86 = sadd.s32 %s85, 1
    %s87 = scalar_select %p84, %s85, %s86
    %p90 = pneg %p84
    %p91 = scmp.eq.s32.totalorder %s9, 1
    %p92 = por %p90, %p91
    %p93 = scmp.ne.s32.totalorder %s85, %s88
    %p94 = scmp.eq.s32.totalorder %s9, 0
    %p95 = por %p93, %p94
    %p96 = scmp.ne.s32.totalorder %s85, %s88
    %p97 = scmp.eq.s32.totalorder %s14, 1
    %p98 = por %p96, %p97
    %p99 = scmp.ne.s32.totalorder %s88, %s89
    %p100 = scmp.eq.s32.totalorder %s14, 0
    %p101 = por %p99, %p100
    %p102 = scmp.ne.s32.totalorder %s88, %s89
    %p103 = scmp.eq.s32.totalorder %s15, 1
    %p104 = por %p102, %p103
    %p106 = scmp.ne.s32.totalorder %s89, %s105
    %p107 = scmp.eq.s32.totalorder %s15, 0
    %p108 = por %p106, %p107
    %s109 = ssub.s32 %s16, %s28
    %s110 = ssub.s32 %s17, %s24
    %s111 = sor.u32 %s109, %s110
    %p112 = scmp.eq.s32.totalorder %s111, 0
    %s114 = sadd.s32 %s113, 1
    %s115 = scalar_select %p112, %s113, %s114
    %p118 = pneg %p112
    %p119 = scmp.eq.s32.totalorder %s9, 1
    %p120 = por %p118, %p119
    %p121 = scmp.ne.s32.totalorder %s113, %s116
    %p122 = scmp.eq.s32.totalorder %s9, 0
    %p123 = por %p121, %p122
    %p124 = scmp.ne.s32.totalorder %s113, %s116
    %p125 = scmp.eq.s32.totalorder %s14, 1
    %p126 = por %p124, %p125
    %p127 = scmp.ne.s32.totalorder %s116, %s117
    %p128 = scmp.eq.s32.totalorder %s14, 0
    %p129 = por %p127, %p128
    %p130 = scmp.ne.s32.totalorder %s116, %s117
    %p131 = scmp.eq.s32.totalorder %s15, 1
    %p132 = por %p130, %p131
    %p134 = scmp.ne.s32.totalorder %s117, %s133
    %p135 = scmp.eq.s32.totalorder %s15, 0
    %p136 = por %p134, %p135
    %p137 = scmp.le.s32.totalorder 1, %s9
    %p138 = scmp.lt.s32.totalorder %s9, 3
    %p139 = pnand %p137, %p138
    %p140 = pneg %p139
    // Predicated region
    $region9: #{_lambda_.7} parent=5 // pred_check
      _
    $region10: #{_lambda_.7} parent=5 // pred_check_branch
      %142 = sbr.rel (%p139) target = $region12
    $region11: #{_lambda_.7} parent=5 // pred_region
      %s143 = ssub.s32 %s9, 1
    $region12: #{_lambda_.7} parent=5 // pred_fallthru
      _
    %p144 = scmp.lt.s32.totalorder %s9, 2
    // Predicated region
    $region13: #{_lambda_.7} parent=5 // pred_check
      %p145 = pneg %p144
    $region14: #{_lambda_.7} parent=5 // pred_check_branch
      %147 = sbr.rel (%p145) target = $region16
    $region15: #{_lambda_.7} parent=5 // pred_region
      // Predicated region
      $region17: #{_lambda_.7} parent=15 // pred_check
        %p148 = pneg %p43
      $region18: #{_lambda_.7} parent=15 // pred_check_branch
        %150 = sbr.rel (%p148) target = $region20
      $region19: #{_lambda_.7} parent=15 // pred_region
        %s151 = smul.u32 8, %s17
        %p152 = scmp.lt.s32.totalorder %s16, 1
        %s153 = scalar_select %p152, %s16, 1
        %p154 = scmp.lt.s32.totalorder %s151, 7
        %s155 = scalar_select %p154, %s151, 7
        %s156 = smul.addr %s153, 8
        %s157 = sadd.s32 %s155, %s156
        %s158 = smul.addr %s157, 2
        %s159 = scalar_lea.vmem %s0, %s158
        %s160 = smul.u32 8, %s17
      $region20: #{_lambda_.7} parent=15 // pred_fallthru
        _
      // Predicated region
      $region21: #{_lambda_.7} parent=15 // pred_check
        %p161 = pneg %p69
      $region22: #{_lambda_.7} parent=15 // pred_check_branch
        %163 = sbr.rel (%p161) target = $region24
      $region23: #{_lambda_.7} parent=15 // pred_region
        %p164 = scmp.lt.s32.totalorder %s16, 1
        %s165 = scalar_select %p164, %s16, 1
        %s166 = smul.addr %s165, 8
        %s167 = smul.addr %s166, 2
        %s168 = scalar_lea.vmem %s1, %s167
      $region24: #{_lambda_.7} parent=15 // pred_fallthru
        _
      // Predicated region
      $region25: #{_lambda_.7} parent=15 // pred_check
        %p169 = pneg %p95
      $region26: #{_lambda_.7} parent=15 // pred_check_branch
        %171 = sbr.rel (%p169) target = $region28
      $region27: #{_lambda_.7} parent=15 // pred_region
        %p172 = scmp.lt.s32.totalorder %s16, 1
        %s173 = scalar_select %p172, %s16, 1
        %s174 = smul.addr %s173, 8
        %s175 = smul.addr %s174, 2
        %s176 = scalar_lea.vmem %s2, %s175
      $region28: #{_lambda_.7} parent=15 // pred_fallthru
        _
    $region16: #{_lambda_.7} parent=5 // pred_fallthru
      _
    %p177 = scmp.le.s32.totalorder 1, %s9
    %p178 = scmp.lt.s32.totalorder %s9, 3
    %p179 = pnand %p177, %p178
    %p180 = pneg %p179
    // Predicated region
    $region29: #{_lambda_.7} parent=5 // pred_check
      _
    $region30: #{_lambda_.7} parent=5 // pred_check_branch
      %182 = sbr.rel (%p179) target = $region32
    $region31: #{_lambda_.7} parent=5 // pred_region
      %s183 = ssub.s32 %s9, 1
      %s184 = smul.u32 8, %s19
      %p185 = scmp.lt.s32.totalorder %s18, 1
      %s186 = scalar_select %p185, %s18, 1
      %p187 = scmp.lt.s32.totalorder %s184, 7
      %s188 = scalar_select %p187, %s184, 7
      %s189 = smul.addr %s186, 8
      %s190 = sadd.s32 %s188, %s189
      %s191 = smul.addr %s190, 2
      %s192 = scalar_lea.vmem %s0, %s191
      %p193 = pneg %p49
      %p194 = pneg %p46
      %p195 = scmp.lt.s32.totalorder %s18, 1
      %s196 = scalar_select %p195, %s18, 1
      %s197 = smul.addr %s196, 8
      %s198 = smul.addr %s197, 2
      %s199 = scalar_lea.vmem %s1, %s198
      %p200 = pneg %p75
      %p201 = pneg %p72
      %p202 = scmp.lt.s32.totalorder %s18, 1
      %s203 = scalar_select %p202, %s18, 1
      %s204 = smul.addr %s203, 8
      %s205 = smul.addr %s204, 2
      %s206 = scalar_lea.vmem %s2, %s205
      %p207 = pneg %p101
      %p208 = pneg %p98
      %p209 = pneg %p129
      %p210 = pneg %p126
      %p211 = scmp.lt.s32.totalorder %s18, 1
      %s212 = scalar_select %p211, %s18, 1
      %p213 = scmp.lt.s32.totalorder %s19, 0
      %s214 = scalar_select %p213, %s19, 0
      %s215 = sadd.s32 %s214, %s212
      %s216 = smul.addr %s215, 4
      %s217 = scalar_lea.vmem %s3, %s216
      %s218 = smul.u32 8, %s19
      %p219 = scmp.lt.s32.totalorder %s18, 1
      %s220 = scalar_select %p219, %s18, 1
      %p221 = scmp.lt.s32.totalorder %s218, 7
      %s222 = scalar_select %p221, %s218, 7
      %s223 = smul.addr %s220, 8
      %s224 = sadd.s32 %s222, %s223
      %s225 = smul.addr %s224, 2
      %s226 = scalar_lea.vmem %s0, %s225
      %s227 = smul.u32 8, %s19
      %p228 = scmp.lt.s32.totalorder %s18, 1
      %s229 = scalar_select %p228, %s18, 1
      %s230 = smul.addr %s229, 8
      %s231 = smul.addr %s230, 2
      %s232 = scalar_lea.vmem %s1, %s231
      %p233 = scmp.lt.s32.totalorder %s18, 1
      %s234 = scalar_select %p233, %s18, 1
      %s235 = smul.addr %s234, 8
      %s236 = smul.addr %s235, 2
      %s237 = scalar_lea.vmem %s2, %s236
      %p238 = scmp.lt.s32.totalorder %s18, 1
      %s239 = scalar_select %p238, %s18, 1
      %p240 = scmp.lt.s32.totalorder %s19, 0
      %s241 = scalar_select %p240, %s19, 0
      %s242 = sadd.s32 %s241, %s239
      %s243 = smul.addr %s242, 4
      %s244 = scalar_lea.vmem %s3, %s243
      %p246 = scmp.eq.s32.totalorder %s19, 0
      // Predicated region
      $region33: #{_lambda_.7} parent=31 // pred_check
        %p247 = pneg %p246
      $region34: #{_lambda_.7} parent=31 // pred_check_branch
        %249 = sbr.rel (%p247) target = $region36
      $region35: #{_lambda_.7} parent=31 // pred_region
        %v250 = vld [vmem:[%s232] sm:$0x3]
        %v251 = vld [vmem:[%s232 + $0x2] sm:$0x3]
        %v252 = vld [vmem:[%s232 + $0x4] sm:$0x3]
        %v253 = vld [vmem:[%s232 + $0x6] sm:$0x3]
        %v254 = vld [vmem:[%s232 + $0x8] sm:$0x3]
        %v255 = vld [vmem:[%s232 + $0xa] sm:$0x3]
        %v256 = vld [vmem:[%s232 + $0xc] sm:$0x3]
        %v257 = vld [vmem:[%s232 + $0xe] sm:$0x3]
        %v258 = vcombine.low %v250, %v252
        %v260 = vunpack.c.l.s4 1934713408
        %v261 = vunpack.c.0.s8 %v260
        %v262 = vlaneseq
        %v263 = vshrl.u32 %v262, 7
        %v264 = vsub.s32 %v261, %v263
        %v265 = vrot.slane %v258, %v264
        %v266 = vcombine.high %v265, 0
        %v267 = vcombine.low %v251, %v253
        %v269 = vunpack.c.l.s4 1934713408
        %v270 = vunpack.c.0.s8 %v269
        %v271 = vlaneseq
        %v272 = vshrl.u32 %v271, 7
        %v273 = vsub.s32 %v270, %v272
        %v274 = vrot.slane %v267, %v273
        %v275 = vcombine.high %v274, 0
        %v276 = vcombine.low %v254, %v256
        %v278 = vunpack.c.l.s4 1934713408
        %v279 = vunpack.c.0.s8 %v278
        %v280 = vlaneseq
        %v281 = vshrl.u32 %v280, 7
        %v282 = vsub.s32 %v279, %v281
        %v283 = vrot.slane %v276, %v282
        %v284 = vcombine.high %v283, 0
        %v285 = vcombine.low %v255, %v257
        %v287 = vunpack.c.l.s4 1934713408
        %v288 = vunpack.c.0.s8 %v287
        %v289 = vlaneseq
        %v290 = vshrl.u32 %v289, 7
        %v291 = vsub.s32 %v288, %v290
        %v292 = vrot.slane %v285, %v291
        %v293 = vcombine.high %v292, 0
        %v296 = vpack.i.b16 %v274, %v265
        %v297 = vshrl.u32 %v265, 16
        %v298 = vshrl.u32 %v274, 16
        %v299 = vpack.i.b16 %v298, %v297
        %v302 = vpack.i.b16 %v275, %v266
        %v303 = vshrl.u32 %v266, 16
        %v304 = vshrl.u32 %v275, 16
        %v305 = vpack.i.b16 %v304, %v303
        %v308 = vpack.i.b16 %v292, %v283
        %v309 = vshrl.u32 %v283, 16
        %v310 = vshrl.u32 %v292, 16
        %v311 = vpack.i.b16 %v310, %v309
        %v314 = vpack.i.b16 %v293, %v284
        %v315 = vshrl.u32 %v284, 16
        %v316 = vshrl.u32 %v293, 16
        %v317 = vpack.i.b16 %v316, %v315
        %v318 = vcombine.low %v296, %v308
        %v320 = vunpack.c.l.s4 1983009808
        %v321 = vunpack.c.0.s8 %v320
        %v322 = vlaneseq
        %v323 = vshrl.u32 %v322, 7
        %v324 = vsub.s32 %v321, %v323
        %v325 = vrot.slane %v318, %v324
        %v326 = vcombine.low %v299, %v311
        %v328 = vunpack.c.l.s4 1983009808
        %v329 = vunpack.c.0.s8 %v328
        %v330 = vlaneseq
        %v331 = vshrl.u32 %v330, 7
        %v332 = vsub.s32 %v329, %v331
        %v333 = vrot.slane %v326, %v332
        %v334 = vcombine.low %v302, %v314
        %v336 = vunpack.c.l.s4 1983009808
        %v337 = vunpack.c.0.s8 %v336
        %v338 = vlaneseq
        %v339 = vshrl.u32 %v338, 7
        %v340 = vsub.s32 %v337, %v339
        %v341 = vrot.slane %v334, %v340
        %v342 = vcombine.low %v305, %v317
        %v344 = vunpack.c.l.s4 1983009808
        %v345 = vunpack.c.0.s8 %v344
        %v346 = vlaneseq
        %v347 = vshrl.u32 %v346, 7
        %v348 = vsub.s32 %v345, %v347
        %v349 = vrot.slane %v342, %v348
        %vm354 = vcmask 60416
        %355 = vst.msk [vmem:[#allocation2] sm:$0xf] %vm354, %v325
        %356 = vst.msk [vmem:[#allocation2 + $0x4] sm:$0xf] %vm354, %v333
        %357 = vst.msk [vmem:[#allocation2 + $0x8] sm:$0xf] %vm354, %v341
        %358 = vst.msk [vmem:[#allocation2 + $0xc] sm:$0xf] %vm354, %v349
        %v359 = vld [vmem:[%s237] sm:$0x3]
        %v360 = vld [vmem:[%s237 + $0x2] sm:$0x3]
        %v361 = vld [vmem:[%s237 + $0x4] sm:$0x3]
        %v362 = vld [vmem:[%s237 + $0x6] sm:$0x3]
        %v363 = vld [vmem:[%s237 + $0x8] sm:$0x3]
        %v364 = vld [vmem:[%s237 + $0xa] sm:$0x3]
        %v365 = vld [vmem:[%s237 + $0xc] sm:$0x3]
        %v366 = vld [vmem:[%s237 + $0xe] sm:$0x3]
        %v367 = vcombine.low %v359, %v361
        %v369 = vunpack.c.l.s4 1934713408
        %v370 = vunpack.c.0.s8 %v369
        %v371 = vlaneseq
        %v372 = vshrl.u32 %v371, 7
        %v373 = vsub.s32 %v370, %v372
        %v374 = vrot.slane %v367, %v373
        %v375 = vcombine.high %v374, 0
        %v376 = vcombine.low %v360, %v362
        %v378 = vunpack.c.l.s4 1934713408
        %v379 = vunpack.c.0.s8 %v378
        %v380 = vlaneseq
        %v381 = vshrl.u32 %v380, 7
        %v382 = vsub.s32 %v379, %v381
        %v383 = vrot.slane %v376, %v382
        %v384 = vcombine.high %v383, 0
        %v385 = vcombine.low %v363, %v365
        %v387 = vunpack.c.l.s4 1934713408
        %v388 = vunpack.c.0.s8 %v387
        %v389 = vlaneseq
        %v390 = vshrl.u32 %v389, 7
        %v391 = vsub.s32 %v388, %v390
        %v392 = vrot.slane %v385, %v391
        %v393 = vcombine.high %v392, 0
        %v394 = vcombine.low %v364, %v366
        %v396 = vunpack.c.l.s4 1934713408
        %v397 = vunpack.c.0.s8 %v396
        %v398 = vlaneseq
        %v399 = vshrl.u32 %v398, 7
        %v400 = vsub.s32 %v397, %v399
        %v401 = vrot.slane %v394, %v400
        %v402 = vcombine.high %v401, 0
        %v405 = vpack.i.b16 %v383, %v374
        %v406 = vshrl.u32 %v374, 16
        %v407 = vshrl.u32 %v383, 16
        %v408 = vpack.i.b16 %v407, %v406
        %v411 = vpack.i.b16 %v384, %v375
        %v412 = vshrl.u32 %v375, 16
        %v413 = vshrl.u32 %v384, 16
        %v414 = vpack.i.b16 %v413, %v412
        %v417 = vpack.i.b16 %v401, %v392
        %v418 = vshrl.u32 %v392, 16
        %v419 = vshrl.u32 %v401, 16
        %v420 = vpack.i.b16 %v419, %v418
        %v423 = vpack.i.b16 %v402, %v393
        %v424 = vshrl.u32 %v393, 16
        %v425 = vshrl.u32 %v402, 16
        %v426 = vpack.i.b16 %v425, %v424
        %v427 = vcombine.low %v405, %v417
        %v429 = vunpack.c.l.s4 1983009808
        %v430 = vunpack.c.0.s8 %v429
        %v431 = vlaneseq
        %v432 = vshrl.u32 %v431, 7
        %v433 = vsub.s32 %v430, %v432
        %v434 = vrot.slane %v427, %v433
        %v435 = vcombine.low %v408, %v420
        %v437 = vunpack.c.l.s4 1983009808
        %v438 = vunpack.c.0.s8 %v437
        %v439 = vlaneseq
        %v440 = vshrl.u32 %v439, 7
        %v441 = vsub.s32 %v438, %v440
        %v442 = vrot.slane %v435, %v441
        %v443 = vcombine.low %v411, %v423
        %v445 = vunpack.c.l.s4 1983009808
        %v446 = vunpack.c.0.s8 %v445
        %v447 = vlaneseq
        %v448 = vshrl.u32 %v447, 7
        %v449 = vsub.s32 %v446, %v448
        %v450 = vrot.slane %v443, %v449
        %v451 = vcombine.low %v414, %v426
        %v453 = vunpack.c.l.s4 1983009808
        %v454 = vunpack.c.0.s8 %v453
        %v455 = vlaneseq
        %v456 = vshrl.u32 %v455, 7
        %v457 = vsub.s32 %v454, %v456
        %v458 = vrot.slane %v451, %v457
        %463 = vst.msk [vmem:[#allocation3] sm:$0xf] %vm354, %v434
        %464 = vst.msk [vmem:[#allocation3 + $0x4] sm:$0xf] %vm354, %v442
        %465 = vst.msk [vmem:[#allocation3 + $0x8] sm:$0xf] %vm354, %v450
        %466 = vst.msk [vmem:[#allocation3 + $0xc] sm:$0xf] %vm354, %v458
      $region36: #{_lambda_.7} parent=31 // pred_fallthru
        _
      %v467 = vld [vmem:[%s226] sm:$0x3]
      %v468 = vld [vmem:[%s226 + $0x2] sm:$0x3]
      %v469 = vld [vmem:[%s226 + $0x4] sm:$0x3]
      %v470 = vld [vmem:[%s226 + $0x6] sm:$0x3]
      %v471 = vld [vmem:[%s226 + $0x8] sm:$0x3]
      %v472 = vld [vmem:[%s226 + $0xa] sm:$0x3]
      %v473 = vld [vmem:[%s226 + $0xc] sm:$0x3]
      %v474 = vld [vmem:[%s226 + $0xe] sm:$0x3]
      %v475 = vcombine.low %v467, %v469
      %v477 = vunpack.c.l.s4 1934713408
      %v478 = vunpack.c.0.s8 %v477
      %v479 = vlaneseq
      %v480 = vshrl.u32 %v479, 7
      %v481 = vsub.s32 %v478, %v480
      %v482 = vrot.slane %v475, %v481
      %v483 = vcombine.high %v482, 0
      %v484 = vcombine.low %v468, %v470
      %v486 = vunpack.c.l.s4 1934713408
      %v487 = vunpack.c.0.s8 %v486
      %v488 = vlaneseq
      %v489 = vshrl.u32 %v488, 7
      %v490 = vsub.s32 %v487, %v489
      %v491 = vrot.slane %v484, %v490
      %v492 = vcombine.high %v491, 0
      %v493 = vcombine.low %v471, %v473
      %v495 = vunpack.c.l.s4 1934713408
      %v496 = vunpack.c.0.s8 %v495
      %v497 = vlaneseq
      %v498 = vshrl.u32 %v497, 7
      %v499 = vsub.s32 %v496, %v498
      %v500 = vrot.slane %v493, %v499
      %v501 = vcombine.high %v500, 0
      %v502 = vcombine.low %v472, %v474
      %v504 = vunpack.c.l.s4 1934713408
      %v505 = vunpack.c.0.s8 %v504
      %v506 = vlaneseq
      %v507 = vshrl.u32 %v506, 7
      %v508 = vsub.s32 %v505, %v507
      %v509 = vrot.slane %v502, %v508
      %v510 = vcombine.high %v509, 0
      %v513 = vpack.i.b16 %v491, %v482
      %v514 = vshrl.u32 %v482, 16
      %v515 = vshrl.u32 %v491, 16
      %v516 = vpack.i.b16 %v515, %v514
      %v519 = vpack.i.b16 %v492, %v483
      %v520 = vshrl.u32 %v483, 16
      %v521 = vshrl.u32 %v492, 16
      %v522 = vpack.i.b16 %v521, %v520
      %v525 = vpack.i.b16 %v509, %v500
      %v526 = vshrl.u32 %v500, 16
      %v527 = vshrl.u32 %v509, 16
      %v528 = vpack.i.b16 %v527, %v526
      %v531 = vpack.i.b16 %v510, %v501
      %v532 = vshrl.u32 %v501, 16
      %v533 = vshrl.u32 %v510, 16
      %v534 = vpack.i.b16 %v533, %v532
      %v535 = vld [vmem:[#allocation2] sm:$0xf]
      %v536 = vld [vmem:[#allocation2 + $0x4] sm:$0xf]
      %v537 = vld [vmem:[#allocation2 + $0x8] sm:$0xf]
      %v538 = vld [vmem:[#allocation2 + $0xc] sm:$0xf]
      %v539 = vld [vmem:[#allocation3] sm:$0xf]
      %v540 = vld [vmem:[#allocation3 + $0x4] sm:$0xf]
      %v541 = vld [vmem:[#allocation3 + $0x8] sm:$0xf]
      %v542 = vld [vmem:[#allocation3 + $0xc] sm:$0xf]
      %v543 = vcombine.low %v513, %v525
      %v545 = vunpack.c.l.s4 1983009808
      %v546 = vunpack.c.0.s8 %v545
      %v547 = vlaneseq
      %v548 = vshrl.u32 %v547, 7
      %v549 = vsub.s32 %v546, %v548
      %v550 = vrot.slane %v543, %v549
      %vm551 = vcmask 64512
      %v553 = vsel %vm551, %v550, 0
      %v556 = vsel %vm551, %v535, 0
      %558 = vmatprep.subr.bf16.mxu0 0
      %559 = vmatpush1.bf16.xpose.msra.mxu0 %v556
      %560 = vmatprep.subr.bf16.mxu0 0
      %561 = vmatpush1.bf16.xpose.msra.mxu0 0
      %562 = vmatprep.subr.bf16.mxu0 0
      %563 = vmatpush1.bf16.xpose.msra.mxu0 0
      %564 = vmatprep.subr.bf16.mxu0 0
      %565 = vmatpush1.bf16.xpose.msra.mxu0 0
      %566 = vmatprep.subr.bf16.mxu0 0
      %567 = vmatpush1.bf16.xpose.msra.mxu0 0
      %568 = vmatprep.subr.bf16.mxu0 0
      %569 = vmatpush1.bf16.xpose.msra.mxu0 0
      %570 = vmatprep.subr.bf16.mxu0 0
      %571 = vmatpush1.bf16.xpose.msra.mxu0 0
      %572 = vmatprep.subr.bf16.mxu0 0
      %573 = vmatpush1.bf16.xpose.msra.mxu0 0
      %574 = vmatprep.subr.bf16.mxu0 0
      %575 = vmatpush1.bf16.xpose.msra.mxu0 0
      %576 = vmatprep.subr.bf16.mxu0 0
      %577 = vmatpush1.bf16.xpose.msra.mxu0 0
      %578 = vmatprep.subr.bf16.mxu0 0
      %579 = vmatpush1.bf16.xpose.msra.mxu0 0
      %580 = vmatprep.subr.bf16.mxu0 0
      %581 = vmatpush1.bf16.xpose.msra.mxu0 0
      %582 = vmatprep.subr.bf16.mxu0 0
      %583 = vmatpush1.bf16.xpose.msra.mxu0 0
      %584 = vmatprep.subr.bf16.mxu0 0
      %585 = vmatpush1.bf16.xpose.msra.mxu0 0
      %586 = vmatprep.subr.bf16.mxu0 0
      %587 = vmatpush1.bf16.xpose.msra.mxu0 0
      %588 = vmatprep.subr.bf16.mxu0 0
      %589 = vmatpush1.bf16.xpose.msra.mxu0 0
      %590 = vmatprep.mubr.bf16.mxu0 0
      %591 = vmatmul.mubr.bf16.gmra.mrb[0].mxu0 %v553
      %v592 = vpop.f32.mrb[0].mxu0
      %v593 = vadd.f32 0.0, %v592
      %v594 = vpop.f32.mrb[0].mxu0
      %v595 = vpop.f32.mrb[0].mxu0
      %v596 = vpop.f32.mrb[0].mxu0
      %597 = vdwg.mxu0
      %v598 = vcombine.low %v516, %v528
      %v600 = vunpack.c.l.s4 1983009808
      %v601 = vunpack.c.0.s8 %v600
      %v602 = vlaneseq
      %v603 = vshrl.u32 %v602, 7
      %v604 = vsub.s32 %v601, %v603
      %v605 = vrot.slane %v598, %v604
      %v607 = vsel %vm551, %v605, 0
      %v610 = vsel %vm551, %v536, 0
      %612 = vmatprep.subr.bf16.mxu0 0
      %613 = vmatpush1.bf16.xpose.msra.mxu0 %v610
      %614 = vmatprep.subr.bf16.mxu0 0
      %615 = vmatpush1.bf16.xpose.msra.mxu0 0
      %616 = vmatprep.subr.bf16.mxu0 0
      %617 = vmatpush1.bf16.xpose.msra.mxu0 0
      %618 = vmatprep.subr.bf16.mxu0 0
      %619 = vmatpush1.bf16.xpose.msra.mxu0 0
      %620 = vmatprep.subr.bf16.mxu0 0
      %621 = vmatpush1.bf16.xpose.msra.mxu0 0
      %622 = vmatprep.subr.bf16.mxu0 0
      %623 = vmatpush1.bf16.xpose.msra.mxu0 0
      %624 = vmatprep.subr.bf16.mxu0 0
      %625 = vmatpush1.bf16.xpose.msra.mxu0 0
      %626 = vmatprep.subr.bf16.mxu0 0
      %627 = vmatpush1.bf16.xpose.msra.mxu0 0
      %628 = vmatprep.subr.bf16.mxu0 0
      %629 = vmatpush1.bf16.xpose.msra.mxu0 0
      %630 = vmatprep.subr.bf16.mxu0 0
      %631 = vmatpush1.bf16.xpose.msra.mxu0 0
      %632 = vmatprep.subr.bf16.mxu0 0
      %633 = vmatpush1.bf16.xpose.msra.mxu0 0
      %634 = vmatprep.subr.bf16.mxu0 0
      %635 = vmatpush1.bf16.xpose.msra.mxu0 0
      %636 = vmatprep.subr.bf16.mxu0 0
      %637 = vmatpush1.bf16.xpose.msra.mxu0 0
      %638 = vmatprep.subr.bf16.mxu0 0
      %639 = vmatpush1.bf16.xpose.msra.mxu0 0
      %640 = vmatprep.subr.bf16.mxu0 0
      %641 = vmatpush1.bf16.xpose.msra.mxu0 0
      %642 = vmatprep.subr.bf16.mxu0 0
      %643 = vmatpush1.bf16.xpose.msra.mxu0 0
      %644 = vmatprep.mubr.bf16.mxu0 0
      %645 = vmatmul.mubr.bf16.gmra.mrb[0].mxu0 %v607
      %v646 = vpop.f32.mrb[0].mxu0
      %v647 = vadd.f32 0.0, %v646
      %v648 = vpop.f32.mrb[0].mxu0
      %v649 = vpop.f32.mrb[0].mxu0
      %v650 = vpop.f32.mrb[0].mxu0
      %651 = vdwg.mxu0
      %v652 = vcombine.low %v519, %v531
      %v654 = vunpack.c.l.s4 1983009808
      %v655 = vunpack.c.0.s8 %v654
      %v656 = vlaneseq
      %v657 = vshrl.u32 %v656, 7
      %v658 = vsub.s32 %v655, %v657
      %v659 = vrot.slane %v652, %v658
      %v661 = vsel %vm551, %v659, 0
      %v664 = vsel %vm551, %v537, 0
      %666 = vmatprep.subr.bf16.mxu0 0
      %667 = vmatpush1.bf16.xpose.msra.mxu0 %v664
      %668 = vmatprep.subr.bf16.mxu0 0
      %669 = vmatpush1.bf16.xpose.msra.mxu0 0
      %670 = vmatprep.subr.bf16.mxu0 0
      %671 = vmatpush1.bf16.xpose.msra.mxu0 0
      %672 = vmatprep.subr.bf16.mxu0 0
      %673 = vmatpush1.bf16.xpose.msra.mxu0 0
      %674 = vmatprep.subr.bf16.mxu0 0
      %675 = vmatpush1.bf16.xpose.msra.mxu0 0
      %676 = vmatprep.subr.bf16.mxu0 0
      %677 = vmatpush1.bf16.xpose.msra.mxu0 0
      %678 = vmatprep.subr.bf16.mxu0 0
      %679 = vmatpush1.bf16.xpose.msra.mxu0 0
      %680 = vmatprep.subr.bf16.mxu0 0
      %681 = vmatpush1.bf16.xpose.msra.mxu0 0
      %682 = vmatprep.subr.bf16.mxu0 0
      %683 = vmatpush1.bf16.xpose.msra.mxu0 0
      %684 = vmatprep.subr.bf16.mxu0 0
      %685 = vmatpush1.bf16.xpose.msra.mxu0 0
      %686 = vmatprep.subr.bf16.mxu0 0
      %687 = vmatpush1.bf16.xpose.msra.mxu0 0
      %688 = vmatprep.subr.bf16.mxu0 0
      %689 = vmatpush1.bf16.xpose.msra.mxu0 0
      %690 = vmatprep.subr.bf16.mxu0 0
      %691 = vmatpush1.bf16.xpose.msra.mxu0 0
      %692 = vmatprep.subr.bf16.mxu0 0
      %693 = vmatpush1.bf16.xpose.msra.mxu0 0
      %694 = vmatprep.subr.bf16.mxu0 0
      %695 = vmatpush1.bf16.xpose.msra.mxu0 0
      %696 = vmatprep.subr.bf16.mxu0 0
      %697 = vmatpush1.bf16.xpose.msra.mxu0 0
      %698 = vmatprep.mubr.bf16.mxu0 0
      %699 = vmatmul.mubr.bf16.gmra.mrb[0].mxu0 %v661
      %v700 = vpop.f32.mrb[0].mxu0
      %v701 = vadd.f32 0.0, %v700
      %v702 = vpop.f32.mrb[0].mxu0
      %v703 = vpop.f32.mrb[0].mxu0
      %v704 = vpop.f32.mrb[0].mxu0
      %705 = vdwg.mxu0
      %v706 = vcombine.low %v522, %v534
      %v708 = vunpack.c.l.s4 1983009808
      %v709 = vunpack.c.0.s8 %v708
      %v710 = vlaneseq
      %v711 = vshrl.u32 %v710, 7
      %v712 = vsub.s32 %v709, %v711
      %v713 = vrot.slane %v706, %v712
      %v715 = vsel %vm551, %v713, 0
      %v718 = vsel %vm551, %v538, 0
      %720 = vmatprep.subr.bf16.mxu0 0
      %721 = vmatpush1.bf16.xpose.msra.mxu0 %v718
      %722 = vmatprep.subr.bf16.mxu0 0
      %723 = vmatpush1.bf16.xpose.msra.mxu0 0
      %724 = vmatprep.subr.bf16.mxu0 0
      %725 = vmatpush1.bf16.xpose.msra.mxu0 0
      %726 = vmatprep.subr.bf16.mxu0 0
      %727 = vmatpush1.bf16.xpose.msra.mxu0 0
      %728 = vmatprep.subr.bf16.mxu0 0
      %729 = vmatpush1.bf16.xpose.msra.mxu0 0
      %730 = vmatprep.subr.bf16.mxu0 0
      %731 = vmatpush1.bf16.xpose.msra.mxu0 0
      %732 = vmatprep.subr.bf16.mxu0 0
      %733 = vmatpush1.bf16.xpose.msra.mxu0 0
      %734 = vmatprep.subr.bf16.mxu0 0
      %735 = vmatpush1.bf16.xpose.msra.mxu0 0
      %736 = vmatprep.subr.bf16.mxu0 0
      %737 = vmatpush1.bf16.xpose.msra.mxu0 0
      %738 = vmatprep.subr.bf16.mxu0 0
      %739 = vmatpush1.bf16.xpose.msra.mxu0 0
      %740 = vmatprep.subr.bf16.mxu0 0
      %741 = vmatpush1.bf16.xpose.msra.mxu0 0
      %742 = vmatprep.subr.bf16.mxu0 0
      %743 = vmatpush1.bf16.xpose.msra.mxu0 0
      %744 = vmatprep.subr.bf16.mxu0 0
      %745 = vmatpush1.bf16.xpose.msra.mxu0 0
      %746 = vmatprep.subr.bf16.mxu0 0
      %747 = vmatpush1.bf16.xpose.msra.mxu0 0
      %748 = vmatprep.subr.bf16.mxu0 0
      %749 = vmatpush1.bf16.xpose.msra.mxu0 0
      %750 = vmatprep.subr.bf16.mxu0 0
      %751 = vmatpush1.bf16.xpose.msra.mxu0 0
      %752 = vmatprep.mubr.bf16.mxu0 0
      %753 = vmatmul.mubr.bf16.gmra.mrb[0].mxu0 %v715
      %v754 = vpop.f32.mrb[0].mxu0
      %v755 = vadd.f32 0.0, %v754
      %v756 = vpop.f32.mrb[0].mxu0
      %v757 = vpop.f32.mrb[0].mxu0
      %v758 = vpop.f32.mrb[0].mxu0
      %759 = vdwg.mxu0
      %v760 = vsel %vm551, %v593, -inf
      %761 = vmax.xlane.f32.xlu0 %v760
      %v762 = vpop.xlane.xlu0 %761
      %v763 = vsel %vm551, %v647, -inf
      %764 = vmax.xlane.f32.xlu0 %v763
      %v765 = vpop.xlane.xlu0 %764
      %v766 = vsel %vm551, %v701, -inf
      %767 = vmax.xlane.f32.xlu0 %v766
      %v768 = vpop.xlane.xlu0 %767
      %v769 = vsel %vm551, %v755, -inf
      %770 = vmax.xlane.f32.xlu0 %v769
      %v771 = vpop.xlane.xlu0 %770
      %v772 = vsub.f32 %v593, %v762
      %v773 = vsub.f32 %v647, %v765
      %v774 = vsub.f32 %v701, %v768
      %v775 = vsub.f32 %v755, %v771
      %v776 = vmul.f32 %v772, 1.442695
      %v777 = vpow.pop %v776
      %v778 = vmul.f32 %v773, 1.442695
      %v779 = vpow.pop %v778
      %v780 = vmul.f32 %v774, 1.442695
      %v781 = vpow.pop %v780
      %v782 = vmul.f32 %v775, 1.442695
      %v783 = vpow.pop %v782
      %v784 = vsel %vm551, %v777, 0.0
      %785 = vadd.xlane.f32.xlu0 %v784
      %v786 = vpop.xlane.xlu0 %785
      %v787 = vsel %vm551, %v779, 0.0
      %788 = vadd.xlane.f32.xlu0 %v787
      %v789 = vpop.xlane.xlu0 %788
      %v790 = vsel %vm551, %v781, 0.0
      %791 = vadd.xlane.f32.xlu0 %v790
      %v792 = vpop.xlane.xlu0 %791
      %v793 = vsel %vm551, %v783, 0.0
      %794 = vadd.xlane.f32.xlu0 %v793
      %v795 = vpop.xlane.xlu0 %794
      %v796 = vpack.c.bf16 %v777, %v777
      %v797 = vpack.c.bf16 %v779, %v779
      %v798 = vpack.c.bf16 %v781, %v781
      %v799 = vpack.c.bf16 %v783, %v783
      %v801 = vsel %vm551, %v796, 0
      %vm803 = vcmask 1043456
      %v805 = vsel %vm803, %v539, 0
      %807 = vmatprep.subr.bf16.mxu0 0
      %808 = vmatpush1.bf16.msra.mxu0 %v805
      %809 = vmatprep.subr.bf16.mxu0 0
      %810 = vmatpush1.bf16.msra.mxu0 0
      %811 = vmatprep.subr.bf16.mxu0 0
      %812 = vmatpush1.bf16.msra.mxu0 0
      %813 = vmatprep.subr.bf16.mxu0 0
      %814 = vmatpush1.bf16.msra.mxu0 0
      %815 = vmatprep.subr.bf16.mxu0 0
      %816 = vmatpush1.bf16.msra.mxu0 0
      %817 = vmatprep.subr.bf16.mxu0 0
      %818 = vmatpush1.bf16.msra.mxu0 0
      %819 = vmatprep.subr.bf16.mxu0 0
      %820 = vmatpush1.bf16.msra.mxu0 0
      %821 = vmatprep.subr.bf16.mxu0 0
      %822 = vmatpush1.bf16.msra.mxu0 0
      %823 = vmatprep.subr.bf16.mxu0 0
      %824 = vmatpush1.bf16.msra.mxu0 0
      %825 = vmatprep.subr.bf16.mxu0 0
      %826 = vmatpush1.bf16.msra.mxu0 0
      %827 = vmatprep.subr.bf16.mxu0 0
      %828 = vmatpush1.bf16.msra.mxu0 0
      %829 = vmatprep.subr.bf16.mxu0 0
      %830 = vmatpush1.bf16.msra.mxu0 0
      %831 = vmatprep.subr.bf16.mxu0 0
      %832 = vmatpush1.bf16.msra.mxu0 0
      %833 = vmatprep.subr.bf16.mxu0 0
      %834 = vmatpush1.bf16.msra.mxu0 0
      %835 = vmatprep.subr.bf16.mxu0 0
      %836 = vmatpush1.bf16.msra.mxu0 0
      %837 = vmatprep.subr.bf16.mxu0 0
      %838 = vmatpush1.bf16.msra.mxu0 0
      %839 = vmatprep.mubr.bf16.mxu0 0
      %840 = vmatmul.mubr.bf16.gmra.mrb[0].mxu0 %v801
      %v841 = vpop.f32.mrb[0].mxu0
      %v842 = vadd.f32 0.0, %v841
      %v843 = vpop.f32.mrb[0].mxu0
      %v844 = vpop.f32.mrb[0].mxu0
      %v845 = vpop.f32.mrb[0].mxu0
      %846 = vdwg.mxu0
      %v848 = vsel %vm551, %v797, 0
      %v851 = vsel %vm803, %v540, 0
      %853 = vmatprep.subr.bf16.mxu0 0
      %854 = vmatpush1.bf16.msra.mxu0 %v851
      %855 = vmatprep.subr.bf16.mxu0 0
      %856 = vmatpush1.bf16.msra.mxu0 0
      %857 = vmatprep.subr.bf16.mxu0 0
      %858 = vmatpush1.bf16.msra.mxu0 0
      %859 = vmatprep.subr.bf16.mxu0 0
      %860 = vmatpush1.bf16.msra.mxu0 0
      %861 = vmatprep.subr.bf16.mxu0 0
      %862 = vmatpush1.bf16.msra.mxu0 0
      %863 = vmatprep.subr.bf16.mxu0 0
      %864 = vmatpush1.bf16.msra.mxu0 0
      %865 = vmatprep.subr.bf16.mxu0 0
      %866 = vmatpush1.bf16.msra.mxu0 0
      %867 = vmatprep.subr.bf16.mxu0 0
      %868 = vmatpush1.bf16.msra.mxu0 0
      %869 = vmatprep.subr.bf16.mxu0 0
      %870 = vmatpush1.bf16.msra.mxu0 0
      %871 = vmatprep.subr.bf16.mxu0 0
      %872 = vmatpush1.bf16.msra.mxu0 0
      %873 = vmatprep.subr.bf16.mxu0 0
      %874 = vmatpush1.bf16.msra.mxu0 0
      %875 = vmatprep.subr.bf16.mxu0 0
      %876 = vmatpush1.bf16.msra.mxu0 0
      %877 = vmatprep.subr.bf16.mxu0 0
      %878 = vmatpush1.bf16.msra.mxu0 0
      %879 = vmatprep.subr.bf16.mxu0 0
      %880 = vmatpush1.bf16.msra.mxu0 0
      %881 = vmatprep.subr.bf16.mxu0 0
      %882 = vmatpush1.bf16.msra.mxu0 0
      %883 = vmatprep.subr.bf16.mxu0 0
      %884 = vmatpush1.bf16.msra.mxu0 0
      %885 = vmatprep.mubr.bf16.mxu0 0
      %886 = vmatmul.mubr.bf16.gmra.mrb[0].mxu0 %v848
      %v887 = vpop.f32.mrb[0].mxu0
      %v888 = vadd.f32 0.0, %v887
      %v889 = vpop.f32.mrb[0].mxu0
      %v890 = vpop.f32.mrb[0].mxu0
      %v891 = vpop.f32.mrb[0].mxu0
      %892 = vdwg.mxu0
      %v894 = vsel %vm551, %v798, 0
      %v897 = vsel %vm803, %v541, 0
      %899 = vmatprep.subr.bf16.mxu0 0
      %900 = vmatpush1.bf16.msra.mxu0 %v897
      %901 = vmatprep.subr.bf16.mxu0 0
      %902 = vmatpush1.bf16.msra.mxu0 0
      %903 = vmatprep.subr.bf16.mxu0 0
      %904 = vmatpush1.bf16.msra.mxu0 0
      %905 = vmatprep.subr.bf16.mxu0 0
      %906 = vmatpush1.bf16.msra.mxu0 0
      %907 = vmatprep.subr.bf16.mxu0 0
      %908 = vmatpush1.bf16.msra.mxu0 0
      %909 = vmatprep.subr.bf16.mxu0 0
      %910 = vmatpush1.bf16.msra.mxu0 0
      %911 = vmatprep.subr.bf16.mxu0 0
      %912 = vmatpush1.bf16.msra.mxu0 0
      %913 = vmatprep.subr.bf16.mxu0 0
      %914 = vmatpush1.bf16.msra.mxu0 0
      %915 = vmatprep.subr.bf16.mxu0 0
      %916 = vmatpush1.bf16.msra.mxu0 0
      %917 = vmatprep.subr.bf16.mxu0 0
      %918 = vmatpush1.bf16.msra.mxu0 0
      %919 = vmatprep.subr.bf16.mxu0 0
      %920 = vmatpush1.bf16.msra.mxu0 0
      %921 = vmatprep.subr.bf16.mxu0 0
      %922 = vmatpush1.bf16.msra.mxu0 0
      %923 = vmatprep.subr.bf16.mxu0 0
      %924 = vmatpush1.bf16.msra.mxu0 0
      %925 = vmatprep.subr.bf16.mxu0 0
      %926 = vmatpush1.bf16.msra.mxu0 0
      %927 = vmatprep.subr.bf16.mxu0 0
      %928 = vmatpush1.bf16.msra.mxu0 0
      %929 = vmatprep.subr.bf16.mxu0 0
      %930 = vmatpush1.bf16.msra.mxu0 0
      %931 = vmatprep.mubr.bf16.mxu0 0
      %932 = vmatmul.mubr.bf16.gmra.mrb[0].mxu0 %v894
      %v933 = vpop.f32.mrb[0].mxu0
      %v934 = vadd.f32 0.0, %v933
      %v935 = vpop.f32.mrb[0].mxu0
      %v936 = vpop.f32.mrb[0].mxu0
      %v937 = vpop.f32.mrb[0].mxu0
      %938 = vdwg.mxu0
      %v940 = vsel %vm551, %v799, 0
      %v943 = vsel %vm803, %v542, 0
      %945 = vmatprep.subr.bf16.mxu0 0
      %946 = vmatpush1.bf16.msra.mxu0 %v943
      %947 = vmatprep.subr.bf16.mxu0 0
      %948 = vmatpush1.bf16.msra.mxu0 0
      %949 = vmatprep.subr.bf16.mxu0 0
      %950 = vmatpush1.bf16.msra.mxu0 0
      %951 = vmatprep.subr.bf16.mxu0 0
      %952 = vmatpush1.bf16.msra.mxu0 0
      %953 = vmatprep.subr.bf16.mxu0 0
      %954 = vmatpush1.bf16.msra.mxu0 0
      %955 = vmatprep.subr.bf16.mxu0 0
      %956 = vmatpush1.bf16.msra.mxu0 0
      %957 = vmatprep.subr.bf16.mxu0 0
      %958 = vmatpush1.bf16.msra.mxu0 0
      %959 = vmatprep.subr.bf16.mxu0 0
      %960 = vmatpush1.bf16.msra.mxu0 0
      %961 = vmatprep.subr.bf16.mxu0 0
      %962 = vmatpush1.bf16.msra.mxu0 0
      %963 = vmatprep.subr.bf16.mxu0 0
      %964 = vmatpush1.bf16.msra.mxu0 0
      %965 = vmatprep.subr.bf16.mxu0 0
      %966 = vmatpush1.bf16.msra.mxu0 0
      %967 = vmatprep.subr.bf16.mxu0 0
      %968 = vmatpush1.bf16.msra.mxu0 0
      %969 = vmatprep.subr.bf16.mxu0 0
      %970 = vmatpush1.bf16.msra.mxu0 0
      %971 = vmatprep.subr.bf16.mxu0 0
      %972 = vmatpush1.bf16.msra.mxu0 0
      %973 = vmatprep.subr.bf16.mxu0 0
      %974 = vmatpush1.bf16.msra.mxu0 0
      %975 = vmatprep.subr.bf16.mxu0 0
      %976 = vmatpush1.bf16.msra.mxu0 0
      %977 = vmatprep.mubr.bf16.mxu0 0
      %978 = vmatmul.mubr.bf16.gmra.mrb[0].mxu0 %v940
      %v979 = vpop.f32.mrb[0].mxu0
      %v980 = vadd.f32 0.0, %v979
      %v981 = vpop.f32.mrb[0].mxu0
      %v982 = vpop.f32.mrb[0].mxu0
      %v983 = vpop.f32.mrb[0].mxu0
      %984 = vdwg.mxu0
      %v985 = vrcp.pop %v786
      %v986 = vrcp.pop %v789
      %v987 = vrcp.pop %v792
      %v988 = vrcp.pop %v795
      %v989 = vmul.f32 %v842, %v985
      %v990 = vmul.f32 %v888, %v986
      %v991 = vmul.f32 %v934, %v987
      %v992 = vmul.f32 %v980, %v988
      %v993 = vpack.c.bf16 %v989, %v989
      %v994 = vpack.c.bf16 %v990, %v990
      %v995 = vpack.c.bf16 %v991, %v991
      %v996 = vpack.c.bf16 %v992, %v992
      %998 = vrot.lane.b32.xlu0 %v994, 8
      %v999 = vpop.permute.xlu0 %998
      %1001 = vrot.lane.b32.xlu0 %v995, 16
      %v1002 = vpop.permute.xlu0 %1001
      %1004 = vrot.lane.b32.xlu0 %v996, 24
      %v1005 = vpop.permute.xlu0 %1004
      %v1008 = vsel %vm551, %v993, %v999
      %vm1009 = vcmask 130048
      %v1011 = vsel %vm1009, %v1008, %v1002
      %vm1012 = vcmask 195584
      %v1014 = vsel %vm1012, %v1011, %v1005
      %vm1016 = vcmask 257024
      %1017 = vst.msk [vmem:[%s244] sm:$0xf] %vm1016, %v1014
      %p1018 = scmp.lt.s32.totalorder %s18, 1
      %s1019 = scalar_select %p1018, %s18, 1
      %p1020 = scmp.lt.s32.totalorder %s19, 0
      %s1021 = scalar_select %p1020, %s19, 0
      %s1022 = sadd.s32 %s1021, %s1019
      %s1023 = smul.addr %s1022, 4
      %s1024 = scalar_lea.vmem %s3, %s1023
      // Predicated region
      $region37: #{_lambda_.7} parent=31 // pred_check
        %p1025 = pneg %p126
      $region38: #{_lambda_.7} parent=31 // pred_check_branch
        %1027 = sbr.rel (%p1025) target = $region40
      $region39: #{_lambda_.7} parent=31 // pred_region
        _
      $region40: #{_lambda_.7} parent=31 // pred_fallthru
        _
    $region32: #{_lambda_.7} parent=5 // pred_fallthru
      _
    %p1028 = scmp.le.s32.totalorder 2, %s9
    // Predicated region
    $region41: #{_lambda_.7} parent=5 // pred_check
      %p1029 = pneg %p1028
    $region42: #{_lambda_.7} parent=5 // pred_check_branch
      %1031 = sbr.rel (%p1029) target = $region44
    $region43: #{_lambda_.7} parent=5 // pred_region
      %s1032 = ssub.s32 %s9, 2
      // Predicated region
      $region45: #{_lambda_.7} parent=43 // pred_check
        %p1033 = pneg %p132
      $region46: #{_lambda_.7} parent=43 // pred_check_branch
        %1035 = sbr.rel (%p1033) target = $region48
      $region47: #{_lambda_.7} parent=43 // pred_region
        %p1036 = scmp.lt.s32.totalorder %s20, 1
        %s1037 = scalar_select %p1036, %s20, 1
        %p1038 = scmp.lt.s32.totalorder %s21, 0
        %s1039 = scalar_select %p1038, %s21, 0
        %s1040 = sadd.s32 %s1039, %s1037
        %s1041 = smul.addr %s1040, 4
        %s1042 = scalar_lea.vmem %s3, %s1041
      $region48: #{_lambda_.7} parent=43 // pred_fallthru
        _
    $region44: #{_lambda_.7} parent=5 // pred_fallthru
      _
  $region6: #{_lambda_.7} parent=0 // loop_footer
    %s13 = sadd.s32 1, %s9
  $region7: #{_lambda_.7} parent=0 // loop_footer_branch
    %8 = sbr.rel target = $region3
  $region8: #{_lambda_.7} parent=0 // loop_exit
    _

</llo_original>
